<compile_context>
chip_gen: v5e
topology: v5e:2x2
jax: 0.10.0
libtpu: 0.0.40
codegen_flags: <defaults>
</compile_context>

<pallas_src>
import functools

import jax
import jax.numpy as jnp
from jax import lax
from jax.experimental import pallas as pl
from jax.experimental.pallas import tpu as pltpu


# ---------------------------------------------------------------------------
# Fused decoder-layer kernel (one grid step == one image).
# ---------------------------------------------------------------------------
def _decoder_kernel(x_ref, f_ref, mh_ref, mwc_ref, b1x_ref, b1f_ref,
                    bands_ref, bias_ref, o_ref,
                    xup_ref, fpad_ref, a_ref, b_ref,
                    *, h, wc, wc_in, wc_pre, k1):
    p1 = (k1 - 1) // 2                       # 5x5 row halo

    # Zero ONLY the halo rows of the persistent scratch; interiors are fully
    # overwritten every step.  (Done every step, not @pl.when(pid==0), so it is
    # correct when the "parallel" grid is split across v7x's two TensorCores,
    # each of which owns its own scratch.)
    xup_ref[pl.ds(0, p1), :] = jnp.zeros((p1, wc_in), jnp.float32)
    xup_ref[pl.ds(p1 + h, p1), :] = jnp.zeros((p1, wc_in), jnp.float32)
    fpad_ref[pl.ds(0, p1), :] = jnp.zeros((p1, wc_pre), jnp.float32)
    fpad_ref[pl.ds(p1 + h, p1), :] = jnp.zeros((p1, wc_pre), jnp.float32)
    a_ref[pl.ds(0, 1), :] = jnp.zeros((1, wc), jnp.float32)
    a_ref[pl.ds(h + 1, 1), :] = jnp.zeros((1, wc), jnp.float32)
    b_ref[pl.ds(0, 1), :] = jnp.zeros((1, wc), jnp.float32)
    b_ref[pl.ds(h + 1, 1), :] = jnp.zeros((1, wc), jnp.float32)

    # -- skip_connection_cat prologue (in-kernel): bilinear x2 + crop ---------
    # Height then width upsample as two small f32 matmuls on the flattened
    # NHWC layout; result lands at lane offset 0 (only row halo is padded).
    x_h = jnp.dot(mh_ref[...], x_ref[0], preferred_element_type=jnp.float32)
    xup_ref[pl.ds(p1, h), :] = jnp.dot(x_h, mwc_ref[...],
                                       preferred_element_type=jnp.float32)
    fpad_ref[pl.ds(p1, h), :] = f_ref[0]

    # -- conv1: 5x5 over cat(x_up, f) + bias + LeakyReLU(0.01) ----------------
    # The concat is folded into conv1: separate band weights for the x_up
    # channels and the f channels; width zero-padding is folded into the bands.
    xu = xup_ref[...].astype(jnp.bfloat16)
    fp = fpad_ref[...].astype(jnp.bfloat16)
    acc = jnp.zeros((h, wc), jnp.float32)
    for kh in range(k1):                     # static unroll -> 2*k1 MXU pushes
        acc += jnp.dot(xu[kh:kh + h, :], b1x_ref[kh],
                       preferred_element_type=jnp.float32)
        acc += jnp.dot(fp[kh:kh + h, :], b1f_ref[kh],
                       preferred_element_type=jnp.float32)
    acc += bias_ref[0]
    cur = jnp.where(acc >= 0.0, acc, 0.01 * acc)
    a_ref[pl.ds(1, h), :] = cur

    def conv3(src_ref, li, act):
        """3x3 conv (row-band matmuls) + bias + activation, layer li in [0,6)."""
        xb = src_ref[...].astype(jnp.bfloat16)          # (h+2, wc) with halo
        r = jnp.zeros((h, wc), jnp.float32)
        for kh in range(3):
            r += jnp.dot(xb[kh:kh + h, :], bands_ref[3 * li + kh],
                         preferred_element_type=jnp.float32)
        r += bias_ref[li + 1]
        if act == "relu":
            r = jnp.maximum(r, 0.0)
        elif act == "leaky":
            r = jnp.where(r >= 0.0, r, 0.01 * r)        # nn.LeakyReLU() default
        return r

    # skip_connection_cat conv2 (3x3, LeakyReLU):   A -> B
    cur = conv3(a_ref, 0, "leaky")
    b_ref[pl.ds(1, h), :] = cur

    # Cascade of 2 ResnetBlocks; residual add uses the live `cur` value.
    for blk in range(2):
        r = conv3(b_ref, 1 + 2 * blk, "relu")           # B -> A
        a_ref[pl.ds(1, h), :] = r
        cur = conv3(a_ref, 2 + 2 * blk, "none") + cur   # A -> B (+ skip)
        b_ref[pl.ds(1, h), :] = cur

    # Final conv (3x3, LeakyReLU): B -> out
    o_ref[0] = conv3(b_ref, 5, "leaky").astype(o_ref.dtype)


def _fused_decoder_call(x_flat, f_flat, kp, *, h, wf, out_c, in_c, pre_c, hx,
                        k1=5):
    n, _, wxc_in = x_flat.shape
    wc = wf * out_c
    wc_in, wc_pre = wf * in_c, wf * pre_c
    p1 = (k1 - 1) // 2

    kernel = functools.partial(_decoder_kernel, h=h, wc=wc, wc_in=wc_in,
                               wc_pre=wc_pre, k1=k1)
    grid_spec = pltpu.PrefetchScalarGridSpec(
        num_scalar_prefetch=0,
        grid=(n,),
        in_specs=[
            pl.BlockSpec((1, hx, wxc_in), lambda b: (b, 0, 0)),   # x (NHWC-flat)
            pl.BlockSpec((1, h, wc_pre), lambda b: (b, 0, 0)),    # f (NHWC-flat)
            pl.BlockSpec((h, hx), lambda b: (0, 0)),              # Mh
            pl.BlockSpec((wxc_in, wc_in), lambda b: (0, 0)),      # MwC
            pl.BlockSpec((k1, wc_in, wc), lambda b: (0, 0, 0)),   # conv1 x bands
            pl.BlockSpec((k1, wc_pre, wc), lambda b: (0, 0, 0)),  # conv1 f bands
            pl.BlockSpec((18, wc, wc), lambda b: (0, 0, 0)),      # 6x 3x3 bands
            pl.BlockSpec((7, 1, wc), lambda b: (0, 0, 0)),        # tiled biases
        ],
        out_specs=pl.BlockSpec((1, h, wc), lambda b: (b, 0, 0)),
        scratch_shapes=[
            pltpu.VMEM((h + 2 * p1, wc_in), jnp.float32),   # row-padded x_up
            pltpu.VMEM((h + 2 * p1, wc_pre), jnp.float32),  # row-padded f
            pltpu.VMEM((h + 2, wc), jnp.float32),           # ping activation
            pltpu.VMEM((h + 2, wc), jnp.float32),           # pong activation
        ],
    )
    return pl.pallas_call(
        kernel,
        out_shape=jax.ShapeDtypeStruct((n, h, wc), jnp.float32),
        grid_spec=grid_spec,
        compiler_params=pltpu.CompilerParams(
            dimension_semantics=("parallel",)),  # batch across v7x's 2 TCs
    )(x_flat, f_flat, kp["mh"], kp["mwc"], kp["band1_x"], kp["band1_f"],
      kp["bands3"], kp["biases"])


# ---------------------------------------------------------------------------
# One-time parameter preprocessing (hoisted out of the jitted forward).
# ---------------------------------------------------------------------------
def _bilinear_matrix(n_in, n_out):
    """1-D matrix for F.interpolate(mode='bilinear', align_corners=True)."""
    if n_in == 1:
        return jnp.ones((n_out, 1), jnp.float32)
    src = jnp.arange(n_out, dtype=jnp.float32) * (n_in - 1) / (n_out - 1)
    i0 = jnp.clip(jnp.floor(src).astype(jnp.int32), 0, n_in - 2)
    frac = src - i0.astype(jnp.float32)
    rows = jnp.arange(n_out)
    m = jnp.zeros((n_out, n_in), jnp.float32)
    m = m.at[rows, i0].set(1.0 - frac)
    m = m.at[rows, i0 + 1].set(frac)
    return m


def _band_weights(w_oihw, w_out):
    """(Cout,Cin,k,k) -> (k, W*Cin, W*Cout) banded weights with width zero-
    padding folded in (out-of-range taps dropped): contraction depth = W*Cin.

    band[kh, jw*Cin + c, j*Cout + o] = w[o, c, kh, jw - j + pad] when in range.
    """
    cout, cin, k, _ = w_oihw.shape
    pad = (k - 1) // 2
    jw = jnp.arange(w_out)[:, None, None]
    jj = jnp.arange(w_out)[None, :, None]
    kk = jnp.arange(k)[None, None, :]
    onehot = (jw == jj + kk - pad).astype(jnp.float32)       # (w, w, k)
    w_t = jnp.transpose(w_oihw, (2, 3, 1, 0))                 # (kh, kw, cin, cout)
    band = jnp.einsum("pjk,hkco->hpcjo", onehot, w_t)         # (k, w, cin, w, cout)
    return band.reshape(k, w_out * cin, w_out * cout)


def prepare_params(p, *, in_c, pre_c, out_c, hx, wx, hf, wf):
    mh = _bilinear_matrix(hx, 2 * hx)[:hf]                    # (hf, hx), crop
    mw = _bilinear_matrix(wx, 2 * wx)[:wf]                    # (wf, wx), crop
    # width-upsample matrix on the flattened (W, C) layout: (wx*in_c, wf*in_c)
    mwc = jnp.kron(mw.T, jnp.eye(in_c, dtype=jnp.float32))

    w1 = p["sc1_w"]                                           # (C, in_c+pre_c, 5, 5)
    band1_x = _band_weights(w1[:, :in_c], wf).astype(jnp.bfloat16)
    band1_f = _band_weights(w1[:, in_c:], wf).astype(jnp.bfloat16)

    w3 = [p["sc2_w"], p["rb0_w1"], p["rb0_w2"], p["rb1_w1"], p["rb1_w2"],
          p["fin_w"]]
    bands3 = jnp.concatenate([_band_weights(w, wf) for w in w3],
                             axis=0).astype(jnp.bfloat16)     # (18, W*C, W*C)
    bl = [p["sc1_b"], p["sc2_b"], p["rb0_b1"], p["rb0_b2"],
          p["rb1_b1"], p["rb1_b2"], p["fin_b"]]
    biases = jnp.stack([jnp.tile(b, wf).reshape(1, wf * out_c) for b in bl]
                       ).astype(jnp.float32)                  # (7, 1, W*C)
    return dict(mh=mh, mwc=mwc, band1_x=band1_x, band1_f=band1_f,
                bands3=bands3, biases=biases)


# ---------------------------------------------------------------------------
# Decoder_layer forward.
# ---------------------------------------------------------------------------
def decoder_layer_forward(x, f, kp, *, out_c):
    """x: (N, inC, Hx, Wx), f: (N, preC, Hf, Wf) -> (N, outC, Hf, Wf)."""
    n, in_c, hx, wx = x.shape
    _, pre_c, hf, wf = f.shape
    # One-time NCHW -> lane-dense flattened NHWC at the kernel boundary.
    x_flat = jnp.transpose(x, (0, 2, 3, 1)).reshape(n, hx, wx * in_c)
    f_flat = jnp.transpose(f, (0, 2, 3, 1)).reshape(n, hf, wf * pre_c)
    out_flat = _fused_decoder_call(x_flat, f_flat, kp, h=hf, wf=wf, out_c=out_c,
                                   in_c=in_c, pre_c=pre_c, hx=hx)
    return jnp.transpose(out_flat.reshape(n, hf, wf, out_c), (0, 3, 1, 2))


# ---------------------------------------------------------------------------
# Pure-JAX reference (same bf16 operand casts for the convs, f32 accumulation).
# ---------------------------------------------------------------------------
def _ref_conv(x, w, b, act):
    k = w.shape[2]
    pad = (k - 1) // 2
    y = lax.conv_general_dilated(
        x.astype(jnp.bfloat16), w.astype(jnp.bfloat16), (1, 1),
        [(pad, pad), (pad, pad)],
        dimension_numbers=("NCHW", "OIHW", "NCHW"),
        preferred_element_type=jnp.float32)
    y = y + b.reshape(1, -1, 1, 1)
    if act == "relu":
        y = jnp.maximum(y, 0.0)
    elif act == "leaky":
        y = jnp.where(y >= 0.0, y, 0.01 * y)
    return y


def decoder_layer_reference(x, f, p):
    n, in_c, hx, wx = x.shape
    _, pre_c, hf, wf = f.shape
    mh = _bilinear_matrix(hx, 2 * hx)
    mw = _bilinear_matrix(wx, 2 * wx)
    x_up = jnp.einsum("oh,nchw,pw->ncop", mh, x, mw)[:, :, :hf, :wf]
    c = jnp.concatenate([x_up, f], axis=1)
    c = _ref_conv(c, p["sc1_w"], p["sc1_b"], "leaky")
    c = _ref_conv(c, p["sc2_w"], p["sc2_b"], "leaky")
    for i in range(2):
        r = _ref_conv(c, p[f"rb{i}_w1"], p[f"rb{i}_b1"], "relu")
        c = c + _ref_conv(r, p[f"rb{i}_w2"], p[f"rb{i}_b2"], "none")
    return _ref_conv(c, p["fin_w"], p["fin_b"], "leaky")


# ---------------------------------------------------------------------------
# Parameter init + smoke test.
# ---------------------------------------------------------------------------
def _xavier_uniform(key, shape):
    cout, cin, kh, kw = shape
    fan_in, fan_out = cin * kh * kw, cout * kh * kw
    bound = (6.0 / (fan_in + fan_out)) ** 0.5
    return jax.random.uniform(key, shape, jnp.float32, -bound, bound)


def init_params(key, in_c, out_c, pre_c):
    # (PyTorch init zeroes conv biases; small random biases here exercise the
    #  bias path without changing forward semantics.)
    ks = jax.random.split(key, 14)
    p = {
        "sc1_w": _xavier_uniform(ks[0], (out_c, in_c + pre_c, 5, 5)),
        "sc1_b": 0.1 * jax.random.normal(ks[1], (out_c,), jnp.float32),
        "sc2_w": _xavier_uniform(ks[2], (out_c, out_c, 3, 3)),
        "sc2_b": 0.1 * jax.random.normal(ks[3], (out_c,), jnp.float32),
        "fin_w": _xavier_uniform(ks[12], (out_c, out_c, 3, 3)),
        "fin_b": 0.1 * jax.random.normal(ks[13], (out_c,), jnp.float32),
    }
    for i in range(2):
        p[f"rb{i}_w1"] = _xavier_uniform(ks[4 + 4 * i], (out_c, out_c, 3, 3))
        p[f"rb{i}_b1"] = 0.1 * jax.random.normal(ks[5 + 4 * i], (out_c,), jnp.float32)
        p[f"rb{i}_w2"] = _xavier_uniform(ks[6 + 4 * i], (out_c, out_c, 3, 3))
        p[f"rb{i}_b2"] = 0.1 * jax.random.normal(ks[7 + 4 * i], (out_c,), jnp.float32)
    return p


if __name__ == "__main__":
    key = jax.random.PRNGKey(0)
    k_x, k_f, k_p = jax.random.split(key, 3)

    N, IN_C, OUT_C, PRE_C = 2, 8, 8, 4
    HX, WX = 8, 8          # low-res decoder input (upsampled x2 inside)
    HF, WF = 16, 16        # skip-feature resolution (W * OUT_C = 128 lanes)

    x = jax.random.normal(k_x, (N, IN_C, HX, WX), jnp.float32)
    f = jax.random.normal(k_f, (N, PRE_C, HF, WF), jnp.float32)
    params = init_params(k_p, IN_C, OUT_C, PRE_C)

    # One-time weight preprocessing (band weights, bilinear matrices, biases)
    # — hoisted out of the jitted forward, runs once at weight-load time.
    kp = prepare_params(params, in_c=IN_C, pre_c=PRE_C, out_c=OUT_C,
                        hx=HX, wx=WX, hf=HF, wf=WF)
    kp = jax.tree_util.tree_map(jnp.asarray, kp)

    fwd = jax.jit(functools.partial(decoder_layer_forward, out_c=OUT_C))
    out = jax.block_until_ready(fwd(x, f, kp))

    ref = decoder_layer_reference(x, f, params)
    assert out.shape == (N, OUT_C, HF, WF), out.shape
    assert jnp.allclose(out, ref, atol=2e-2, rtol=2e-2), \
        float(jnp.max(jnp.abs(out - ref)))

    print("KERNEL_OK")
</pallas_src>

<mosaic_0001>
module attributes {stable_mosaic.version = 11 : i64} {
  func.func @_decoder_kernel(%arg0: i32, %arg1: memref<1x8x64xf32, #tpu.memory_space<vmem>>, %arg2: memref<1x16x64xf32, #tpu.memory_space<vmem>>, %arg3: memref<16x8xf32, #tpu.memory_space<vmem>>, %arg4: memref<64x128xf32, #tpu.memory_space<vmem>>, %arg5: memref<5x128x128xbf16, #tpu.memory_space<vmem>>, %arg6: memref<5x64x128xbf16, #tpu.memory_space<vmem>>, %arg7: memref<18x128x128xbf16, #tpu.memory_space<vmem>>, %arg8: memref<7x1x128xf32, #tpu.memory_space<vmem>>, %arg9: memref<1x16x128xf32, #tpu.memory_space<vmem>>, %arg10: memref<20x128xf32, #tpu.memory_space<vmem>>, %arg11: memref<20x64xf32, #tpu.memory_space<vmem>>, %arg12: memref<18x128xf32, #tpu.memory_space<vmem>>, %arg13: memref<18x128xf32, #tpu.memory_space<vmem>>) attributes {dimension_semantics = [#tpu.dimension_semantics<parallel>], iteration_bounds = array<i64: 2>, scalar_prefetch = 0 : i64, scratch_operands = 4 : i64, tpu.core_type = #tpu.core_type<tc>, window_params = [{transform_indices = @transform_0, window_bounds = array<i64: 1, 8, 64>}, {transform_indices = @transform_1, window_bounds = array<i64: 1, 16, 64>}, {pipeline_mode = #tpu.pipeline_mode<synchronous>, transform_indices = @transform_2, window_bounds = array<i64: 16, 8>}, {pipeline_mode = #tpu.pipeline_mode<synchronous>, transform_indices = @transform_3, window_bounds = array<i64: 64, 128>}, {pipeline_mode = #tpu.pipeline_mode<synchronous>, transform_indices = @transform_4, window_bounds = array<i64: 5, 128, 128>}, {pipeline_mode = #tpu.pipeline_mode<synchronous>, transform_indices = @transform_5, window_bounds = array<i64: 5, 64, 128>}, {pipeline_mode = #tpu.pipeline_mode<synchronous>, transform_indices = @transform_6, window_bounds = array<i64: 18, 128, 128>}, {pipeline_mode = #tpu.pipeline_mode<synchronous>, transform_indices = @transform_7, window_bounds = array<i64: 7, 1, 128>}, {transform_indices = @transform_8, window_bounds = array<i64: 1, 16, 128>}]} {
    %cst = arith.constant 0.000000e+00 : f32
    %0 = vector.broadcast %cst : f32 to vector<2x128xf32>
    %c0 = arith.constant 0 : index
    %c0_0 = arith.constant 0 : index
    %1 = vector.load %arg10[%c0, %c0_0] : memref<20x128xf32, #tpu.memory_space<vmem>>, vector<2x128xf32>
    tpu.vector_store %arg10[%c0, %c0_0], %0 {strides = array<i32>} : memref<20x128xf32, #tpu.memory_space<vmem>>, vector<2x128xf32>,
    %cst_1 = arith.constant 0.000000e+00 : f32
    %2 = vector.broadcast %cst_1 : f32 to vector<2x128xf32>
    %c18 = arith.constant 18 : index
    %c0_2 = arith.constant 0 : index
    %3 = vector.load %arg10[%c18, %c0_2] : memref<20x128xf32, #tpu.memory_space<vmem>>, vector<2x128xf32>
    tpu.vector_store %arg10[%c18, %c0_2], %2 {strides = array<i32>} : memref<20x128xf32, #tpu.memory_space<vmem>>, vector<2x128xf32>,
    %cst_3 = arith.constant 0.000000e+00 : f32
    %4 = vector.broadcast %cst_3 : f32 to vector<2x64xf32>
    %c0_4 = arith.constant 0 : index
    %c0_5 = arith.constant 0 : index
    %5 = vector.load %arg11[%c0_4, %c0_5] : memref<20x64xf32, #tpu.memory_space<vmem>>, vector<2x64xf32>
    tpu.vector_store %arg11[%c0_4, %c0_5], %4 {strides = array<i32>} : memref<20x64xf32, #tpu.memory_space<vmem>>, vector<2x64xf32>,
    %cst_6 = arith.constant 0.000000e+00 : f32
    %6 = vector.broadcast %cst_6 : f32 to vector<2x64xf32>
    %c18_7 = arith.constant 18 : index
    %c0_8 = arith.constant 0 : index
    %7 = vector.load %arg11[%c18_7, %c0_8] : memref<20x64xf32, #tpu.memory_space<vmem>>, vector<2x64xf32>
    tpu.vector_store %arg11[%c18_7, %c0_8], %6 {strides = array<i32>} : memref<20x64xf32, #tpu.memory_space<vmem>>, vector<2x64xf32>,
    %cst_9 = arith.constant 0.000000e+00 : f32
    %8 = vector.broadcast %cst_9 : f32 to vector<1x128xf32>
    %c0_10 = arith.constant 0 : index
    %c0_11 = arith.constant 0 : index
    %9 = vector.load %arg12[%c0_10, %c0_11] : memref<18x128xf32, #tpu.memory_space<vmem>>, vector<1x128xf32>
    tpu.vector_store %arg12[%c0_10, %c0_11], %8 {strides = array<i32>} : memref<18x128xf32, #tpu.memory_space<vmem>>, vector<1x128xf32>,
    %cst_12 = arith.constant 0.000000e+00 : f32
    %10 = vector.broadcast %cst_12 : f32 to vector<1x128xf32>
    %c17 = arith.constant 17 : index
    %c0_13 = arith.constant 0 : index
    %11 = vector.load %arg12[%c17, %c0_13] : memref<18x128xf32, #tpu.memory_space<vmem>>, vector<1x128xf32>
    tpu.vector_store %arg12[%c17, %c0_13], %10 {strides = array<i32>} : memref<18x128xf32, #tpu.memory_space<vmem>>, vector<1x128xf32>,
    %cst_14 = arith.constant 0.000000e+00 : f32
    %12 = vector.broadcast %cst_14 : f32 to vector<1x128xf32>
    %c0_15 = arith.constant 0 : index
    %c0_16 = arith.constant 0 : index
    %13 = vector.load %arg13[%c0_15, %c0_16] : memref<18x128xf32, #tpu.memory_space<vmem>>, vector<1x128xf32>
    tpu.vector_store %arg13[%c0_15, %c0_16], %12 {strides = array<i32>} : memref<18x128xf32, #tpu.memory_space<vmem>>, vector<1x128xf32>,
    %cst_17 = arith.constant 0.000000e+00 : f32
    %14 = vector.broadcast %cst_17 : f32 to vector<1x128xf32>
    %c17_18 = arith.constant 17 : index
    %c0_19 = arith.constant 0 : index
    %15 = vector.load %arg13[%c17_18, %c0_19] : memref<18x128xf32, #tpu.memory_space<vmem>>, vector<1x128xf32>
    tpu.vector_store %arg13[%c17_18, %c0_19], %14 {strides = array<i32>} : memref<18x128xf32, #tpu.memory_space<vmem>>, vector<1x128xf32>,
    %c0_20 = arith.constant 0 : index
    %c0_21 = arith.constant 0 : index
    %16 = vector.load %arg3[%c0_20, %c0_21] : memref<16x8xf32, #tpu.memory_space<vmem>>, vector<16x8xf32>
    %c0_22 = arith.constant 0 : index
    %c0_23 = arith.constant 0 : index
    %c0_24 = arith.constant 0 : index
    %17 = vector.load %arg1[%c0_22, %c0_23, %c0_24] : memref<1x8x64xf32, #tpu.memory_space<vmem>>, vector<1x8x64xf32>
    %18 = vector.shape_cast %17 : vector<1x8x64xf32> to vector<8x64xf32>
    %cst_25 = arith.constant dense<0.000000e+00> : vector<16x64xf32>
    %19 = tpu.matmul %16, %18, %cst_25 {dimension_numbers = #tpu.dot_dimension_numbers<[1], [0], [0], [1], [0, 0, 1, 1], [], []>} : vector<16x8xf32>, vector<8x64xf32>, vector<16x64xf32> -> vector<16x64xf32>
    %c0_26 = arith.constant 0 : index
    %c0_27 = arith.constant 0 : index
    %20 = vector.load %arg4[%c0_26, %c0_27] : memref<64x128xf32, #tpu.memory_space<vmem>>, vector<64x128xf32>
    %cst_28 = arith.constant dense<0.000000e+00> : vector<16x128xf32>
    %21 = tpu.matmul %19, %20, %cst_28 {dimension_numbers = #tpu.dot_dimension_numbers<[1], [0], [0], [1], [0, 0, 1, 1], [], []>} : vector<16x64xf32>, vector<64x128xf32>, vector<16x128xf32> -> vector<16x128xf32>
    %c2 = arith.constant 2 : index
    %c0_29 = arith.constant 0 : index
    %22 = vector.load %arg10[%c2, %c0_29] : memref<20x128xf32, #tpu.memory_space<vmem>>, vector<16x128xf32>
    tpu.vector_store %arg10[%c2, %c0_29], %21 {strides = array<i32>} : memref<20x128xf32, #tpu.memory_space<vmem>>, vector<16x128xf32>,
    %c0_30 = arith.constant 0 : index
    %c0_31 = arith.constant 0 : index
    %c0_32 = arith.constant 0 : index
    %23 = vector.load %arg2[%c0_30, %c0_31, %c0_32] : memref<1x16x64xf32, #tpu.memory_space<vmem>>, vector<1x16x64xf32>
    %24 = vector.shape_cast %23 : vector<1x16x64xf32> to vector<16x64xf32>
    %c2_33 = arith.constant 2 : index
    %c0_34 = arith.constant 0 : index
    %25 = vector.load %arg11[%c2_33, %c0_34] : memref<20x64xf32, #tpu.memory_space<vmem>>, vector<16x64xf32>
    tpu.vector_store %arg11[%c2_33, %c0_34], %24 {strides = array<i32>} : memref<20x64xf32, #tpu.memory_space<vmem>>, vector<16x64xf32>,
    %c0_35 = arith.constant 0 : index
    %c0_36 = arith.constant 0 : index
    %26 = vector.load %arg10[%c0_35, %c0_36] : memref<20x128xf32, #tpu.memory_space<vmem>>, vector<20x128xf32>
    %27 = arith.truncf %26 : vector<20x128xf32> to vector<20x128xbf16>
    %c0_37 = arith.constant 0 : index
    %c0_38 = arith.constant 0 : index
    %28 = vector.load %arg11[%c0_37, %c0_38] : memref<20x64xf32, #tpu.memory_space<vmem>>, vector<20x64xf32>
    %29 = arith.truncf %28 : vector<20x64xf32> to vector<20x64xbf16>
    %cst_39 = arith.constant 0.000000e+00 : f32
    %30 = vector.broadcast %cst_39 : f32 to vector<16x128xf32>
    %31 = vector.extract_strided_slice %27 {offsets = [0, 0], sizes = [16, 128], strides = [1, 1]} : vector<20x128xbf16> to vector<16x128xbf16>
    %c0_40 = arith.constant 0 : index
    %c0_41 = arith.constant 0 : index
    %c0_42 = arith.constant 0 : index
    %32 = vector.load %arg5[%c0_40, %c0_41, %c0_42] : memref<5x128x128xbf16, #tpu.memory_space<vmem>>, vector<1x128x128xbf16>
    %33 = vector.shape_cast %32 : vector<1x128x128xbf16> to vector<128x128xbf16>
    %cst_43 = arith.constant dense<0.000000e+00> : vector<16x128xf32>
    %34 = tpu.matmul %31, %33, %cst_43 {dimension_numbers = #tpu.dot_dimension_numbers<[1], [0], [0], [1], [0, 0, 1, 1], [], []>} : vector<16x128xbf16>, vector<128x128xbf16>, vector<16x128xf32> -> vector<16x128xf32>
    %35 = arith.addf %30, %34 : vector<16x128xf32>
    %36 = vector.extract_strided_slice %29 {offsets = [0, 0], sizes = [16, 64], strides = [1, 1]} : vector<20x64xbf16> to vector<16x64xbf16>
    %c0_44 = arith.constant 0 : index
    %c0_45 = arith.constant 0 : index
    %c0_46 = arith.constant 0 : index
    %37 = vector.load %arg6[%c0_44, %c0_45, %c0_46] : memref<5x64x128xbf16, #tpu.memory_space<vmem>>, vector<1x64x128xbf16>
    %38 = vector.shape_cast %37 : vector<1x64x128xbf16> to vector<64x128xbf16>
    %cst_47 = arith.constant dense<0.000000e+00> : vector<16x128xf32>
    %39 = tpu.matmul %36, %38, %cst_47 {dimension_numbers = #tpu.dot_dimension_numbers<[1], [0], [0], [1], [0, 0, 1, 1], [], []>} : vector<16x64xbf16>, vector<64x128xbf16>, vector<16x128xf32> -> vector<16x128xf32>
    %40 = arith.addf %35, %39 : vector<16x128xf32>
    %41 = vector.extract_strided_slice %27 {offsets = [1, 0], sizes = [16, 128], strides = [1, 1]} : vector<20x128xbf16> to vector<16x128xbf16>
    %c1 = arith.constant 1 : index
    %c0_48 = arith.constant 0 : index
    %c0_49 = arith.constant 0 : index
    %42 = vector.load %arg5[%c1, %c0_48, %c0_49] : memref<5x128x128xbf16, #tpu.memory_space<vmem>>, vector<1x128x128xbf16>
    %43 = vector.shape_cast %42 : vector<1x128x128xbf16> to vector<128x128xbf16>
    %cst_50 = arith.constant dense<0.000000e+00> : vector<16x128xf32>
    %44 = tpu.matmul %41, %43, %cst_50 {dimension_numbers = #tpu.dot_dimension_numbers<[1], [0], [0], [1], [0, 0, 1, 1], [], []>} : vector<16x128xbf16>, vector<128x128xbf16>, vector<16x128xf32> -> vector<16x128xf32>
    %45 = arith.addf %40, %44 : vector<16x128xf32>
    %46 = vector.extract_strided_slice %29 {offsets = [1, 0], sizes = [16, 64], strides = [1, 1]} : vector<20x64xbf16> to vector<16x64xbf16>
    %c1_51 = arith.constant 1 : index
    %c0_52 = arith.constant 0 : index
    %c0_53 = arith.constant 0 : index
    %47 = vector.load %arg6[%c1_51, %c0_52, %c0_53] : memref<5x64x128xbf16, #tpu.memory_space<vmem>>, vector<1x64x128xbf16>
    %48 = vector.shape_cast %47 : vector<1x64x128xbf16> to vector<64x128xbf16>
    %cst_54 = arith.constant dense<0.000000e+00> : vector<16x128xf32>
    %49 = tpu.matmul %46, %48, %cst_54 {dimension_numbers = #tpu.dot_dimension_numbers<[1], [0], [0], [1], [0, 0, 1, 1], [], []>} : vector<16x64xbf16>, vector<64x128xbf16>, vector<16x128xf32> -> vector<16x128xf32>
    %50 = arith.addf %45, %49 : vector<16x128xf32>
    %51 = vector.extract_strided_slice %27 {offsets = [2, 0], sizes = [16, 128], strides = [1, 1]} : vector<20x128xbf16> to vector<16x128xbf16>
    %c2_55 = arith.constant 2 : index
    %c0_56 = arith.constant 0 : index
    %c0_57 = arith.constant 0 : index
    %52 = vector.load %arg5[%c2_55, %c0_56, %c0_57] : memref<5x128x128xbf16, #tpu.memory_space<vmem>>, vector<1x128x128xbf16>
    %53 = vector.shape_cast %52 : vector<1x128x128xbf16> to vector<128x128xbf16>
    %cst_58 = arith.constant dense<0.000000e+00> : vector<16x128xf32>
    %54 = tpu.matmul %51, %53, %cst_58 {dimension_numbers = #tpu.dot_dimension_numbers<[1], [0], [0], [1], [0, 0, 1, 1], [], []>} : vector<16x128xbf16>, vector<128x128xbf16>, vector<16x128xf32> -> vector<16x128xf32>
    %55 = arith.addf %50, %54 : vector<16x128xf32>
    %56 = vector.extract_strided_slice %29 {offsets = [2, 0], sizes = [16, 64], strides = [1, 1]} : vector<20x64xbf16> to vector<16x64xbf16>
    %c2_59 = arith.constant 2 : index
    %c0_60 = arith.constant 0 : index
    %c0_61 = arith.constant 0 : index
    %57 = vector.load %arg6[%c2_59, %c0_60, %c0_61] : memref<5x64x128xbf16, #tpu.memory_space<vmem>>, vector<1x64x128xbf16>
    %58 = vector.shape_cast %57 : vector<1x64x128xbf16> to vector<64x128xbf16>
    %cst_62 = arith.constant dense<0.000000e+00> : vector<16x128xf32>
    %59 = tpu.matmul %56, %58, %cst_62 {dimension_numbers = #tpu.dot_dimension_numbers<[1], [0], [0], [1], [0, 0, 1, 1], [], []>} : vector<16x64xbf16>, vector<64x128xbf16>, vector<16x128xf32> -> vector<16x128xf32>
    %60 = arith.addf %55, %59 : vector<16x128xf32>
    %61 = vector.extract_strided_slice %27 {offsets = [3, 0], sizes = [16, 128], strides = [1, 1]} : vector<20x128xbf16> to vector<16x128xbf16>
    %c3 = arith.constant 3 : index
    %c0_63 = arith.constant 0 : index
    %c0_64 = arith.constant 0 : index
    %62 = vector.load %arg5[%c3, %c0_63, %c0_64] : memref<5x128x128xbf16, #tpu.memory_space<vmem>>, vector<1x128x128xbf16>
    %63 = vector.shape_cast %62 : vector<1x128x128xbf16> to vector<128x128xbf16>
    %cst_65 = arith.constant dense<0.000000e+00> : vector<16x128xf32>
    %64 = tpu.matmul %61, %63, %cst_65 {dimension_numbers = #tpu.dot_dimension_numbers<[1], [0], [0], [1], [0, 0, 1, 1], [], []>} : vector<16x128xbf16>, vector<128x128xbf16>, vector<16x128xf32> -> vector<16x128xf32>
    %65 = arith.addf %60, %64 : vector<16x128xf32>
    %66 = vector.extract_strided_slice %29 {offsets = [3, 0], sizes = [16, 64], strides = [1, 1]} : vector<20x64xbf16> to vector<16x64xbf16>
    %c3_66 = arith.constant 3 : index
    %c0_67 = arith.constant 0 : index
    %c0_68 = arith.constant 0 : index
    %67 = vector.load %arg6[%c3_66, %c0_67, %c0_68] : memref<5x64x128xbf16, #tpu.memory_space<vmem>>, vector<1x64x128xbf16>
    %68 = vector.shape_cast %67 : vector<1x64x128xbf16> to vector<64x128xbf16>
    %cst_69 = arith.constant dense<0.000000e+00> : vector<16x128xf32>
    %69 = tpu.matmul %66, %68, %cst_69 {dimension_numbers = #tpu.dot_dimension_numbers<[1], [0], [0], [1], [0, 0, 1, 1], [], []>} : vector<16x64xbf16>, vector<64x128xbf16>, vector<16x128xf32> -> vector<16x128xf32>
    %70 = arith.addf %65, %69 : vector<16x128xf32>
    %71 = vector.extract_strided_slice %27 {offsets = [4, 0], sizes = [16, 128], strides = [1, 1]} : vector<20x128xbf16> to vector<16x128xbf16>
    %c4 = arith.constant 4 : index
    %c0_70 = arith.constant 0 : index
    %c0_71 = arith.constant 0 : index
    %72 = vector.load %arg5[%c4, %c0_70, %c0_71] : memref<5x128x128xbf16, #tpu.memory_space<vmem>>, vector<1x128x128xbf16>
    %73 = vector.shape_cast %72 : vector<1x128x128xbf16> to vector<128x128xbf16>
    %cst_72 = arith.constant dense<0.000000e+00> : vector<16x128xf32>
    %74 = tpu.matmul %71, %73, %cst_72 {dimension_numbers = #tpu.dot_dimension_numbers<[1], [0], [0], [1], [0, 0, 1, 1], [], []>} : vector<16x128xbf16>, vector<128x128xbf16>, vector<16x128xf32> -> vector<16x128xf32>
    %75 = arith.addf %70, %74 : vector<16x128xf32>
    %76 = vector.extract_strided_slice %29 {offsets = [4, 0], sizes = [16, 64], strides = [1, 1]} : vector<20x64xbf16> to vector<16x64xbf16>
    %c4_73 = arith.constant 4 : index
    %c0_74 = arith.constant 0 : index
    %c0_75 = arith.constant 0 : index
    %77 = vector.load %arg6[%c4_73, %c0_74, %c0_75] : memref<5x64x128xbf16, #tpu.memory_space<vmem>>, vector<1x64x128xbf16>
    %78 = vector.shape_cast %77 : vector<1x64x128xbf16> to vector<64x128xbf16>
    %cst_76 = arith.constant dense<0.000000e+00> : vector<16x128xf32>
    %79 = tpu.matmul %76, %78, %cst_76 {dimension_numbers = #tpu.dot_dimension_numbers<[1], [0], [0], [1], [0, 0, 1, 1], [], []>} : vector<16x64xbf16>, vector<64x128xbf16>, vector<16x128xf32> -> vector<16x128xf32>
    %80 = arith.addf %75, %79 : vector<16x128xf32>
    %c0_77 = arith.constant 0 : index
    %c0_78 = arith.constant 0 : index
    %c0_79 = arith.constant 0 : index
    %81 = vector.load %arg8[%c0_77, %c0_78, %c0_79] : memref<7x1x128xf32, #tpu.memory_space<vmem>>, vector<1x1x128xf32>
    %82 = vector.shape_cast %81 : vector<1x1x128xf32> to vector<1x128xf32>
    %83 = vector.broadcast %82 : vector<1x128xf32> to vector<16x128xf32>
    %84 = arith.addf %80, %83 : vector<16x128xf32>
    %cst_80 = arith.constant 0.000000e+00 : f32
    %85 = vector.broadcast %cst_80 : f32 to vector<16x128xf32>
    %86 = arith.cmpf oge, %84, %85 : vector<16x128xf32>
    %cst_81 = arith.constant 0.00999999977 : f32
    %87 = vector.broadcast %cst_81 : f32 to vector<16x128xf32>
    %88 = arith.mulf %87, %84 : vector<16x128xf32>
    %89 = arith.select %86, %84, %88 : vector<16x128xi1>, vector<16x128xf32>
    %c1_82 = arith.constant 1 : index
    %c0_83 = arith.constant 0 : index
    %90 = vector.load %arg12[%c1_82, %c0_83] : memref<18x128xf32, #tpu.memory_space<vmem>>, vector<16x128xf32>
    tpu.vector_store %arg12[%c1_82, %c0_83], %89 {strides = array<i32>} : memref<18x128xf32, #tpu.memory_space<vmem>>, vector<16x128xf32>,
    %c0_84 = arith.constant 0 : index
    %c0_85 = arith.constant 0 : index
    %91 = vector.load %arg12[%c0_84, %c0_85] : memref<18x128xf32, #tpu.memory_space<vmem>>, vector<18x128xf32>
    %92 = arith.truncf %91 : vector<18x128xf32> to vector<18x128xbf16>
    %cst_86 = arith.constant 0.000000e+00 : f32
    %93 = vector.broadcast %cst_86 : f32 to vector<16x128xf32>
    %94 = vector.extract_strided_slice %92 {offsets = [0, 0], sizes = [16, 128], strides = [1, 1]} : vector<18x128xbf16> to vector<16x128xbf16>
    %c0_87 = arith.constant 0 : index
    %c0_88 = arith.constant 0 : index
    %c0_89 = arith.constant 0 : index
    %95 = vector.load %arg7[%c0_87, %c0_88, %c0_89] : memref<18x128x128xbf16, #tpu.memory_space<vmem>>, vector<1x128x128xbf16>
    %96 = vector.shape_cast %95 : vector<1x128x128xbf16> to vector<128x128xbf16>
    %cst_90 = arith.constant dense<0.000000e+00> : vector<16x128xf32>
    %97 = tpu.matmul %94, %96, %cst_90 {dimension_numbers = #tpu.dot_dimension_numbers<[1], [0], [0], [1], [0, 0, 1, 1], [], []>} : vector<16x128xbf16>, vector<128x128xbf16>, vector<16x128xf32> -> vector<16x128xf32>
    %98 = arith.addf %93, %97 : vector<16x128xf32>
    %99 = vector.extract_strided_slice %92 {offsets = [1, 0], sizes = [16, 128], strides = [1, 1]} : vector<18x128xbf16> to vector<16x128xbf16>
    %c1_91 = arith.constant 1 : index
    %c0_92 = arith.constant 0 : index
    %c0_93 = arith.constant 0 : index
    %100 = vector.load %arg7[%c1_91, %c0_92, %c0_93] : memref<18x128x128xbf16, #tpu.memory_space<vmem>>, vector<1x128x128xbf16>
    %101 = vector.shape_cast %100 : vector<1x128x128xbf16> to vector<128x128xbf16>
    %cst_94 = arith.constant dense<0.000000e+00> : vector<16x128xf32>
    %102 = tpu.matmul %99, %101, %cst_94 {dimension_numbers = #tpu.dot_dimension_numbers<[1], [0], [0], [1], [0, 0, 1, 1], [], []>} : vector<16x128xbf16>, vector<128x128xbf16>, vector<16x128xf32> -> vector<16x128xf32>
    %103 = arith.addf %98, %102 : vector<16x128xf32>
    %104 = vector.extract_strided_slice %92 {offsets = [2, 0], sizes = [16, 128], strides = [1, 1]} : vector<18x128xbf16> to vector<16x128xbf16>
    %c2_95 = arith.constant 2 : index
    %c0_96 = arith.constant 0 : index
    %c0_97 = arith.constant 0 : index
    %105 = vector.load %arg7[%c2_95, %c0_96, %c0_97] : memref<18x128x128xbf16, #tpu.memory_space<vmem>>, vector<1x128x128xbf16>
    %106 = vector.shape_cast %105 : vector<1x128x128xbf16> to vector<128x128xbf16>
    %cst_98 = arith.constant dense<0.000000e+00> : vector<16x128xf32>
    %107 = tpu.matmul %104, %106, %cst_98 {dimension_numbers = #tpu.dot_dimension_numbers<[1], [0], [0], [1], [0, 0, 1, 1], [], []>} : vector<16x128xbf16>, vector<128x128xbf16>, vector<16x128xf32> -> vector<16x128xf32>
    %108 = arith.addf %103, %107 : vector<16x128xf32>
    %c1_99 = arith.constant 1 : index
    %c0_100 = arith.constant 0 : index
    %c0_101 = arith.constant 0 : index
    %109 = vector.load %arg8[%c1_99, %c0_100, %c0_101] : memref<7x1x128xf32, #tpu.memory_space<vmem>>, vector<1x1x128xf32>
    %110 = vector.shape_cast %109 : vector<1x1x128xf32> to vector<1x128xf32>
    %111 = vector.broadcast %110 : vector<1x128xf32> to vector<16x128xf32>
    %112 = arith.addf %108, %111 : vector<16x128xf32>
    %cst_102 = arith.constant 0.000000e+00 : f32
    %113 = vector.broadcast %cst_102 : f32 to vector<16x128xf32>
    %114 = arith.cmpf oge, %112, %113 : vector<16x128xf32>
    %cst_103 = arith.constant 0.00999999977 : f32
    %115 = vector.broadcast %cst_103 : f32 to vector<16x128xf32>
    %116 = arith.mulf %115, %112 : vector<16x128xf32>
    %117 = arith.select %114, %112, %116 : vector<16x128xi1>, vector<16x128xf32>
    %c1_104 = arith.constant 1 : index
    %c0_105 = arith.constant 0 : index
    %118 = vector.load %arg13[%c1_104, %c0_105] : memref<18x128xf32, #tpu.memory_space<vmem>>, vector<16x128xf32>
    tpu.vector_store %arg13[%c1_104, %c0_105], %117 {strides = array<i32>} : memref<18x128xf32, #tpu.memory_space<vmem>>, vector<16x128xf32>,
    %c0_106 = arith.constant 0 : index
    %c0_107 = arith.constant 0 : index
    %119 = vector.load %arg13[%c0_106, %c0_107] : memref<18x128xf32, #tpu.memory_space<vmem>>, vector<18x128xf32>
    %120 = arith.truncf %119 : vector<18x128xf32> to vector<18x128xbf16>
    %cst_108 = arith.constant 0.000000e+00 : f32
    %121 = vector.broadcast %cst_108 : f32 to vector<16x128xf32>
    %122 = vector.extract_strided_slice %120 {offsets = [0, 0], sizes = [16, 128], strides = [1, 1]} : vector<18x128xbf16> to vector<16x128xbf16>
    %c3_109 = arith.constant 3 : index
    %c0_110 = arith.constant 0 : index
    %c0_111 = arith.constant 0 : index
    %123 = vector.load %arg7[%c3_109, %c0_110, %c0_111] : memref<18x128x128xbf16, #tpu.memory_space<vmem>>, vector<1x128x128xbf16>
    %124 = vector.shape_cast %123 : vector<1x128x128xbf16> to vector<128x128xbf16>
    %cst_112 = arith.constant dense<0.000000e+00> : vector<16x128xf32>
    %125 = tpu.matmul %122, %124, %cst_112 {dimension_numbers = #tpu.dot_dimension_numbers<[1], [0], [0], [1], [0, 0, 1, 1], [], []>} : vector<16x128xbf16>, vector<128x128xbf16>, vector<16x128xf32> -> vector<16x128xf32>
    %126 = arith.addf %121, %125 : vector<16x128xf32>
    %127 = vector.extract_strided_slice %120 {offsets = [1, 0], sizes = [16, 128], strides = [1, 1]} : vector<18x128xbf16> to vector<16x128xbf16>
    %c4_113 = arith.constant 4 : index
    %c0_114 = arith.constant 0 : index
    %c0_115 = arith.constant 0 : index
    %128 = vector.load %arg7[%c4_113, %c0_114, %c0_115] : memref<18x128x128xbf16, #tpu.memory_space<vmem>>, vector<1x128x128xbf16>
    %129 = vector.shape_cast %128 : vector<1x128x128xbf16> to vector<128x128xbf16>
    %cst_116 = arith.constant dense<0.000000e+00> : vector<16x128xf32>
    %130 = tpu.matmul %127, %129, %cst_116 {dimension_numbers = #tpu.dot_dimension_numbers<[1], [0], [0], [1], [0, 0, 1, 1], [], []>} : vector<16x128xbf16>, vector<128x128xbf16>, vector<16x128xf32> -> vector<16x128xf32>
    %131 = arith.addf %126, %130 : vector<16x128xf32>
    %132 = vector.extract_strided_slice %120 {offsets = [2, 0], sizes = [16, 128], strides = [1, 1]} : vector<18x128xbf16> to vector<16x128xbf16>
    %c5 = arith.constant 5 : index
    %c0_117 = arith.constant 0 : index
    %c0_118 = arith.constant 0 : index
    %133 = vector.load %arg7[%c5, %c0_117, %c0_118] : memref<18x128x128xbf16, #tpu.memory_space<vmem>>, vector<1x128x128xbf16>
    %134 = vector.shape_cast %133 : vector<1x128x128xbf16> to vector<128x128xbf16>
    %cst_119 = arith.constant dense<0.000000e+00> : vector<16x128xf32>
    %135 = tpu.matmul %132, %134, %cst_119 {dimension_numbers = #tpu.dot_dimension_numbers<[1], [0], [0], [1], [0, 0, 1, 1], [], []>} : vector<16x128xbf16>, vector<128x128xbf16>, vector<16x128xf32> -> vector<16x128xf32>
    %136 = arith.addf %131, %135 : vector<16x128xf32>
    %c2_120 = arith.constant 2 : index
    %c0_121 = arith.constant 0 : index
    %c0_122 = arith.constant 0 : index
    %137 = vector.load %arg8[%c2_120, %c0_121, %c0_122] : memref<7x1x128xf32, #tpu.memory_space<vmem>>, vector<1x1x128xf32>
    %138 = vector.shape_cast %137 : vector<1x1x128xf32> to vector<1x128xf32>
    %139 = vector.broadcast %138 : vector<1x128xf32> to vector<16x128xf32>
    %140 = arith.addf %136, %139 : vector<16x128xf32>
    %cst_123 = arith.constant 0.000000e+00 : f32
    %141 = vector.broadcast %cst_123 : f32 to vector<16x128xf32>
    %142 = arith.maximumf %140, %141 : vector<16x128xf32>
    %c1_124 = arith.constant 1 : index
    %c0_125 = arith.constant 0 : index
    %143 = vector.load %arg12[%c1_124, %c0_125] : memref<18x128xf32, #tpu.memory_space<vmem>>, vector<16x128xf32>
    tpu.vector_store %arg12[%c1_124, %c0_125], %142 {strides = array<i32>} : memref<18x128xf32, #tpu.memory_space<vmem>>, vector<16x128xf32>,
    %c0_126 = arith.constant 0 : index
    %c0_127 = arith.constant 0 : index
    %144 = vector.load %arg12[%c0_126, %c0_127] : memref<18x128xf32, #tpu.memory_space<vmem>>, vector<18x128xf32>
    %145 = arith.truncf %144 : vector<18x128xf32> to vector<18x128xbf16>
    %cst_128 = arith.constant 0.000000e+00 : f32
    %146 = vector.broadcast %cst_128 : f32 to vector<16x128xf32>
    %147 = vector.extract_strided_slice %145 {offsets = [0, 0], sizes = [16, 128], strides = [1, 1]} : vector<18x128xbf16> to vector<16x128xbf16>
    %c6 = arith.constant 6 : index
    %c0_129 = arith.constant 0 : index
    %c0_130 = arith.constant 0 : index
    %148 = vector.load %arg7[%c6, %c0_129, %c0_130] : memref<18x128x128xbf16, #tpu.memory_space<vmem>>, vector<1x128x128xbf16>
    %149 = vector.shape_cast %148 : vector<1x128x128xbf16> to vector<128x128xbf16>
    %cst_131 = arith.constant dense<0.000000e+00> : vector<16x128xf32>
    %150 = tpu.matmul %147, %149, %cst_131 {dimension_numbers = #tpu.dot_dimension_numbers<[1], [0], [0], [1], [0, 0, 1, 1], [], []>} : vector<16x128xbf16>, vector<128x128xbf16>, vector<16x128xf32> -> vector<16x128xf32>
    %151 = arith.addf %146, %150 : vector<16x128xf32>
    %152 = vector.extract_strided_slice %145 {offsets = [1, 0], sizes = [16, 128], strides = [1, 1]} : vector<18x128xbf16> to vector<16x128xbf16>
    %c7 = arith.constant 7 : index
    %c0_132 = arith.constant 0 : index
    %c0_133 = arith.constant 0 : index
    %153 = vector.load %arg7[%c7, %c0_132, %c0_133] : memref<18x128x128xbf16, #tpu.memory_space<vmem>>, vector<1x128x128xbf16>
    %154 = vector.shape_cast %153 : vector<1x128x128xbf16> to vector<128x128xbf16>
    %cst_134 = arith.constant dense<0.000000e+00> : vector<16x128xf32>
    %155 = tpu.matmul %152, %154, %cst_134 {dimension_numbers = #tpu.dot_dimension_numbers<[1], [0], [0], [1], [0, 0, 1, 1], [], []>} : vector<16x128xbf16>, vector<128x128xbf16>, vector<16x128xf32> -> vector<16x128xf32>
    %156 = arith.addf %151, %155 : vector<16x128xf32>
    %157 = vector.extract_strided_slice %145 {offsets = [2, 0], sizes = [16, 128], strides = [1, 1]} : vector<18x128xbf16> to vector<16x128xbf16>
    %c8 = arith.constant 8 : index
    %c0_135 = arith.constant 0 : index
    %c0_136 = arith.constant 0 : index
    %158 = vector.load %arg7[%c8, %c0_135, %c0_136] : memref<18x128x128xbf16, #tpu.memory_space<vmem>>, vector<1x128x128xbf16>
    %159 = vector.shape_cast %158 : vector<1x128x128xbf16> to vector<128x128xbf16>
    %cst_137 = arith.constant dense<0.000000e+00> : vector<16x128xf32>
    %160 = tpu.matmul %157, %159, %cst_137 {dimension_numbers = #tpu.dot_dimension_numbers<[1], [0], [0], [1], [0, 0, 1, 1], [], []>} : vector<16x128xbf16>, vector<128x128xbf16>, vector<16x128xf32> -> vector<16x128xf32>
    %161 = arith.addf %156, %160 : vector<16x128xf32>
    %c3_138 = arith.constant 3 : index
    %c0_139 = arith.constant 0 : index
    %c0_140 = arith.constant 0 : index
    %162 = vector.load %arg8[%c3_138, %c0_139, %c0_140] : memref<7x1x128xf32, #tpu.memory_space<vmem>>, vector<1x1x128xf32>
    %163 = vector.shape_cast %162 : vector<1x1x128xf32> to vector<1x128xf32>
    %164 = vector.broadcast %163 : vector<1x128xf32> to vector<16x128xf32>
    %165 = arith.addf %161, %164 : vector<16x128xf32>
    %166 = arith.addf %165, %117 : vector<16x128xf32>
    %c1_141 = arith.constant 1 : index
    %c0_142 = arith.constant 0 : index
    %167 = vector.load %arg13[%c1_141, %c0_142] : memref<18x128xf32, #tpu.memory_space<vmem>>, vector<16x128xf32>
    tpu.vector_store %arg13[%c1_141, %c0_142], %166 {strides = array<i32>} : memref<18x128xf32, #tpu.memory_space<vmem>>, vector<16x128xf32>,
    %c0_143 = arith.constant 0 : index
    %c0_144 = arith.constant 0 : index
    %168 = vector.load %arg13[%c0_143, %c0_144] : memref<18x128xf32, #tpu.memory_space<vmem>>, vector<18x128xf32>
    %169 = arith.truncf %168 : vector<18x128xf32> to vector<18x128xbf16>
    %cst_145 = arith.constant 0.000000e+00 : f32
    %170 = vector.broadcast %cst_145 : f32 to vector<16x128xf32>
    %171 = vector.extract_strided_slice %169 {offsets = [0, 0], sizes = [16, 128], strides = [1, 1]} : vector<18x128xbf16> to vector<16x128xbf16>
    %c9 = arith.constant 9 : index
    %c0_146 = arith.constant 0 : index
    %c0_147 = arith.constant 0 : index
    %172 = vector.load %arg7[%c9, %c0_146, %c0_147] : memref<18x128x128xbf16, #tpu.memory_space<vmem>>, vector<1x128x128xbf16>
    %173 = vector.shape_cast %172 : vector<1x128x128xbf16> to vector<128x128xbf16>
    %cst_148 = arith.constant dense<0.000000e+00> : vector<16x128xf32>
    %174 = tpu.matmul %171, %173, %cst_148 {dimension_numbers = #tpu.dot_dimension_numbers<[1], [0], [0], [1], [0, 0, 1, 1], [], []>} : vector<16x128xbf16>, vector<128x128xbf16>, vector<16x128xf32> -> vector<16x128xf32>
    %175 = arith.addf %170, %174 : vector<16x128xf32>
    %176 = vector.extract_strided_slice %169 {offsets = [1, 0], sizes = [16, 128], strides = [1, 1]} : vector<18x128xbf16> to vector<16x128xbf16>
    %c10 = arith.constant 10 : index
    %c0_149 = arith.constant 0 : index
    %c0_150 = arith.constant 0 : index
    %177 = vector.load %arg7[%c10, %c0_149, %c0_150] : memref<18x128x128xbf16, #tpu.memory_space<vmem>>, vector<1x128x128xbf16>
    %178 = vector.shape_cast %177 : vector<1x128x128xbf16> to vector<128x128xbf16>
    %cst_151 = arith.constant dense<0.000000e+00> : vector<16x128xf32>
    %179 = tpu.matmul %176, %178, %cst_151 {dimension_numbers = #tpu.dot_dimension_numbers<[1], [0], [0], [1], [0, 0, 1, 1], [], []>} : vector<16x128xbf16>, vector<128x128xbf16>, vector<16x128xf32> -> vector<16x128xf32>
    %180 = arith.addf %175, %179 : vector<16x128xf32>
    %181 = vector.extract_strided_slice %169 {offsets = [2, 0], sizes = [16, 128], strides = [1, 1]} : vector<18x128xbf16> to vector<16x128xbf16>
    %c11 = arith.constant 11 : index
    %c0_152 = arith.constant 0 : index
    %c0_153 = arith.constant 0 : index
    %182 = vector.load %arg7[%c11, %c0_152, %c0_153] : memref<18x128x128xbf16, #tpu.memory_space<vmem>>, vector<1x128x128xbf16>
    %183 = vector.shape_cast %182 : vector<1x128x128xbf16> to vector<128x128xbf16>
    %cst_154 = arith.constant dense<0.000000e+00> : vector<16x128xf32>
    %184 = tpu.matmul %181, %183, %cst_154 {dimension_numbers = #tpu.dot_dimension_numbers<[1], [0], [0], [1], [0, 0, 1, 1], [], []>} : vector<16x128xbf16>, vector<128x128xbf16>, vector<16x128xf32> -> vector<16x128xf32>
    %185 = arith.addf %180, %184 : vector<16x128xf32>
    %c4_155 = arith.constant 4 : index
    %c0_156 = arith.constant 0 : index
    %c0_157 = arith.constant 0 : index
    %186 = vector.load %arg8[%c4_155, %c0_156, %c0_157] : memref<7x1x128xf32, #tpu.memory_space<vmem>>, vector<1x1x128xf32>
    %187 = vector.shape_cast %186 : vector<1x1x128xf32> to vector<1x128xf32>
    %188 = vector.broadcast %187 : vector<1x128xf32> to vector<16x128xf32>
    %189 = arith.addf %185, %188 : vector<16x128xf32>
    %cst_158 = arith.constant 0.000000e+00 : f32
    %190 = vector.broadcast %cst_158 : f32 to vector<16x128xf32>
    %191 = arith.maximumf %189, %190 : vector<16x128xf32>
    %c1_159 = arith.constant 1 : index
    %c0_160 = arith.constant 0 : index
    %192 = vector.load %arg12[%c1_159, %c0_160] : memref<18x128xf32, #tpu.memory_space<vmem>>, vector<16x128xf32>
    tpu.vector_store %arg12[%c1_159, %c0_160], %191 {strides = array<i32>} : memref<18x128xf32, #tpu.memory_space<vmem>>, vector<16x128xf32>,
    %c0_161 = arith.constant 0 : index
    %c0_162 = arith.constant 0 : index
    %193 = vector.load %arg12[%c0_161, %c0_162] : memref<18x128xf32, #tpu.memory_space<vmem>>, vector<18x128xf32>
    %194 = arith.truncf %193 : vector<18x128xf32> to vector<18x128xbf16>
    %cst_163 = arith.constant 0.000000e+00 : f32
    %195 = vector.broadcast %cst_163 : f32 to vector<16x128xf32>
    %196 = vector.extract_strided_slice %194 {offsets = [0, 0], sizes = [16, 128], strides = [1, 1]} : vector<18x128xbf16> to vector<16x128xbf16>
    %c12 = arith.constant 12 : index
    %c0_164 = arith.constant 0 : index
    %c0_165 = arith.constant 0 : index
    %197 = vector.load %arg7[%c12, %c0_164, %c0_165] : memref<18x128x128xbf16, #tpu.memory_space<vmem>>, vector<1x128x128xbf16>
    %198 = vector.shape_cast %197 : vector<1x128x128xbf16> to vector<128x128xbf16>
    %cst_166 = arith.constant dense<0.000000e+00> : vector<16x128xf32>
    %199 = tpu.matmul %196, %198, %cst_166 {dimension_numbers = #tpu.dot_dimension_numbers<[1], [0], [0], [1], [0, 0, 1, 1], [], []>} : vector<16x128xbf16>, vector<128x128xbf16>, vector<16x128xf32> -> vector<16x128xf32>
    %200 = arith.addf %195, %199 : vector<16x128xf32>
    %201 = vector.extract_strided_slice %194 {offsets = [1, 0], sizes = [16, 128], strides = [1, 1]} : vector<18x128xbf16> to vector<16x128xbf16>
    %c13 = arith.constant 13 : index
    %c0_167 = arith.constant 0 : index
    %c0_168 = arith.constant 0 : index
    %202 = vector.load %arg7[%c13, %c0_167, %c0_168] : memref<18x128x128xbf16, #tpu.memory_space<vmem>>, vector<1x128x128xbf16>
    %203 = vector.shape_cast %202 : vector<1x128x128xbf16> to vector<128x128xbf16>
    %cst_169 = arith.constant dense<0.000000e+00> : vector<16x128xf32>
    %204 = tpu.matmul %201, %203, %cst_169 {dimension_numbers = #tpu.dot_dimension_numbers<[1], [0], [0], [1], [0, 0, 1, 1], [], []>} : vector<16x128xbf16>, vector<128x128xbf16>, vector<16x128xf32> -> vector<16x128xf32>
    %205 = arith.addf %200, %204 : vector<16x128xf32>
    %206 = vector.extract_strided_slice %194 {offsets = [2, 0], sizes = [16, 128], strides = [1, 1]} : vector<18x128xbf16> to vector<16x128xbf16>
    %c14 = arith.constant 14 : index
    %c0_170 = arith.constant 0 : index
    %c0_171 = arith.constant 0 : index
    %207 = vector.load %arg7[%c14, %c0_170, %c0_171] : memref<18x128x128xbf16, #tpu.memory_space<vmem>>, vector<1x128x128xbf16>
    %208 = vector.shape_cast %207 : vector<1x128x128xbf16> to vector<128x128xbf16>
    %cst_172 = arith.constant dense<0.000000e+00> : vector<16x128xf32>
    %209 = tpu.matmul %206, %208, %cst_172 {dimension_numbers = #tpu.dot_dimension_numbers<[1], [0], [0], [1], [0, 0, 1, 1], [], []>} : vector<16x128xbf16>, vector<128x128xbf16>, vector<16x128xf32> -> vector<16x128xf32>
    %210 = arith.addf %205, %209 : vector<16x128xf32>
    %c5_173 = arith.constant 5 : index
    %c0_174 = arith.constant 0 : index
    %c0_175 = arith.constant 0 : index
    %211 = vector.load %arg8[%c5_173, %c0_174, %c0_175] : memref<7x1x128xf32, #tpu.memory_space<vmem>>, vector<1x1x128xf32>
    %212 = vector.shape_cast %211 : vector<1x1x128xf32> to vector<1x128xf32>
    %213 = vector.broadcast %212 : vector<1x128xf32> to vector<16x128xf32>
    %214 = arith.addf %210, %213 : vector<16x128xf32>
    %215 = arith.addf %214, %166 : vector<16x128xf32>
    %c1_176 = arith.constant 1 : index
    %c0_177 = arith.constant 0 : index
    %216 = vector.load %arg13[%c1_176, %c0_177] : memref<18x128xf32, #tpu.memory_space<vmem>>, vector<16x128xf32>
    tpu.vector_store %arg13[%c1_176, %c0_177], %215 {strides = array<i32>} : memref<18x128xf32, #tpu.memory_space<vmem>>, vector<16x128xf32>,
    %c0_178 = arith.constant 0 : index
    %c0_179 = arith.constant 0 : index
    %217 = vector.load %arg13[%c0_178, %c0_179] : memref<18x128xf32, #tpu.memory_space<vmem>>, vector<18x128xf32>
    %218 = arith.truncf %217 : vector<18x128xf32> to vector<18x128xbf16>
    %cst_180 = arith.constant 0.000000e+00 : f32
    %219 = vector.broadcast %cst_180 : f32 to vector<16x128xf32>
    %220 = vector.extract_strided_slice %218 {offsets = [0, 0], sizes = [16, 128], strides = [1, 1]} : vector<18x128xbf16> to vector<16x128xbf16>
    %c15 = arith.constant 15 : index
    %c0_181 = arith.constant 0 : index
    %c0_182 = arith.constant 0 : index
    %221 = vector.load %arg7[%c15, %c0_181, %c0_182] : memref<18x128x128xbf16, #tpu.memory_space<vmem>>, vector<1x128x128xbf16>
    %222 = vector.shape_cast %221 : vector<1x128x128xbf16> to vector<128x128xbf16>
    %cst_183 = arith.constant dense<0.000000e+00> : vector<16x128xf32>
    %223 = tpu.matmul %220, %222, %cst_183 {dimension_numbers = #tpu.dot_dimension_numbers<[1], [0], [0], [1], [0, 0, 1, 1], [], []>} : vector<16x128xbf16>, vector<128x128xbf16>, vector<16x128xf32> -> vector<16x128xf32>
    %224 = arith.addf %219, %223 : vector<16x128xf32>
    %225 = vector.extract_strided_slice %218 {offsets = [1, 0], sizes = [16, 128], strides = [1, 1]} : vector<18x128xbf16> to vector<16x128xbf16>
    %c16 = arith.constant 16 : index
    %c0_184 = arith.constant 0 : index
    %c0_185 = arith.constant 0 : index
    %226 = vector.load %arg7[%c16, %c0_184, %c0_185] : memref<18x128x128xbf16, #tpu.memory_space<vmem>>, vector<1x128x128xbf16>
    %227 = vector.shape_cast %226 : vector<1x128x128xbf16> to vector<128x128xbf16>
    %cst_186 = arith.constant dense<0.000000e+00> : vector<16x128xf32>
    %228 = tpu.matmul %225, %227, %cst_186 {dimension_numbers = #tpu.dot_dimension_numbers<[1], [0], [0], [1], [0, 0, 1, 1], [], []>} : vector<16x128xbf16>, vector<128x128xbf16>, vector<16x128xf32> -> vector<16x128xf32>
    %229 = arith.addf %224, %228 : vector<16x128xf32>
    %230 = vector.extract_strided_slice %218 {offsets = [2, 0], sizes = [16, 128], strides = [1, 1]} : vector<18x128xbf16> to vector<16x128xbf16>
    %c17_187 = arith.constant 17 : index
    %c0_188 = arith.constant 0 : index
    %c0_189 = arith.constant 0 : index
    %231 = vector.load %arg7[%c17_187, %c0_188, %c0_189] : memref<18x128x128xbf16, #tpu.memory_space<vmem>>, vector<1x128x128xbf16>
    %232 = vector.shape_cast %231 : vector<1x128x128xbf16> to vector<128x128xbf16>
    %cst_190 = arith.constant dense<0.000000e+00> : vector<16x128xf32>
    %233 = tpu.matmul %230, %232, %cst_190 {dimension_numbers = #tpu.dot_dimension_numbers<[1], [0], [0], [1], [0, 0, 1, 1], [], []>} : vector<16x128xbf16>, vector<128x128xbf16>, vector<16x128xf32> -> vector<16x128xf32>
    %234 = arith.addf %229, %233 : vector<16x128xf32>
    %c6_191 = arith.constant 6 : index
    %c0_192 = arith.constant 0 : index
    %c0_193 = arith.constant 0 : index
    %235 = vector.load %arg8[%c6_191, %c0_192, %c0_193] : memref<7x1x128xf32, #tpu.memory_space<vmem>>, vector<1x1x128xf32>
    %236 = vector.shape_cast %235 : vector<1x1x128xf32> to vector<1x128xf32>
    %237 = vector.broadcast %236 : vector<1x128xf32> to vector<16x128xf32>
    %238 = arith.addf %234, %237 : vector<16x128xf32>
    %cst_194 = arith.constant 0.000000e+00 : f32
    %239 = vector.broadcast %cst_194 : f32 to vector<16x128xf32>
    %240 = arith.cmpf oge, %238, %239 : vector<16x128xf32>
    %cst_195 = arith.constant 0.00999999977 : f32
    %241 = vector.broadcast %cst_195 : f32 to vector<16x128xf32>
    %242 = arith.mulf %241, %238 : vector<16x128xf32>
    %243 = arith.select %240, %238, %242 : vector<16x128xi1>, vector<16x128xf32>
    %c0_196 = arith.constant 0 : index
    %c0_197 = arith.constant 0 : index
    %c0_198 = arith.constant 0 : index
    %244 = vector.load %arg9[%c0_196, %c0_197, %c0_198] : memref<1x16x128xf32, #tpu.memory_space<vmem>>, vector<1x16x128xf32>
    %245 = vector.shape_cast %244 : vector<1x16x128xf32> to vector<16x128xf32>
    %246 = vector.shape_cast %243 : vector<16x128xf32> to vector<1x16x128xf32>
    tpu.vector_store %arg9[%c0_196, %c0_197, %c0_198], %246 {strides = array<i32>} : memref<1x16x128xf32, #tpu.memory_space<vmem>>, vector<1x16x128xf32>,
    return
  }
  func.func @transform_0(%arg0: i32) -> (i32, i32, i32) {
    %c0_i32 = arith.constant 0 : i32
    %c0_i32_0 = arith.constant 0 : i32
    %c0_i32_1 = arith.constant 0 : i32
    return %arg0, %c0_i32, %c0_i32_0 : i32, i32, i32
  }
  func.func @transform_1(%arg0: i32) -> (i32, i32, i32) {
    %c0_i32 = arith.constant 0 : i32
    %c0_i32_0 = arith.constant 0 : i32
    %c0_i32_1 = arith.constant 0 : i32
    return %arg0, %c0_i32, %c0_i32_0 : i32, i32, i32
  }
  func.func @transform_2(%arg0: i32) -> (i32, i32) {
    %c0_i32 = arith.constant 0 : i32
    %c0_i32_0 = arith.constant 0 : i32
    %c0_i32_1 = arith.constant 0 : i32
    return %c0_i32, %c0_i32_0 : i32, i32
  }
  func.func @transform_3(%arg0: i32) -> (i32, i32) {
    %c0_i32 = arith.constant 0 : i32
    %c0_i32_0 = arith.constant 0 : i32
    %c0_i32_1 = arith.constant 0 : i32
    return %c0_i32, %c0_i32_0 : i32, i32
  }
  func.func @transform_4(%arg0: i32) -> (i32, i32, i32) {
    %c0_i32 = arith.constant 0 : i32
    %c0_i32_0 = arith.constant 0 : i32
    %c0_i32_1 = arith.constant 0 : i32
    %c0_i32_2 = arith.constant 0 : i32
    return %c0_i32, %c0_i32_0, %c0_i32_1 : i32, i32, i32
  }
  func.func @transform_5(%arg0: i32) -> (i32, i32, i32) {
    %c0_i32 = arith.constant 0 : i32
    %c0_i32_0 = arith.constant 0 : i32
    %c0_i32_1 = arith.constant 0 : i32
    %c0_i32_2 = arith.constant 0 : i32
    return %c0_i32, %c0_i32_0, %c0_i32_1 : i32, i32, i32
  }
  func.func @transform_6(%arg0: i32) -> (i32, i32, i32) {
    %c0_i32 = arith.constant 0 : i32
    %c0_i32_0 = arith.constant 0 : i32
    %c0_i32_1 = arith.constant 0 : i32
    %c0_i32_2 = arith.constant 0 : i32
    return %c0_i32, %c0_i32_0, %c0_i32_1 : i32, i32, i32
  }
  func.func @transform_7(%arg0: i32) -> (i32, i32, i32) {
    %c0_i32 = arith.constant 0 : i32
    %c0_i32_0 = arith.constant 0 : i32
    %c0_i32_1 = arith.constant 0 : i32
    %c0_i32_2 = arith.constant 0 : i32
    return %c0_i32, %c0_i32_0, %c0_i32_1 : i32, i32, i32
  }
  func.func @transform_8(%arg0: i32) -> (i32, i32, i32) {
    %c0_i32 = arith.constant 0 : i32
    %c0_i32_0 = arith.constant 0 : i32
    %c0_i32_1 = arith.constant 0 : i32
    return %arg0, %c0_i32, %c0_i32_0 : i32, i32, i32
  }
}

</mosaic_0001>

<llo_original>
// kernel: decoder_layer_forward.1
$region0: #{decoder_layer_forward.1}
  #allocation0 [shape = 'u32[]', space=smem, size = 0x4, offset = 0x4, fixed_abs, tag = 'smem constant byte address 0x4 - core index']
  #allocation1 [shape = 'u32[72,128]{1,0:T(1,128)}', space=vmem, size = 0x9000, scoped, tag = 'internal scratch']
  #allocation2 [shape = 'f32[20,128]{1,0:T(8,128)}', space=vmem, size = 0x3000, scoped, tag = 'scratch operand']
  #allocation3 [shape = 'f32[20,64]{1,0:T(8,128)}', space=vmem, size = 0x3000, scoped, tag = 'scratch operand']
  #allocation4 [shape = 'f32[18,128]{1,0:T(8,128)}', space=vmem, size = 0x3000, scoped, tag = 'scratch operand']
  #allocation5 [shape = 'f32[18,128]{1,0:T(8,128)}', space=vmem, size = 0x3000, scoped, tag = 'scratch operand']
  %s0 = inlined_call_operand.vmem [shape: f32[2,8,64], index: 0, kind: input, shape index: {}]
  %s1 = inlined_call_operand.vmem [shape: f32[2,16,64], index: 1, kind: input, shape index: {}]
  %s2 = inlined_call_operand.vmem [shape: f32[16,8], index: 2, kind: input, shape index: {}]
  %s3 = inlined_call_operand.vmem [shape: f32[64,128], index: 3, kind: input, shape index: {}]
  %s4 = inlined_call_operand.vmem [shape: bf16[5,128,128], index: 4, kind: input, shape index: {}]
  %s5 = inlined_call_operand.vmem [shape: bf16[5,64,128], index: 5, kind: input, shape index: {}]
  %s6 = inlined_call_operand.hbm [shape: bf16[18,128,128], index: 6, kind: input, shape index: {}]
  %s7 = inlined_call_operand.vmem [shape: f32[7,1,128], index: 7, kind: input, shape index: {}]
  %s8 = inlined_call_operand.vmem [shape: f32[2,16,128], index: 8, kind: output, shape index: {}]
  %s9 = sld [smem:[#allocation0]]
  $region69: #{decoder_layer_forward.1} parent=0
    _
  %s11 = ssub.s32 1, %s9
  %s12 = scalar_select 0, %s11, %s9
  $region1: #{decoder_layer_forward.1} parent=0
    #allocation6 [shape = 'u8[589824]{0}', space=vmem, size = 0x90000, scoped, tag = 'input window, operand 6, single buffered']
    #allocation7 [shape = 's32[2]{0}', space=sflag, size = 0x8, scoped, tag = 'scoped memory for decoder_layer_forward.1']
    %13 = vsyncpa [#allocation7], 0
    loop: start=0, step=1, limit=4
    $region2: #{decoder_layer_forward.1} parent=1 // loop_pre_header
      _
    $region3: #{decoder_layer_forward.1} parent=1 // loop_header
      %s15 = sphi 0, %s19
      %p16 = scmp.ge.s32.totalorder %s15, 4
      %s25 = sphi 0, %s27
      %s28 = sphi 0, %s25
      %s29 = sphi 0, %s28
      %s45 = sphi 0, %s29
      %s51 = sphi 0, %s53
      %s54 = sphi 0, %s51
      %s55 = sphi 0, %s54
      %s71 = sphi 0, %s55
      %s75 = sphi 0, %s75
      %s77 = sphi 0, %s75
      %s78 = sphi 0, %s77
      %s92 = sphi 0, %s78
      %s96 = sphi 0, %s96
      %s98 = sphi 0, %s96
      %s99 = sphi 0, %s98
      %s113 = sphi 0, %s99
      %s117 = sphi 0, %s117
      %s119 = sphi 0, %s117
      %s120 = sphi 0, %s119
      %s134 = sphi 0, %s120
      %s138 = sphi 0, %s138
      %s140 = sphi 0, %s138
      %s141 = sphi 0, %s140
      %s155 = sphi 0, %s141
      %s159 = sphi 0, %s159
      %s161 = sphi 0, %s159
      %s162 = sphi 0, %s161
      %s176 = sphi 0, %s162
      %s180 = sphi 0, %s180
      %s182 = sphi 0, %s180
      %s183 = sphi 0, %s182
      %s197 = sphi 0, %s183
      %s203 = sphi 0, %s205
      %s206 = sphi 0, %s203
      %s207 = sphi 0, %s206
      %s223 = sphi 0, %s207
    $region4: #{decoder_layer_forward.1} parent=1 // loop_header_branch
      %18 = sbr.rel (%p16) target = $region8
    $region5: #{decoder_layer_forward.1} parent=1 // loop_body
      %s20 = ssub.s32 %s15, 1
      %s21 = ssub.s32 %s15, 2
      %s22 = sadd.s32 %s15, 1
      %s23 = ssub.s32 %s15, %s22
      %p24 = scmp.eq.s32.totalorder %s23, 0
      %s26 = sadd.s32 %s25, 1
      %s27 = scalar_select %p24, %s25, %s26
      %p30 = pneg %p24
      %p31 = scmp.eq.s32.totalorder %s15, 1
      %p32 = por %p30, %p31
      %p33 = scmp.ne.s32.totalorder %s25, %s28
      %p34 = scmp.eq.s32.totalorder %s15, 0
      %p35 = por %p33, %p34
      %p36 = scmp.ne.s32.totalorder %s25, %s28
      %p37 = scmp.eq.s32.totalorder %s20, 1
      %p38 = por %p36, %p37
      %p39 = scmp.ne.s32.totalorder %s28, %s29
      %p40 = scmp.eq.s32.totalorder %s20, 0
      %p41 = por %p39, %p40
      %p42 = scmp.ne.s32.totalorder %s28, %s29
      %p43 = scmp.eq.s32.totalorder %s21, 1
      %p44 = por %p42, %p43
      %p46 = scmp.ne.s32.totalorder %s29, %s45
      %p47 = scmp.eq.s32.totalorder %s21, 0
      %p48 = por %p46, %p47
      %s49 = ssub.s32 %s15, %s22
      %p50 = scmp.eq.s32.totalorder %s49, 0
      %s52 = sadd.s32 %s51, 1
      %s53 = scalar_select %p50, %s51, %s52
      %p56 = pneg %p50
      %p57 = scmp.eq.s32.totalorder %s15, 1
      %p58 = por %p56, %p57
      %p59 = scmp.ne.s32.totalorder %s51, %s54
      %p60 = scmp.eq.s32.totalorder %s15, 0
      %p61 = por %p59, %p60
      %p62 = scmp.ne.s32.totalorder %s51, %s54
      %p63 = scmp.eq.s32.totalorder %s20, 1
      %p64 = por %p62, %p63
      %p65 = scmp.ne.s32.totalorder %s54, %s55
      %p66 = scmp.eq.s32.totalorder %s20, 0
      %p67 = por %p65, %p66
      %p68 = scmp.ne.s32.totalorder %s54, %s55
      %p69 = scmp.eq.s32.totalorder %s21, 1
      %p70 = por %p68, %p69
      %p72 = scmp.ne.s32.totalorder %s55, %s71
      %p73 = scmp.eq.s32.totalorder %s21, 0
      %p74 = por %p72, %p73
      %s76 = sadd.s32 %s75, 1
      %p79 = scmp.eq.s32.totalorder %s15, 1
      %p80 = scmp.ne.s32.totalorder %s75, %s77
      %p81 = scmp.eq.s32.totalorder %s15, 0
      %p82 = por %p80, %p81
      %p83 = scmp.ne.s32.totalorder %s75, %s77
      %p84 = scmp.eq.s32.totalorder %s20, 1
      %p85 = por %p83, %p84
      %p86 = scmp.ne.s32.totalorder %s77, %s78
      %p87 = scmp.eq.s32.totalorder %s20, 0
      %p88 = por %p86, %p87
      %p89 = scmp.ne.s32.totalorder %s77, %s78
      %p90 = scmp.eq.s32.totalorder %s21, 1
      %p91 = por %p89, %p90
      %p93 = scmp.ne.s32.totalorder %s78, %s92
      %p94 = scmp.eq.s32.totalorder %s21, 0
      %p95 = por %p93, %p94
      %s97 = sadd.s32 %s96, 1
      %p100 = scmp.eq.s32.totalorder %s15, 1
      %p101 = scmp.ne.s32.totalorder %s96, %s98
      %p102 = scmp.eq.s32.totalorder %s15, 0
      %p103 = por %p101, %p102
      %p104 = scmp.ne.s32.totalorder %s96, %s98
      %p105 = scmp.eq.s32.totalorder %s20, 1
      %p106 = por %p104, %p105
      %p107 = scmp.ne.s32.totalorder %s98, %s99
      %p108 = scmp.eq.s32.totalorder %s20, 0
      %p109 = por %p107, %p108
      %p110 = scmp.ne.s32.totalorder %s98, %s99
      %p111 = scmp.eq.s32.totalorder %s21, 1
      %p112 = por %p110, %p111
      %p114 = scmp.ne.s32.totalorder %s99, %s113
      %p115 = scmp.eq.s32.totalorder %s21, 0
      %p116 = por %p114, %p115
      %s118 = sadd.s32 %s117, 1
      %p121 = scmp.eq.s32.totalorder %s15, 1
      %p122 = scmp.ne.s32.totalorder %s117, %s119
      %p123 = scmp.eq.s32.totalorder %s15, 0
      %p124 = por %p122, %p123
      %p125 = scmp.ne.s32.totalorder %s117, %s119
      %p126 = scmp.eq.s32.totalorder %s20, 1
      %p127 = por %p125, %p126
      %p128 = scmp.ne.s32.totalorder %s119, %s120
      %p129 = scmp.eq.s32.totalorder %s20, 0
      %p130 = por %p128, %p129
      %p131 = scmp.ne.s32.totalorder %s119, %s120
      %p132 = scmp.eq.s32.totalorder %s21, 1
      %p133 = por %p131, %p132
      %p135 = scmp.ne.s32.totalorder %s120, %s134
      %p136 = scmp.eq.s32.totalorder %s21, 0
      %p137 = por %p135, %p136
      %s139 = sadd.s32 %s138, 1
      %p142 = scmp.eq.s32.totalorder %s15, 1
      %p143 = scmp.ne.s32.totalorder %s138, %s140
      %p144 = scmp.eq.s32.totalorder %s15, 0
      %p145 = por %p143, %p144
      %p146 = scmp.ne.s32.totalorder %s138, %s140
      %p147 = scmp.eq.s32.totalorder %s20, 1
      %p148 = por %p146, %p147
      %p149 = scmp.ne.s32.totalorder %s140, %s141
      %p150 = scmp.eq.s32.totalorder %s20, 0
      %p151 = por %p149, %p150
      %p152 = scmp.ne.s32.totalorder %s140, %s141
      %p153 = scmp.eq.s32.totalorder %s21, 1
      %p154 = por %p152, %p153
      %p156 = scmp.ne.s32.totalorder %s141, %s155
      %p157 = scmp.eq.s32.totalorder %s21, 0
      %p158 = por %p156, %p157
      %s160 = sadd.s32 %s159, 1
      %p163 = scmp.eq.s32.totalorder %s15, 1
      %p164 = scmp.ne.s32.totalorder %s159, %s161
      %p165 = scmp.eq.s32.totalorder %s15, 0
      %p166 = por %p164, %p165
      %p167 = scmp.ne.s32.totalorder %s159, %s161
      %p168 = scmp.eq.s32.totalorder %s20, 1
      %p169 = por %p167, %p168
      %p170 = scmp.ne.s32.totalorder %s161, %s162
      %p171 = scmp.eq.s32.totalorder %s20, 0
      %p172 = por %p170, %p171
      %p173 = scmp.ne.s32.totalorder %s161, %s162
      %p174 = scmp.eq.s32.totalorder %s21, 1
      %p175 = por %p173, %p174
      %p177 = scmp.ne.s32.totalorder %s162, %s176
      %p178 = scmp.eq.s32.totalorder %s21, 0
      %p179 = por %p177, %p178
      %s181 = sadd.s32 %s180, 1
      %p184 = scmp.eq.s32.totalorder %s15, 1
      %p185 = scmp.ne.s32.totalorder %s180, %s182
      %p186 = scmp.eq.s32.totalorder %s15, 0
      %p187 = por %p185, %p186
      %p188 = scmp.ne.s32.totalorder %s180, %s182
      %p189 = scmp.eq.s32.totalorder %s20, 1
      %p190 = por %p188, %p189
      %p191 = scmp.ne.s32.totalorder %s182, %s183
      %p192 = scmp.eq.s32.totalorder %s20, 0
      %p193 = por %p191, %p192
      %p194 = scmp.ne.s32.totalorder %s182, %s183
      %p195 = scmp.eq.s32.totalorder %s21, 1
      %p196 = por %p194, %p195
      %p198 = scmp.ne.s32.totalorder %s183, %s197
      %p199 = scmp.eq.s32.totalorder %s21, 0
      %p200 = por %p198, %p199
      %s201 = ssub.s32 %s15, %s22
      %p202 = scmp.eq.s32.totalorder %s201, 0
      %s204 = sadd.s32 %s203, 1
      %s205 = scalar_select %p202, %s203, %s204
      %p208 = pneg %p202
      %p209 = scmp.eq.s32.totalorder %s15, 1
      %p210 = por %p208, %p209
      %p211 = scmp.ne.s32.totalorder %s203, %s206
      %p212 = scmp.eq.s32.totalorder %s15, 0
      %p213 = por %p211, %p212
      %p214 = scmp.ne.s32.totalorder %s203, %s206
      %p215 = scmp.eq.s32.totalorder %s20, 1
      %p216 = por %p214, %p215
      %p217 = scmp.ne.s32.totalorder %s206, %s207
      %p218 = scmp.eq.s32.totalorder %s20, 0
      %p219 = por %p217, %p218
      %p220 = scmp.ne.s32.totalorder %s206, %s207
      %p221 = scmp.eq.s32.totalorder %s21, 1
      %p222 = por %p220, %p221
      %p224 = scmp.ne.s32.totalorder %s207, %s223
      %p225 = scmp.eq.s32.totalorder %s21, 0
      %p226 = por %p224, %p225
      %p227 = scmp.le.s32.totalorder 1, %s15
      %p228 = scmp.lt.s32.totalorder %s15, 3
      %p229 = pnand %p227, %p228
      %p230 = pneg %p229
      // Predicated region
      $region9: #{decoder_layer_forward.1} parent=5 // pred_check
        _
      $region10: #{decoder_layer_forward.1} parent=5 // pred_check_branch
        %232 = sbr.rel (%p229) target = $region12
      $region11: #{decoder_layer_forward.1} parent=5 // pred_region
        %s233 = ssub.s32 %s15, 1
        // Predicated region
        $region13: #{decoder_layer_forward.1} parent=11 // pred_check
          %p234 = pneg %p88
        $region14: #{decoder_layer_forward.1} parent=11 // pred_check_branch
          %236 = sbr.rel (%p234) target = $region16
        $region15: #{decoder_layer_forward.1} parent=11 // pred_region
          _
        $region16: #{decoder_layer_forward.1} parent=11 // pred_fallthru
          _
        // Predicated region
        $region17: #{decoder_layer_forward.1} parent=11 // pred_check
          %p237 = pneg %p109
        $region18: #{decoder_layer_forward.1} parent=11 // pred_check_branch
          %239 = sbr.rel (%p237) target = $region20
        $region19: #{decoder_layer_forward.1} parent=11 // pred_region
          _
        $region20: #{decoder_layer_forward.1} parent=11 // pred_fallthru
          _
        // Predicated region
        $region21: #{decoder_layer_forward.1} parent=11 // pred_check
          %p240 = pneg %p130
        $region22: #{decoder_layer_forward.1} parent=11 // pred_check_branch
          %242 = sbr.rel (%p240) target = $region24
        $region23: #{decoder_layer_forward.1} parent=11 // pred_region
          _
        $region24: #{decoder_layer_forward.1} parent=11 // pred_fallthru
          _
        // Predicated region
        $region25: #{decoder_layer_forward.1} parent=11 // pred_check
          %p243 = pneg %p151
        $region26: #{decoder_layer_forward.1} parent=11 // pred_check_branch
          %245 = sbr.rel (%p243) target = $region28
        $region27: #{decoder_layer_forward.1} parent=11 // pred_region
          _
        $region28: #{decoder_layer_forward.1} parent=11 // pred_fallthru
          _
        // Predicated region
        $region29: #{decoder_layer_forward.1} parent=11 // pred_check
          %p246 = pneg %p172
        $region30: #{decoder_layer_forward.1} parent=11 // pred_check_branch
          %248 = sbr.rel (%p246) target = $region32
        $region31: #{decoder_layer_forward.1} parent=11 // pred_region
          %250 = vsyncadd [#allocation7], 0
          %s251 = sshll.u32 %s6, 4
          %s252 = int_to_ptr.hbm [resolvable:$true] %s251
          %s253 = sshll.u32 [#allocation6], 4
          %s254 = int_to_ptr.vmem [resolvable:$true] %s253
          %259 = dma.hbm_to_vmem [thread:$0]  %s252, 18432, %s254, [#allocation7], 64, 64, 4
        $region32: #{decoder_layer_forward.1} parent=11 // pred_fallthru
          _
        // Predicated region
        $region33: #{decoder_layer_forward.1} parent=11 // pred_check
          %p260 = pneg %p193
        $region34: #{decoder_layer_forward.1} parent=11 // pred_check_branch
          %262 = sbr.rel (%p260) target = $region36
        $region35: #{decoder_layer_forward.1} parent=11 // pred_region
          _
        $region36: #{decoder_layer_forward.1} parent=11 // pred_fallthru
          _
      $region12: #{decoder_layer_forward.1} parent=5 // pred_fallthru
        _
      %p263 = scmp.lt.s32.totalorder %s15, 2
      // Predicated region
      $region37: #{decoder_layer_forward.1} parent=5 // pred_check
        %p264 = pneg %p263
      $region38: #{decoder_layer_forward.1} parent=5 // pred_check_branch
        %266 = sbr.rel (%p264) target = $region40
      $region39: #{decoder_layer_forward.1} parent=5 // pred_region
        // Predicated region
        $region41: #{decoder_layer_forward.1} parent=39 // pred_check
          %p267 = pneg %p35
        $region42: #{decoder_layer_forward.1} parent=39 // pred_check_branch
          %269 = sbr.rel (%p267) target = $region44
        $region43: #{decoder_layer_forward.1} parent=39 // pred_region
          %p270 = scmp.lt.s32.totalorder %s15, 1
          %s271 = scalar_select %p270, %s15, 1
          %s272 = smul.addr %s271, 8
          %s273 = scalar_lea.vmem %s0, %s272
        $region44: #{decoder_layer_forward.1} parent=39 // pred_fallthru
          _
        // Predicated region
        $region45: #{decoder_layer_forward.1} parent=39 // pred_check
          %p274 = pneg %p61
        $region46: #{decoder_layer_forward.1} parent=39 // pred_check_branch
          %276 = sbr.rel (%p274) target = $region48
        $region47: #{decoder_layer_forward.1} parent=39 // pred_region
          %p277 = scmp.lt.s32.totalorder %s15, 1
          %s278 = scalar_select %p277, %s15, 1
          %s279 = smul.addr %s278, 2
          %s280 = smul.addr %s279, 8
          %s281 = scalar_lea.vmem %s1, %s280
        $region48: #{decoder_layer_forward.1} parent=39 // pred_fallthru
          _
      $region40: #{decoder_layer_forward.1} parent=5 // pred_fallthru
        _
      %p282 = scmp.le.s32.totalorder 1, %s15
      %p283 = scmp.lt.s32.totalorder %s15, 3
      %p284 = pnand %p282, %p283
      %p285 = pneg %p284
      // Predicated region
      $region49: #{decoder_layer_forward.1} parent=5 // pred_check
        _
      $region50: #{decoder_layer_forward.1} parent=5 // pred_check_branch
        %287 = sbr.rel (%p284) target = $region52
      $region51: #{decoder_layer_forward.1} parent=5 // pred_region
        %s288 = ssub.s32 %s15, 1
        // Predicated region
        $region53: #{decoder_layer_forward.1} parent=51 // pred_check
          %p289 = pneg %p172
        $region54: #{decoder_layer_forward.1} parent=51 // pred_check_branch
          %291 = sbr.rel (%p289) target = $region56
        $region55: #{decoder_layer_forward.1} parent=51 // pred_region
          %293 = dma.done [#allocation7], 18432
        $region56: #{decoder_layer_forward.1} parent=51 // pred_fallthru
          _
        %p294 = scmp.lt.s32.totalorder %s20, 1
        %s295 = scalar_select %p294, %s20, 1
        %s296 = smul.addr %s295, 8
        %s297 = scalar_lea.vmem %s0, %s296
        %p298 = pneg %p41
        %p299 = pneg %p38
        %p300 = scmp.lt.s32.totalorder %s20, 1
        %s301 = scalar_select %p300, %s20, 1
        %s302 = smul.addr %s301, 2
        %s303 = smul.addr %s302, 8
        %s304 = scalar_lea.vmem %s1, %s303
        %p305 = pneg %p67
        %p306 = pneg %p64
        %p307 = pneg %p88
        %p308 = pneg %p85
        %p309 = pneg %p109
        %p310 = pneg %p106
        %p311 = pneg %p130
        %p312 = pneg %p127
        %p313 = pneg %p151
        %p314 = pneg %p148
        %p315 = pneg %p172
        %p316 = pneg %p169
        %p317 = pneg %p193
        %p318 = pneg %p190
        %p319 = pneg %p219
        %p320 = pneg %p216
        %p321 = scmp.lt.s32.totalorder %s20, 1
        %s322 = scalar_select %p321, %s20, 1
        %s323 = smul.addr %s322, 2
        %s324 = smul.addr %s323, 8
        %s325 = scalar_lea.vmem %s8, %s324
        %p326 = scmp.lt.s32.totalorder %s20, 1
        %s327 = scalar_select %p326, %s20, 1
        %s328 = smul.addr %s327, 8
        %s329 = scalar_lea.vmem %s0, %s328
        %p330 = scmp.lt.s32.totalorder %s20, 1
        %s331 = scalar_select %p330, %s20, 1
        %s332 = smul.addr %s331, 2
        %s333 = smul.addr %s332, 8
        %s334 = scalar_lea.vmem %s1, %s333
        %p335 = scmp.lt.s32.totalorder %s20, 1
        %s336 = scalar_select %p335, %s20, 1
        %s337 = smul.addr %s336, 2
        %s338 = smul.addr %s337, 8
        %s339 = scalar_lea.vmem %s8, %s338
        %341 = vst [vmem:[#allocation2] sm:$0x3] 0.0
        %342 = vst [vmem:[#allocation2 + $0x12] sm:$0x3] 0.0
        %vm343 = vcmask 517120
        %344 = vst.msk [vmem:[#allocation3] sm:$0x3] %vm343, 0.0
        %345 = vst.msk [vmem:[#allocation3 + $0x12] sm:$0x3] %vm343, 0.0
        %346 = vst [vmem:[#allocation4] sm:$0x1] 0.0
        %347 = vst [vmem:[#allocation4 + $0x11] sm:$0x1] 0.0
        %348 = vst [vmem:[#allocation5] sm:$0x1] 0.0
        %349 = vst [vmem:[#allocation5 + $0x11] sm:$0x1] 0.0
        %v350 = vld [vmem:[%s2] sm:$0xff]
        %v351 = vld [vmem:[%s2 + $0x8] sm:$0xff]
        %v352 = vld [vmem:[%s329] sm:$0xff]
        %vm353 = vcmask 64512
        %v355 = vsel %vm353, %v350, 0
        %v358 = vsel %vm353, %v351, 0
        %360 = vmatpush.msra.mxu0 0.0
        %361 = vmatpush.msra.mxu0 0.0
        %362 = vmatpush.msra.mxu0 0.0
        %363 = vmatpush.msra.mxu0 0.0
        %364 = vmatpush.msra.mxu0 0.0
        %365 = vmatpush.msra.mxu0 0.0
        %366 = vmatpush.msra.mxu0 0.0
        %367 = vmatpush.msra.mxu0 0.0
        %368 = vmatpush.msra.mxu0 0.0
        %369 = vmatpush.msra.mxu0 0.0
        %370 = vmatpush.msra.mxu0 0.0
        %371 = vmatpush.msra.mxu0 0.0
        %372 = vmatpush.msra.mxu0 0.0
        %373 = vmatpush.msra.mxu0 0.0
        %374 = vmatpush.msra.mxu0 0.0
        %375 = vmatpush.msra.mxu0 %v352
        %376 = vmatmul.f32.gmra.mxu0 %v355
        %v377 = vpop.f32.mrf.mxu0
        %v378 = vadd.f32 0.0, %v377
        %379 = vmatmul.f32.gmra.mxu0 %v358
        %v380 = vpop.f32.mrf.mxu0
        %v381 = vadd.f32 0.0, %v380
        %382 = vdwg.mxu0
        %v383 = vld [vmem:[%s3] sm:$0xff]
        %v384 = vld [vmem:[%s3 + $0x8] sm:$0xff]
        %v385 = vld [vmem:[%s3 + $0x10] sm:$0xff]
        %v386 = vld [vmem:[%s3 + $0x18] sm:$0xff]
        %v387 = vld [vmem:[%s3 + $0x20] sm:$0xff]
        %v388 = vld [vmem:[%s3 + $0x28] sm:$0xff]
        %v389 = vld [vmem:[%s3 + $0x30] sm:$0xff]
        %v390 = vld [vmem:[%s3 + $0x38] sm:$0xff]
        %vm391 = vcmask 523264
        %v393 = vsel %vm391, %v378, 0
        %v396 = vsel %vm391, %v381, 0
        %398 = vmatpush.msra.mxu0 0.0
        %399 = vmatpush.msra.mxu0 0.0
        %400 = vmatpush.msra.mxu0 0.0
        %401 = vmatpush.msra.mxu0 0.0
        %402 = vmatpush.msra.mxu0 0.0
        %403 = vmatpush.msra.mxu0 0.0
        %404 = vmatpush.msra.mxu0 0.0
        %405 = vmatpush.msra.mxu0 0.0
        %406 = vmatpush.msra.mxu0 %v390
        %407 = vmatpush.msra.mxu0 %v389
        %408 = vmatpush.msra.mxu0 %v388
        %409 = vmatpush.msra.mxu0 %v387
        %410 = vmatpush.msra.mxu0 %v386
        %411 = vmatpush.msra.mxu0 %v385
        %412 = vmatpush.msra.mxu0 %v384
        %413 = vmatpush.msra.mxu0 %v383
        %414 = vmatmul.f32.gmra.mxu0 %v393
        %v415 = vpop.f32.mrf.mxu0
        %v416 = vadd.f32 0.0, %v415
        %417 = vmatmul.f32.gmra.mxu0 %v396
        %v418 = vpop.f32.mrf.mxu0
        %v419 = vadd.f32 0.0, %v418
        %420 = vdwg.mxu0
        %421 = vst [vmem:[#allocation2 + $0x2] sm:$0xff] %v416
        %422 = vst [vmem:[#allocation2 + $0xa] sm:$0xff] %v419
        %v423 = vld [vmem:[%s334] sm:$0xff]
        %v424 = vld [vmem:[%s334 + $0x8] sm:$0xff]
        %425 = vst.msk [vmem:[#allocation3 + $0x2] sm:$0xff] %vm391, %v423
        %426 = vst.msk [vmem:[#allocation3 + $0xa] sm:$0xff] %vm391, %v424
        %v427 = vld [vmem:[#allocation2] sm:$0xff]
        %v428 = vld [vmem:[#allocation2 + $0x8] sm:$0xff]
        %v429 = vld [vmem:[#allocation2 + $0x10] sm:$0xf]
        %v430 = vpack.c.bf16 %v427, %v427
        %v431 = vpack.c.bf16 %v428, %v428
        %v432 = vpack.c.bf16 %v429, %v429
        %v433 = vld [vmem:[#allocation3] sm:$0xff]
        %v434 = vld [vmem:[#allocation3 + $0x8] sm:$0xff]
        %v435 = vld [vmem:[#allocation3 + $0x10] sm:$0xf]
        %v436 = vpack.c.bf16 %v433, %v433
        %v437 = vpack.c.bf16 %v434, %v434
        %v438 = vpack.c.bf16 %v435, %v435
        %v439 = vld [vmem:[%s4] sm:$0xf]
        %v440 = vld [vmem:[%s4 + $0x4] sm:$0xf]
        %v441 = vld [vmem:[%s4 + $0x8] sm:$0xf]
        %v442 = vld [vmem:[%s4 + $0xc] sm:$0xf]
        %v443 = vld [vmem:[%s4 + $0x10] sm:$0xf]
        %v444 = vld [vmem:[%s4 + $0x14] sm:$0xf]
        %v445 = vld [vmem:[%s4 + $0x18] sm:$0xf]
        %v446 = vld [vmem:[%s4 + $0x1c] sm:$0xf]
        %v447 = vld [vmem:[%s4 + $0x20] sm:$0xf]
        %v448 = vld [vmem:[%s4 + $0x24] sm:$0xf]
        %v449 = vld [vmem:[%s4 + $0x28] sm:$0xf]
        %v450 = vld [vmem:[%s4 + $0x2c] sm:$0xf]
        %v451 = vld [vmem:[%s4 + $0x30] sm:$0xf]
        %v452 = vld [vmem:[%s4 + $0x34] sm:$0xf]
        %v453 = vld [vmem:[%s4 + $0x38] sm:$0xf]
        %v454 = vld [vmem:[%s4 + $0x3c] sm:$0xf]
        %v455 = vld [vmem:[%s5] sm:$0xf]
        %v456 = vld [vmem:[%s5 + $0x4] sm:$0xf]
        %v457 = vld [vmem:[%s5 + $0x8] sm:$0xf]
        %v458 = vld [vmem:[%s5 + $0xc] sm:$0xf]
        %v459 = vld [vmem:[%s5 + $0x10] sm:$0xf]
        %v460 = vld [vmem:[%s5 + $0x14] sm:$0xf]
        %v461 = vld [vmem:[%s5 + $0x18] sm:$0xf]
        %v462 = vld [vmem:[%s5 + $0x1c] sm:$0xf]
        %v465 = vunpack.c.l.b16 %v436
        %v466 = vunpack.c.l.b16 %v437
        %v467 = vpack.c.b16 %v466, %v465
        %v476 = vunpack.c.l.b16 %v455
        %v477 = vunpack.c.l.b16 %v456
        %v478 = vunpack.c.l.b16 %v457
        %v479 = vunpack.c.l.b16 %v458
        %v480 = vunpack.c.l.b16 %v459
        %v481 = vunpack.c.l.b16 %v460
        %v482 = vunpack.c.l.b16 %v461
        %v483 = vunpack.c.l.b16 %v462
        %v484 = vpack.c.b16 %v477, %v476
        %v485 = vpack.c.b16 %v479, %v478
        %v486 = vpack.c.b16 %v481, %v480
        %v487 = vpack.c.b16 %v483, %v482
        %v493 = vsel %vm391, %v467, 0
        %495 = vmatpush.bf16.msra.mxu0 0
        %496 = vmatpush.bf16.msra.mxu0 0
        %497 = vmatpush.bf16.msra.mxu0 0
        %498 = vmatpush.bf16.msra.mxu0 0
        %499 = vmatpush.bf16.msra.mxu0 %v487
        %500 = vmatpush.bf16.msra.mxu0 %v486
        %501 = vmatpush.bf16.msra.mxu0 %v485
        %502 = vmatpush.bf16.msra.mxu0 %v484
        %503 = vmatmul.bf16.gmra.mxu0 %v493
        %v504 = vpop.f32.mrf.mxu0
        %v505 = vadd.f32 0.0, %v504
        %v506 = vpop.f32.mrf.mxu0
        %v507 = vadd.f32 0.0, %v506
        %508 = vdwg.mxu0
        %v511 = vunpack.c.l.b16 %v430
        %v512 = vunpack.c.l.b16 %v431
        %v513 = vpack.c.b16 %v512, %v511
        %v531 = vunpack.c.l.b16 %v439
        %v532 = vunpack.c.l.b16 %v440
        %v533 = vunpack.c.l.b16 %v441
        %v534 = vunpack.c.l.b16 %v442
        %v535 = vunpack.c.l.b16 %v443
        %v536 = vunpack.c.l.b16 %v444
        %v537 = vunpack.c.l.b16 %v445
        %v538 = vunpack.c.l.b16 %v446
        %v539 = vunpack.c.l.b16 %v447
        %v540 = vunpack.c.l.b16 %v448
        %v541 = vunpack.c.l.b16 %v449
        %v542 = vunpack.c.l.b16 %v450
        %v543 = vunpack.c.l.b16 %v451
        %v544 = vunpack.c.l.b16 %v452
        %v545 = vunpack.c.l.b16 %v453
        %v546 = vunpack.c.l.b16 %v454
        %v547 = vpack.c.b16 %v532, %v531
        %v548 = vpack.c.b16 %v534, %v533
        %v549 = vpack.c.b16 %v536, %v535
        %v550 = vpack.c.b16 %v538, %v537
        %v551 = vpack.c.b16 %v540, %v539
        %v552 = vpack.c.b16 %v542, %v541
        %v553 = vpack.c.b16 %v544, %v543
        %v554 = vpack.c.b16 %v546, %v545
        %563 = vmatpush.bf16.msra.mxu0 %v554
        %564 = vmatpush.bf16.msra.mxu0 %v553
        %565 = vmatpush.bf16.msra.mxu0 %v552
        %566 = vmatpush.bf16.msra.mxu0 %v551
        %567 = vmatpush.bf16.msra.mxu0 %v550
        %568 = vmatpush.bf16.msra.mxu0 %v549
        %569 = vmatpush.bf16.msra.mxu0 %v548
        %570 = vmatpush.bf16.msra.mxu0 %v547
        %571 = vmatmul.bf16.gmra.mxu0 %v513
        %v572 = vpop.f32.mrf.mxu0
        %v573 = vadd.f32 %v505, %v572
        %v574 = vpop.f32.mrf.mxu0
        %v575 = vadd.f32 %v507, %v574
        %576 = vdwg.mxu0
        %s577 = scalar_lea.vmem %s4, 64
        %v578 = vld [vmem:[%s577] sm:$0xf]
        %v579 = vld [vmem:[%s577 + $0x4] sm:$0xf]
        %v580 = vld [vmem:[%s577 + $0x8] sm:$0xf]
        %v581 = vld [vmem:[%s577 + $0xc] sm:$0xf]
        %v582 = vld [vmem:[%s577 + $0x10] sm:$0xf]
        %v583 = vld [vmem:[%s577 + $0x14] sm:$0xf]
        %v584 = vld [vmem:[%s577 + $0x18] sm:$0xf]
        %v585 = vld [vmem:[%s577 + $0x1c] sm:$0xf]
        %v586 = vld [vmem:[%s577 + $0x20] sm:$0xf]
        %v587 = vld [vmem:[%s577 + $0x24] sm:$0xf]
        %v588 = vld [vmem:[%s577 + $0x28] sm:$0xf]
        %v589 = vld [vmem:[%s577 + $0x2c] sm:$0xf]
        %v590 = vld [vmem:[%s577 + $0x30] sm:$0xf]
        %v591 = vld [vmem:[%s577 + $0x34] sm:$0xf]
        %v592 = vld [vmem:[%s577 + $0x38] sm:$0xf]
        %v593 = vld [vmem:[%s577 + $0x3c] sm:$0xf]
        %v595 = vunpack.c.l.b16 %v432
        %v596 = vpack.c.b16 %v595, %v595
        %vm597 = vsmask.f32 7424
        %v599 = vshrl.u32 %v513, 16
        %v601 = vshll.u32 %v513, 16
        %v603 = vrot.slane %v601, 1
        %v604 = vor.u32 %v599, %v603
        %v606 = vshll.u32 %v596, 16
        %v608 = vrot.slane %v606, 1
        %v609 = vsel %vm597, %v604, %v608
        %v627 = vunpack.c.l.b16 %v578
        %v628 = vunpack.c.l.b16 %v579
        %v629 = vunpack.c.l.b16 %v580
        %v630 = vunpack.c.l.b16 %v581
        %v631 = vunpack.c.l.b16 %v582
        %v632 = vunpack.c.l.b16 %v583
        %v633 = vunpack.c.l.b16 %v584
        %v634 = vunpack.c.l.b16 %v585
        %v635 = vunpack.c.l.b16 %v586
        %v636 = vunpack.c.l.b16 %v587
        %v637 = vunpack.c.l.b16 %v588
        %v638 = vunpack.c.l.b16 %v589
        %v639 = vunpack.c.l.b16 %v590
        %v640 = vunpack.c.l.b16 %v591
        %v641 = vunpack.c.l.b16 %v592
        %v642 = vunpack.c.l.b16 %v593
        %v643 = vpack.c.b16 %v628, %v627
        %v644 = vpack.c.b16 %v630, %v629
        %v645 = vpack.c.b16 %v632, %v631
        %v646 = vpack.c.b16 %v634, %v633
        %v647 = vpack.c.b16 %v636, %v635
        %v648 = vpack.c.b16 %v638, %v637
        %v649 = vpack.c.b16 %v640, %v639
        %v650 = vpack.c.b16 %v642, %v641
        %659 = vmatpush.bf16.msra.mxu0 %v650
        %660 = vmatpush.bf16.msra.mxu0 %v649
        %661 = vmatpush.bf16.msra.mxu0 %v648
        %662 = vmatpush.bf16.msra.mxu0 %v647
        %663 = vmatpush.bf16.msra.mxu0 %v646
        %664 = vmatpush.bf16.msra.mxu0 %v645
        %665 = vmatpush.bf16.msra.mxu0 %v644
        %666 = vmatpush.bf16.msra.mxu0 %v643
        %667 = vmatmul.bf16.gmra.mxu0 %v609
        %v668 = vpop.f32.mrf.mxu0
        %v669 = vadd.f32 0.0, %v668
        %v670 = vpop.f32.mrf.mxu0
        %v671 = vadd.f32 0.0, %v670
        %672 = vdwg.mxu0
        %v673 = vadd.f32 %v573, %v669
        %v674 = vadd.f32 %v575, %v671
        %s675 = scalar_lea.vmem %s5, 32
        %v676 = vld [vmem:[%s675] sm:$0xf]
        %v677 = vld [vmem:[%s675 + $0x4] sm:$0xf]
        %v678 = vld [vmem:[%s675 + $0x8] sm:$0xf]
        %v679 = vld [vmem:[%s675 + $0xc] sm:$0xf]
        %v680 = vld [vmem:[%s675 + $0x10] sm:$0xf]
        %v681 = vld [vmem:[%s675 + $0x14] sm:$0xf]
        %v682 = vld [vmem:[%s675 + $0x18] sm:$0xf]
        %v683 = vld [vmem:[%s675 + $0x1c] sm:$0xf]
        %v685 = vunpack.c.l.b16 %v438
        %v686 = vpack.c.b16 %v685, %v685
        %v687 = vshrl.u32 %v467, 16
        %v689 = vshll.u32 %v467, 16
        %v691 = vrot.slane %v689, 1
        %v692 = vor.u32 %v687, %v691
        %v694 = vshll.u32 %v686, 16
        %v696 = vrot.slane %v694, 1
        %v697 = vsel %vm597, %v692, %v696
        %v706 = vunpack.c.l.b16 %v676
        %v707 = vunpack.c.l.b16 %v677
        %v708 = vunpack.c.l.b16 %v678
        %v709 = vunpack.c.l.b16 %v679
        %v710 = vunpack.c.l.b16 %v680
        %v711 = vunpack.c.l.b16 %v681
        %v712 = vunpack.c.l.b16 %v682
        %v713 = vunpack.c.l.b16 %v683
        %v714 = vpack.c.b16 %v707, %v706
        %v715 = vpack.c.b16 %v709, %v708
        %v716 = vpack.c.b16 %v711, %v710
        %v717 = vpack.c.b16 %v713, %v712
        %v723 = vsel %vm391, %v697, 0
        %725 = vmatpush.bf16.msra.mxu0 0
        %726 = vmatpush.bf16.msra.mxu0 0
        %727 = vmatpush.bf16.msra.mxu0 0
        %728 = vmatpush.bf16.msra.mxu0 0
        %729 = vmatpush.bf16.msra.mxu0 %v717
        %730 = vmatpush.bf16.msra.mxu0 %v716
        %731 = vmatpush.bf16.msra.mxu0 %v715
        %732 = vmatpush.bf16.msra.mxu0 %v714
        %733 = vmatmul.bf16.gmra.mxu0 %v723
        %v734 = vpop.f32.mrf.mxu0
        %v735 = vadd.f32 0.0, %v734
        %v736 = vpop.f32.mrf.mxu0
        %v737 = vadd.f32 0.0, %v736
        %738 = vdwg.mxu0
        %v739 = vadd.f32 %v673, %v735
        %v740 = vadd.f32 %v674, %v737
        %s741 = scalar_lea.vmem %s4, 128
        %v742 = vld [vmem:[%s741] sm:$0xf]
        %v743 = vld [vmem:[%s741 + $0x4] sm:$0xf]
        %v744 = vld [vmem:[%s741 + $0x8] sm:$0xf]
        %v745 = vld [vmem:[%s741 + $0xc] sm:$0xf]
        %v746 = vld [vmem:[%s741 + $0x10] sm:$0xf]
        %v747 = vld [vmem:[%s741 + $0x14] sm:$0xf]
        %v748 = vld [vmem:[%s741 + $0x18] sm:$0xf]
        %v749 = vld [vmem:[%s741 + $0x1c] sm:$0xf]
        %v750 = vld [vmem:[%s741 + $0x20] sm:$0xf]
        %v751 = vld [vmem:[%s741 + $0x24] sm:$0xf]
        %v752 = vld [vmem:[%s741 + $0x28] sm:$0xf]
        %v753 = vld [vmem:[%s741 + $0x2c] sm:$0xf]
        %v754 = vld [vmem:[%s741 + $0x30] sm:$0xf]
        %v755 = vld [vmem:[%s741 + $0x34] sm:$0xf]
        %v756 = vld [vmem:[%s741 + $0x38] sm:$0xf]
        %v757 = vld [vmem:[%s741 + $0x3c] sm:$0xf]
        %vm758 = vcmask 1046528
        %v759 = vrot.slane %v513, 1
        %v760 = vrot.slane %v596, 1
        %v761 = vsel %vm758, %v759, %v760
        %v779 = vunpack.c.l.b16 %v742
        %v780 = vunpack.c.l.b16 %v743
        %v781 = vunpack.c.l.b16 %v744
        %v782 = vunpack.c.l.b16 %v745
        %v783 = vunpack.c.l.b16 %v746
        %v784 = vunpack.c.l.b16 %v747
        %v785 = vunpack.c.l.b16 %v748
        %v786 = vunpack.c.l.b16 %v749
        %v787 = vunpack.c.l.b16 %v750
        %v788 = vunpack.c.l.b16 %v751
        %v789 = vunpack.c.l.b16 %v752
        %v790 = vunpack.c.l.b16 %v753
        %v791 = vunpack.c.l.b16 %v754
        %v792 = vunpack.c.l.b16 %v755
        %v793 = vunpack.c.l.b16 %v756
        %v794 = vunpack.c.l.b16 %v757
        %v795 = vpack.c.b16 %v780, %v779
        %v796 = vpack.c.b16 %v782, %v781
        %v797 = vpack.c.b16 %v784, %v783
        %v798 = vpack.c.b16 %v786, %v785
        %v799 = vpack.c.b16 %v788, %v787
        %v800 = vpack.c.b16 %v790, %v789
        %v801 = vpack.c.b16 %v792, %v791
        %v802 = vpack.c.b16 %v794, %v793
        %811 = vmatpush.bf16.msra.mxu0 %v802
        %812 = vmatpush.bf16.msra.mxu0 %v801
        %813 = vmatpush.bf16.msra.mxu0 %v800
        %814 = vmatpush.bf16.msra.mxu0 %v799
        %815 = vmatpush.bf16.msra.mxu0 %v798
        %816 = vmatpush.bf16.msra.mxu0 %v797
        %817 = vmatpush.bf16.msra.mxu0 %v796
        %818 = vmatpush.bf16.msra.mxu0 %v795
        %819 = vmatmul.bf16.gmra.mxu0 %v761
        %v820 = vpop.f32.mrf.mxu0
        %v821 = vadd.f32 0.0, %v820
        %v822 = vpop.f32.mrf.mxu0
        %v823 = vadd.f32 0.0, %v822
        %824 = vdwg.mxu0
        %v825 = vadd.f32 %v739, %v821
        %v826 = vadd.f32 %v740, %v823
        %s827 = scalar_lea.vmem %s5, 64
        %v828 = vld [vmem:[%s827] sm:$0xf]
        %v829 = vld [vmem:[%s827 + $0x4] sm:$0xf]
        %v830 = vld [vmem:[%s827 + $0x8] sm:$0xf]
        %v831 = vld [vmem:[%s827 + $0xc] sm:$0xf]
        %v832 = vld [vmem:[%s827 + $0x10] sm:$0xf]
        %v833 = vld [vmem:[%s827 + $0x14] sm:$0xf]
        %v834 = vld [vmem:[%s827 + $0x18] sm:$0xf]
        %v835 = vld [vmem:[%s827 + $0x1c] sm:$0xf]
        %v836 = vrot.slane %v467, 1
        %v837 = vrot.slane %v686, 1
        %v838 = vsel %vm758, %v836, %v837
        %v847 = vunpack.c.l.b16 %v828
        %v848 = vunpack.c.l.b16 %v829
        %v849 = vunpack.c.l.b16 %v830
        %v850 = vunpack.c.l.b16 %v831
        %v851 = vunpack.c.l.b16 %v832
        %v852 = vunpack.c.l.b16 %v833
        %v853 = vunpack.c.l.b16 %v834
        %v854 = vunpack.c.l.b16 %v835
        %v855 = vpack.c.b16 %v848, %v847
        %v856 = vpack.c.b16 %v850, %v849
        %v857 = vpack.c.b16 %v852, %v851
        %v858 = vpack.c.b16 %v854, %v853
        %v864 = vsel %vm391, %v838, 0
        %866 = vmatpush.bf16.msra.mxu0 0
        %867 = vmatpush.bf16.msra.mxu0 0
        %868 = vmatpush.bf16.msra.mxu0 0
        %869 = vmatpush.bf16.msra.mxu0 0
        %870 = vmatpush.bf16.msra.mxu0 %v858
        %871 = vmatpush.bf16.msra.mxu0 %v857
        %872 = vmatpush.bf16.msra.mxu0 %v856
        %873 = vmatpush.bf16.msra.mxu0 %v855
        %874 = vmatmul.bf16.gmra.mxu0 %v864
        %v875 = vpop.f32.mrf.mxu0
        %v876 = vadd.f32 0.0, %v875
        %v877 = vpop.f32.mrf.mxu0
        %v878 = vadd.f32 0.0, %v877
        %879 = vdwg.mxu0
        %v880 = vadd.f32 %v825, %v876
        %v881 = vadd.f32 %v826, %v878
        %s882 = scalar_lea.vmem %s4, 192
        %v883 = vld [vmem:[%s882] sm:$0xf]
        %v884 = vld [vmem:[%s882 + $0x4] sm:$0xf]
        %v885 = vld [vmem:[%s882 + $0x8] sm:$0xf]
        %v886 = vld [vmem:[%s882 + $0xc] sm:$0xf]
        %v887 = vld [vmem:[%s882 + $0x10] sm:$0xf]
        %v888 = vld [vmem:[%s882 + $0x14] sm:$0xf]
        %v889 = vld [vmem:[%s882 + $0x18] sm:$0xf]
        %v890 = vld [vmem:[%s882 + $0x1c] sm:$0xf]
        %v891 = vld [vmem:[%s882 + $0x20] sm:$0xf]
        %v892 = vld [vmem:[%s882 + $0x24] sm:$0xf]
        %v893 = vld [vmem:[%s882 + $0x28] sm:$0xf]
        %v894 = vld [vmem:[%s882 + $0x2c] sm:$0xf]
        %v895 = vld [vmem:[%s882 + $0x30] sm:$0xf]
        %v896 = vld [vmem:[%s882 + $0x34] sm:$0xf]
        %v897 = vld [vmem:[%s882 + $0x38] sm:$0xf]
        %v898 = vld [vmem:[%s882 + $0x3c] sm:$0xf]
        %vm899 = vsmask.f32 6400
        %v900 = vrot.slane %v599, 1
        %v901 = vrot.slane %v601, 2
        %v902 = vor.u32 %v900, %v901
        %v903 = vshrl.u32 %v596, 16
        %v905 = vrot.slane %v903, 1
        %v906 = vrot.slane %v606, 2
        %v907 = vor.u32 %v905, %v906
        %v908 = vsel %vm899, %v902, %v907
        %v926 = vunpack.c.l.b16 %v883
        %v927 = vunpack.c.l.b16 %v884
        %v928 = vunpack.c.l.b16 %v885
        %v929 = vunpack.c.l.b16 %v886
        %v930 = vunpack.c.l.b16 %v887
        %v931 = vunpack.c.l.b16 %v888
        %v932 = vunpack.c.l.b16 %v889
        %v933 = vunpack.c.l.b16 %v890
        %v934 = vunpack.c.l.b16 %v891
        %v935 = vunpack.c.l.b16 %v892
        %v936 = vunpack.c.l.b16 %v893
        %v937 = vunpack.c.l.b16 %v894
        %v938 = vunpack.c.l.b16 %v895
        %v939 = vunpack.c.l.b16 %v896
        %v940 = vunpack.c.l.b16 %v897
        %v941 = vunpack.c.l.b16 %v898
        %v942 = vpack.c.b16 %v927, %v926
        %v943 = vpack.c.b16 %v929, %v928
        %v944 = vpack.c.b16 %v931, %v930
        %v945 = vpack.c.b16 %v933, %v932
        %v946 = vpack.c.b16 %v935, %v934
        %v947 = vpack.c.b16 %v937, %v936
        %v948 = vpack.c.b16 %v939, %v938
        %v949 = vpack.c.b16 %v941, %v940
        %958 = vmatpush.bf16.msra.mxu0 %v949
        %959 = vmatpush.bf16.msra.mxu0 %v948
        %960 = vmatpush.bf16.msra.mxu0 %v947
        %961 = vmatpush.bf16.msra.mxu0 %v946
        %962 = vmatpush.bf16.msra.mxu0 %v945
        %963 = vmatpush.bf16.msra.mxu0 %v944
        %964 = vmatpush.bf16.msra.mxu0 %v943
        %965 = vmatpush.bf16.msra.mxu0 %v942
        %966 = vmatmul.bf16.gmra.mxu0 %v908
        %v967 = vpop.f32.mrf.mxu0
        %v968 = vadd.f32 0.0, %v967
        %v969 = vpop.f32.mrf.mxu0
        %v970 = vadd.f32 0.0, %v969
        %971 = vdwg.mxu0
        %v972 = vadd.f32 %v880, %v968
        %v973 = vadd.f32 %v881, %v970
        %s974 = scalar_lea.vmem %s5, 96
        %v975 = vld [vmem:[%s974] sm:$0xf]
        %v976 = vld [vmem:[%s974 + $0x4] sm:$0xf]
        %v977 = vld [vmem:[%s974 + $0x8] sm:$0xf]
        %v978 = vld [vmem:[%s974 + $0xc] sm:$0xf]
        %v979 = vld [vmem:[%s974 + $0x10] sm:$0xf]
        %v980 = vld [vmem:[%s974 + $0x14] sm:$0xf]
        %v981 = vld [vmem:[%s974 + $0x18] sm:$0xf]
        %v982 = vld [vmem:[%s974 + $0x1c] sm:$0xf]
        %v983 = vrot.slane %v687, 1
        %v984 = vrot.slane %v689, 2
        %v985 = vor.u32 %v983, %v984
        %v986 = vshrl.u32 %v686, 16
        %v988 = vrot.slane %v986, 1
        %v989 = vrot.slane %v694, 2
        %v990 = vor.u32 %v988, %v989
        %v991 = vsel %vm899, %v985, %v990
        %v1000 = vunpack.c.l.b16 %v975
        %v1001 = vunpack.c.l.b16 %v976
        %v1002 = vunpack.c.l.b16 %v977
        %v1003 = vunpack.c.l.b16 %v978
        %v1004 = vunpack.c.l.b16 %v979
        %v1005 = vunpack.c.l.b16 %v980
        %v1006 = vunpack.c.l.b16 %v981
        %v1007 = vunpack.c.l.b16 %v982
        %v1008 = vpack.c.b16 %v1001, %v1000
        %v1009 = vpack.c.b16 %v1003, %v1002
        %v1010 = vpack.c.b16 %v1005, %v1004
        %v1011 = vpack.c.b16 %v1007, %v1006
        %v1017 = vsel %vm391, %v991, 0
        %1019 = vmatpush.bf16.msra.mxu0 0
        %1020 = vmatpush.bf16.msra.mxu0 0
        %1021 = vmatpush.bf16.msra.mxu0 0
        %1022 = vmatpush.bf16.msra.mxu0 0
        %1023 = vmatpush.bf16.msra.mxu0 %v1011
        %1024 = vmatpush.bf16.msra.mxu0 %v1010
        %1025 = vmatpush.bf16.msra.mxu0 %v1009
        %1026 = vmatpush.bf16.msra.mxu0 %v1008
        %1027 = vmatmul.bf16.gmra.mxu0 %v1017
        %v1028 = vpop.f32.mrf.mxu0
        %v1029 = vadd.f32 0.0, %v1028
        %v1030 = vpop.f32.mrf.mxu0
        %v1031 = vadd.f32 0.0, %v1030
        %1032 = vdwg.mxu0
        %v1033 = vadd.f32 %v972, %v1029
        %v1034 = vadd.f32 %v973, %v1031
        %s1035 = scalar_lea.vmem %s4, 256
        %v1036 = vld [vmem:[%s1035] sm:$0xf]
        %v1037 = vld [vmem:[%s1035 + $0x4] sm:$0xf]
        %v1038 = vld [vmem:[%s1035 + $0x8] sm:$0xf]
        %v1039 = vld [vmem:[%s1035 + $0xc] sm:$0xf]
        %v1040 = vld [vmem:[%s1035 + $0x10] sm:$0xf]
        %v1041 = vld [vmem:[%s1035 + $0x14] sm:$0xf]
        %v1042 = vld [vmem:[%s1035 + $0x18] sm:$0xf]
        %v1043 = vld [vmem:[%s1035 + $0x1c] sm:$0xf]
        %v1044 = vld [vmem:[%s1035 + $0x20] sm:$0xf]
        %v1045 = vld [vmem:[%s1035 + $0x24] sm:$0xf]
        %v1046 = vld [vmem:[%s1035 + $0x28] sm:$0xf]
        %v1047 = vld [vmem:[%s1035 + $0x2c] sm:$0xf]
        %v1048 = vld [vmem:[%s1035 + $0x30] sm:$0xf]
        %v1049 = vld [vmem:[%s1035 + $0x34] sm:$0xf]
        %v1050 = vld [vmem:[%s1035 + $0x38] sm:$0xf]
        %v1051 = vld [vmem:[%s1035 + $0x3c] sm:$0xf]
        %vm1052 = vcmask 1045504
        %v1053 = vrot.slane %v513, 2
        %v1054 = vrot.slane %v596, 2
        %v1055 = vsel %vm1052, %v1053, %v1054
        %v1073 = vunpack.c.l.b16 %v1036
        %v1074 = vunpack.c.l.b16 %v1037
        %v1075 = vunpack.c.l.b16 %v1038
        %v1076 = vunpack.c.l.b16 %v1039
        %v1077 = vunpack.c.l.b16 %v1040
        %v1078 = vunpack.c.l.b16 %v1041
        %v1079 = vunpack.c.l.b16 %v1042
        %v1080 = vunpack.c.l.b16 %v1043
        %v1081 = vunpack.c.l.b16 %v1044
        %v1082 = vunpack.c.l.b16 %v1045
        %v1083 = vunpack.c.l.b16 %v1046
        %v1084 = vunpack.c.l.b16 %v1047
        %v1085 = vunpack.c.l.b16 %v1048
        %v1086 = vunpack.c.l.b16 %v1049
        %v1087 = vunpack.c.l.b16 %v1050
        %v1088 = vunpack.c.l.b16 %v1051
        %v1089 = vpack.c.b16 %v1074, %v1073
        %v1090 = vpack.c.b16 %v1076, %v1075
        %v1091 = vpack.c.b16 %v1078, %v1077
        %v1092 = vpack.c.b16 %v1080, %v1079
        %v1093 = vpack.c.b16 %v1082, %v1081
        %v1094 = vpack.c.b16 %v1084, %v1083
        %v1095 = vpack.c.b16 %v1086, %v1085
        %v1096 = vpack.c.b16 %v1088, %v1087
        %1105 = vmatpush.bf16.msra.mxu0 %v1096
        %1106 = vmatpush.bf16.msra.mxu0 %v1095
        %1107 = vmatpush.bf16.msra.mxu0 %v1094
        %1108 = vmatpush.bf16.msra.mxu0 %v1093
        %1109 = vmatpush.bf16.msra.mxu0 %v1092
        %1110 = vmatpush.bf16.msra.mxu0 %v1091
        %1111 = vmatpush.bf16.msra.mxu0 %v1090
        %1112 = vmatpush.bf16.msra.mxu0 %v1089
        %1113 = vmatmul.bf16.gmra.mxu0 %v1055
        %v1114 = vpop.f32.mrf.mxu0
        %v1115 = vadd.f32 0.0, %v1114
        %v1116 = vpop.f32.mrf.mxu0
        %v1117 = vadd.f32 0.0, %v1116
        %1118 = vdwg.mxu0
        %v1119 = vadd.f32 %v1033, %v1115
        %v1120 = vadd.f32 %v1034, %v1117
        %s1121 = scalar_lea.vmem %s5, 128
        %v1122 = vld [vmem:[%s1121] sm:$0xf]
        %v1123 = vld [vmem:[%s1121 + $0x4] sm:$0xf]
        %v1124 = vld [vmem:[%s1121 + $0x8] sm:$0xf]
        %v1125 = vld [vmem:[%s1121 + $0xc] sm:$0xf]
        %v1126 = vld [vmem:[%s1121 + $0x10] sm:$0xf]
        %v1127 = vld [vmem:[%s1121 + $0x14] sm:$0xf]
        %v1128 = vld [vmem:[%s1121 + $0x18] sm:$0xf]
        %v1129 = vld [vmem:[%s1121 + $0x1c] sm:$0xf]
        %v1130 = vrot.slane %v467, 2
        %v1131 = vrot.slane %v686, 2
        %v1132 = vsel %vm1052, %v1130, %v1131
        %v1141 = vunpack.c.l.b16 %v1122
        %v1142 = vunpack.c.l.b16 %v1123
        %v1143 = vunpack.c.l.b16 %v1124
        %v1144 = vunpack.c.l.b16 %v1125
        %v1145 = vunpack.c.l.b16 %v1126
        %v1146 = vunpack.c.l.b16 %v1127
        %v1147 = vunpack.c.l.b16 %v1128
        %v1148 = vunpack.c.l.b16 %v1129
        %v1149 = vpack.c.b16 %v1142, %v1141
        %v1150 = vpack.c.b16 %v1144, %v1143
        %v1151 = vpack.c.b16 %v1146, %v1145
        %v1152 = vpack.c.b16 %v1148, %v1147
        %v1158 = vsel %vm391, %v1132, 0
        %1160 = vmatpush.bf16.msra.mxu0 0
        %1161 = vmatpush.bf16.msra.mxu0 0
        %1162 = vmatpush.bf16.msra.mxu0 0
        %1163 = vmatpush.bf16.msra.mxu0 0
        %1164 = vmatpush.bf16.msra.mxu0 %v1152
        %1165 = vmatpush.bf16.msra.mxu0 %v1151
        %1166 = vmatpush.bf16.msra.mxu0 %v1150
        %1167 = vmatpush.bf16.msra.mxu0 %v1149
        %1168 = vmatmul.bf16.gmra.mxu0 %v1158
        %v1169 = vpop.f32.mrf.mxu0
        %v1170 = vadd.f32 0.0, %v1169
        %v1171 = vpop.f32.mrf.mxu0
        %v1172 = vadd.f32 0.0, %v1171
        %1173 = vdwg.mxu0
        %v1174 = vadd.f32 %v1119, %v1170
        %v1175 = vadd.f32 %v1120, %v1172
        %v1176 = vld [vmem:[%s7] sm:$0x1]
        %v1178 = vperm.slane %v1176, 0
        %v1180 = vadd.f32 %v1174, %v1178
        %v1181 = vadd.f32 %v1175, %v1178
        %vm1182 = vcmp.ge.f32.partialorder %v1180, 0.0
        %vm1183 = vcmp.ge.f32.partialorder %v1181, 0.0
        %v1184 = vmul.f32 %v1180, 0.01
        %v1185 = vmul.f32 %v1181, 0.01
        %v1186 = vsel %vm1182, %v1180, %v1184
        %v1187 = vsel %vm1183, %v1181, %v1185
        %1188 = vst [vmem:[#allocation4 + $0x1] sm:$0xff] %v1186
        %1189 = vst [vmem:[#allocation4 + $0x9] sm:$0xff] %v1187
        %v1190 = vld [vmem:[#allocation4] sm:$0xff]
        %v1191 = vld [vmem:[#allocation4 + $0x8] sm:$0xff]
        %v1192 = vld [vmem:[#allocation4 + $0x10] sm:$0x3]
        %v1193 = vpack.c.bf16 %v1190, %v1190
        %v1194 = vpack.c.bf16 %v1191, %v1191
        %v1195 = vpack.c.bf16 %v1192, %v1192
        %v1196 = vld [vmem:[#allocation6] sm:$0xf]
        %v1197 = vld [vmem:[#allocation6 + $0x4] sm:$0xf]
        %v1198 = vld [vmem:[#allocation6 + $0x8] sm:$0xf]
        %v1199 = vld [vmem:[#allocation6 + $0xc] sm:$0xf]
        %v1200 = vld [vmem:[#allocation6 + $0x10] sm:$0xf]
        %v1201 = vld [vmem:[#allocation6 + $0x14] sm:$0xf]
        %v1202 = vld [vmem:[#allocation6 + $0x18] sm:$0xf]
        %v1203 = vld [vmem:[#allocation6 + $0x1c] sm:$0xf]
        %v1204 = vld [vmem:[#allocation6 + $0x20] sm:$0xf]
        %v1205 = vld [vmem:[#allocation6 + $0x24] sm:$0xf]
        %v1206 = vld [vmem:[#allocation6 + $0x28] sm:$0xf]
        %v1207 = vld [vmem:[#allocation6 + $0x2c] sm:$0xf]
        %v1208 = vld [vmem:[#allocation6 + $0x30] sm:$0xf]
        %v1209 = vld [vmem:[#allocation6 + $0x34] sm:$0xf]
        %v1210 = vld [vmem:[#allocation6 + $0x38] sm:$0xf]
        %v1211 = vld [vmem:[#allocation6 + $0x3c] sm:$0xf]
        %s1212 = scalar_lea.vmem [#allocation6], 64
        %v1213 = vld [vmem:[%s1212] sm:$0xf]
        %v1214 = vld [vmem:[%s1212 + $0x4] sm:$0xf]
        %v1215 = vld [vmem:[%s1212 + $0x8] sm:$0xf]
        %v1216 = vld [vmem:[%s1212 + $0xc] sm:$0xf]
        %v1217 = vld [vmem:[%s1212 + $0x10] sm:$0xf]
        %v1218 = vld [vmem:[%s1212 + $0x14] sm:$0xf]
        %v1219 = vld [vmem:[%s1212 + $0x18] sm:$0xf]
        %v1220 = vld [vmem:[%s1212 + $0x1c] sm:$0xf]
        %v1221 = vld [vmem:[%s1212 + $0x20] sm:$0xf]
        %v1222 = vld [vmem:[%s1212 + $0x24] sm:$0xf]
        %v1223 = vld [vmem:[%s1212 + $0x28] sm:$0xf]
        %v1224 = vld [vmem:[%s1212 + $0x2c] sm:$0xf]
        %v1225 = vld [vmem:[%s1212 + $0x30] sm:$0xf]
        %v1226 = vld [vmem:[%s1212 + $0x34] sm:$0xf]
        %v1227 = vld [vmem:[%s1212 + $0x38] sm:$0xf]
        %v1228 = vld [vmem:[%s1212 + $0x3c] sm:$0xf]
        %v1232 = vunpack.c.l.b16 %v1193
        %v1233 = vunpack.c.l.b16 %v1194
        %v1234 = vunpack.c.l.b16 %v1195
        %v1235 = vpack.c.b16 %v1233, %v1232
        %v1236 = vpack.c.b16 %v1234, %v1234
        %v1238 = vshrl.u32 %v1235, 16
        %v1240 = vshll.u32 %v1235, 16
        %v1242 = vrot.slane %v1240, 1
        %v1243 = vor.u32 %v1238, %v1242
        %v1245 = vshll.u32 %v1236, 16
        %v1247 = vrot.slane %v1245, 1
        %v1248 = vsel %vm597, %v1243, %v1247
        %v1266 = vunpack.c.l.b16 %v1213
        %v1267 = vunpack.c.l.b16 %v1214
        %v1268 = vunpack.c.l.b16 %v1215
        %v1269 = vunpack.c.l.b16 %v1216
        %v1270 = vunpack.c.l.b16 %v1217
        %v1271 = vunpack.c.l.b16 %v1218
        %v1272 = vunpack.c.l.b16 %v1219
        %v1273 = vunpack.c.l.b16 %v1220
        %v1274 = vunpack.c.l.b16 %v1221
        %v1275 = vunpack.c.l.b16 %v1222
        %v1276 = vunpack.c.l.b16 %v1223
        %v1277 = vunpack.c.l.b16 %v1224
        %v1278 = vunpack.c.l.b16 %v1225
        %v1279 = vunpack.c.l.b16 %v1226
        %v1280 = vunpack.c.l.b16 %v1227
        %v1281 = vunpack.c.l.b16 %v1228
        %v1282 = vpack.c.b16 %v1267, %v1266
        %v1283 = vpack.c.b16 %v1269, %v1268
        %v1284 = vpack.c.b16 %v1271, %v1270
        %v1285 = vpack.c.b16 %v1273, %v1272
        %v1286 = vpack.c.b16 %v1275, %v1274
        %v1287 = vpack.c.b16 %v1277, %v1276
        %v1288 = vpack.c.b16 %v1279, %v1278
        %v1289 = vpack.c.b16 %v1281, %v1280
        %1298 = vmatpush.bf16.msra.mxu0 %v1289
        %1299 = vmatpush.bf16.msra.mxu0 %v1288
        %1300 = vmatpush.bf16.msra.mxu0 %v1287
        %1301 = vmatpush.bf16.msra.mxu0 %v1286
        %1302 = vmatpush.bf16.msra.mxu0 %v1285
        %1303 = vmatpush.bf16.msra.mxu0 %v1284
        %1304 = vmatpush.bf16.msra.mxu0 %v1283
        %1305 = vmatpush.bf16.msra.mxu0 %v1282
        %1306 = vmatmul.bf16.gmra.mxu0 %v1248
        %v1307 = vpop.f32.mrf.mxu0
        %v1308 = vadd.f32 0.0, %v1307
        %v1309 = vpop.f32.mrf.mxu0
        %v1310 = vadd.f32 0.0, %v1309
        %1311 = vdwg.mxu0
        %v1329 = vunpack.c.l.b16 %v1196
        %v1330 = vunpack.c.l.b16 %v1197
        %v1331 = vunpack.c.l.b16 %v1198
        %v1332 = vunpack.c.l.b16 %v1199
        %v1333 = vunpack.c.l.b16 %v1200
        %v1334 = vunpack.c.l.b16 %v1201
        %v1335 = vunpack.c.l.b16 %v1202
        %v1336 = vunpack.c.l.b16 %v1203
        %v1337 = vunpack.c.l.b16 %v1204
        %v1338 = vunpack.c.l.b16 %v1205
        %v1339 = vunpack.c.l.b16 %v1206
        %v1340 = vunpack.c.l.b16 %v1207
        %v1341 = vunpack.c.l.b16 %v1208
        %v1342 = vunpack.c.l.b16 %v1209
        %v1343 = vunpack.c.l.b16 %v1210
        %v1344 = vunpack.c.l.b16 %v1211
        %v1345 = vpack.c.b16 %v1330, %v1329
        %v1346 = vpack.c.b16 %v1332, %v1331
        %v1347 = vpack.c.b16 %v1334, %v1333
        %v1348 = vpack.c.b16 %v1336, %v1335
        %v1349 = vpack.c.b16 %v1338, %v1337
        %v1350 = vpack.c.b16 %v1340, %v1339
        %v1351 = vpack.c.b16 %v1342, %v1341
        %v1352 = vpack.c.b16 %v1344, %v1343
        %1361 = vmatpush.bf16.msra.mxu0 %v1352
        %1362 = vmatpush.bf16.msra.mxu0 %v1351
        %1363 = vmatpush.bf16.msra.mxu0 %v1350
        %1364 = vmatpush.bf16.msra.mxu0 %v1349
        %1365 = vmatpush.bf16.msra.mxu0 %v1348
        %1366 = vmatpush.bf16.msra.mxu0 %v1347
        %1367 = vmatpush.bf16.msra.mxu0 %v1346
        %1368 = vmatpush.bf16.msra.mxu0 %v1345
        %1369 = vmatmul.bf16.gmra.mxu0 %v1235
        %v1370 = vpop.f32.mrf.mxu0
        %v1371 = vadd.f32 %v1308, %v1370
        %v1372 = vpop.f32.mrf.mxu0
        %v1373 = vadd.f32 %v1310, %v1372
        %1374 = vdwg.mxu0
        %s1375 = scalar_lea.vmem [#allocation6], 128
        %v1376 = vld [vmem:[%s1375] sm:$0xf]
        %v1377 = vld [vmem:[%s1375 + $0x4] sm:$0xf]
        %v1378 = vld [vmem:[%s1375 + $0x8] sm:$0xf]
        %v1379 = vld [vmem:[%s1375 + $0xc] sm:$0xf]
        %v1380 = vld [vmem:[%s1375 + $0x10] sm:$0xf]
        %v1381 = vld [vmem:[%s1375 + $0x14] sm:$0xf]
        %v1382 = vld [vmem:[%s1375 + $0x18] sm:$0xf]
        %v1383 = vld [vmem:[%s1375 + $0x1c] sm:$0xf]
        %v1384 = vld [vmem:[%s1375 + $0x20] sm:$0xf]
        %v1385 = vld [vmem:[%s1375 + $0x24] sm:$0xf]
        %v1386 = vld [vmem:[%s1375 + $0x28] sm:$0xf]
        %v1387 = vld [vmem:[%s1375 + $0x2c] sm:$0xf]
        %v1388 = vld [vmem:[%s1375 + $0x30] sm:$0xf]
        %v1389 = vld [vmem:[%s1375 + $0x34] sm:$0xf]
        %v1390 = vld [vmem:[%s1375 + $0x38] sm:$0xf]
        %v1391 = vld [vmem:[%s1375 + $0x3c] sm:$0xf]
        %v1392 = vrot.slane %v1235, 1
        %v1393 = vrot.slane %v1236, 1
        %v1394 = vsel %vm758, %v1392, %v1393
        %v1412 = vunpack.c.l.b16 %v1376
        %v1413 = vunpack.c.l.b16 %v1377
        %v1414 = vunpack.c.l.b16 %v1378
        %v1415 = vunpack.c.l.b16 %v1379
        %v1416 = vunpack.c.l.b16 %v1380
        %v1417 = vunpack.c.l.b16 %v1381
        %v1418 = vunpack.c.l.b16 %v1382
        %v1419 = vunpack.c.l.b16 %v1383
        %v1420 = vunpack.c.l.b16 %v1384
        %v1421 = vunpack.c.l.b16 %v1385
        %v1422 = vunpack.c.l.b16 %v1386
        %v1423 = vunpack.c.l.b16 %v1387
        %v1424 = vunpack.c.l.b16 %v1388
        %v1425 = vunpack.c.l.b16 %v1389
        %v1426 = vunpack.c.l.b16 %v1390
        %v1427 = vunpack.c.l.b16 %v1391
        %v1428 = vpack.c.b16 %v1413, %v1412
        %v1429 = vpack.c.b16 %v1415, %v1414
        %v1430 = vpack.c.b16 %v1417, %v1416
        %v1431 = vpack.c.b16 %v1419, %v1418
        %v1432 = vpack.c.b16 %v1421, %v1420
        %v1433 = vpack.c.b16 %v1423, %v1422
        %v1434 = vpack.c.b16 %v1425, %v1424
        %v1435 = vpack.c.b16 %v1427, %v1426
        %1444 = vmatpush.bf16.msra.mxu0 %v1435
        %1445 = vmatpush.bf16.msra.mxu0 %v1434
        %1446 = vmatpush.bf16.msra.mxu0 %v1433
        %1447 = vmatpush.bf16.msra.mxu0 %v1432
        %1448 = vmatpush.bf16.msra.mxu0 %v1431
        %1449 = vmatpush.bf16.msra.mxu0 %v1430
        %1450 = vmatpush.bf16.msra.mxu0 %v1429
        %1451 = vmatpush.bf16.msra.mxu0 %v1428
        %1452 = vmatmul.bf16.gmra.mxu0 %v1394
        %v1453 = vpop.f32.mrf.mxu0
        %v1454 = vadd.f32 0.0, %v1453
        %v1455 = vpop.f32.mrf.mxu0
        %v1456 = vadd.f32 0.0, %v1455
        %1457 = vdwg.mxu0
        %v1458 = vadd.f32 %v1371, %v1454
        %v1459 = vadd.f32 %v1373, %v1456
        %s1460 = scalar_lea.vmem %s7, 1
        %v1461 = vld [vmem:[%s1460] sm:$0x1]
        %v1463 = vperm.slane %v1461, 0
        %v1465 = vadd.f32 %v1458, %v1463
        %v1466 = vadd.f32 %v1459, %v1463
        %vm1467 = vcmp.ge.f32.partialorder %v1465, 0.0
        %vm1468 = vcmp.ge.f32.partialorder %v1466, 0.0
        %v1469 = vmul.f32 %v1465, 0.01
        %v1470 = vmul.f32 %v1466, 0.01
        %v1471 = vsel %vm1467, %v1465, %v1469
        %v1472 = vsel %vm1468, %v1466, %v1470
        %1473 = vst [vmem:[#allocation5 + $0x1] sm:$0xff] %v1471
        %1474 = vst [vmem:[#allocation5 + $0x9] sm:$0xff] %v1472
        %v1475 = vld [vmem:[#allocation5] sm:$0xff]
        %v1476 = vld [vmem:[#allocation5 + $0x8] sm:$0xff]
        %v1477 = vld [vmem:[#allocation5 + $0x10] sm:$0x3]
        %v1478 = vpack.c.bf16 %v1475, %v1475
        %v1479 = vpack.c.bf16 %v1476, %v1476
        %v1480 = vpack.c.bf16 %v1477, %v1477
        %s1481 = scalar_lea.vmem [#allocation6], 192
        %v1482 = vld [vmem:[%s1481] sm:$0xf]
        %v1483 = vld [vmem:[%s1481 + $0x4] sm:$0xf]
        %v1484 = vld [vmem:[%s1481 + $0x8] sm:$0xf]
        %v1485 = vld [vmem:[%s1481 + $0xc] sm:$0xf]
        %v1486 = vld [vmem:[%s1481 + $0x10] sm:$0xf]
        %v1487 = vld [vmem:[%s1481 + $0x14] sm:$0xf]
        %v1488 = vld [vmem:[%s1481 + $0x18] sm:$0xf]
        %v1489 = vld [vmem:[%s1481 + $0x1c] sm:$0xf]
        %v1490 = vld [vmem:[%s1481 + $0x20] sm:$0xf]
        %v1491 = vld [vmem:[%s1481 + $0x24] sm:$0xf]
        %v1492 = vld [vmem:[%s1481 + $0x28] sm:$0xf]
        %v1493 = vld [vmem:[%s1481 + $0x2c] sm:$0xf]
        %v1494 = vld [vmem:[%s1481 + $0x30] sm:$0xf]
        %v1495 = vld [vmem:[%s1481 + $0x34] sm:$0xf]
        %v1496 = vld [vmem:[%s1481 + $0x38] sm:$0xf]
        %v1497 = vld [vmem:[%s1481 + $0x3c] sm:$0xf]
        %s1498 = scalar_lea.vmem [#allocation6], 256
        %v1499 = vld [vmem:[%s1498] sm:$0xf]
        %v1500 = vld [vmem:[%s1498 + $0x4] sm:$0xf]
        %v1501 = vld [vmem:[%s1498 + $0x8] sm:$0xf]
        %v1502 = vld [vmem:[%s1498 + $0xc] sm:$0xf]
        %v1503 = vld [vmem:[%s1498 + $0x10] sm:$0xf]
        %v1504 = vld [vmem:[%s1498 + $0x14] sm:$0xf]
        %v1505 = vld [vmem:[%s1498 + $0x18] sm:$0xf]
        %v1506 = vld [vmem:[%s1498 + $0x1c] sm:$0xf]
        %v1507 = vld [vmem:[%s1498 + $0x20] sm:$0xf]
        %v1508 = vld [vmem:[%s1498 + $0x24] sm:$0xf]
        %v1509 = vld [vmem:[%s1498 + $0x28] sm:$0xf]
        %v1510 = vld [vmem:[%s1498 + $0x2c] sm:$0xf]
        %v1511 = vld [vmem:[%s1498 + $0x30] sm:$0xf]
        %v1512 = vld [vmem:[%s1498 + $0x34] sm:$0xf]
        %v1513 = vld [vmem:[%s1498 + $0x38] sm:$0xf]
        %v1514 = vld [vmem:[%s1498 + $0x3c] sm:$0xf]
        %v1518 = vunpack.c.l.b16 %v1478
        %v1519 = vunpack.c.l.b16 %v1479
        %v1520 = vunpack.c.l.b16 %v1480
        %v1521 = vpack.c.b16 %v1519, %v1518
        %v1522 = vpack.c.b16 %v1520, %v1520
        %v1524 = vshrl.u32 %v1521, 16
        %v1526 = vshll.u32 %v1521, 16
        %v1528 = vrot.slane %v1526, 1
        %v1529 = vor.u32 %v1524, %v1528
        %v1531 = vshll.u32 %v1522, 16
        %v1533 = vrot.slane %v1531, 1
        %v1534 = vsel %vm597, %v1529, %v1533
        %v1552 = vunpack.c.l.b16 %v1499
        %v1553 = vunpack.c.l.b16 %v1500
        %v1554 = vunpack.c.l.b16 %v1501
        %v1555 = vunpack.c.l.b16 %v1502
        %v1556 = vunpack.c.l.b16 %v1503
        %v1557 = vunpack.c.l.b16 %v1504
        %v1558 = vunpack.c.l.b16 %v1505
        %v1559 = vunpack.c.l.b16 %v1506
        %v1560 = vunpack.c.l.b16 %v1507
        %v1561 = vunpack.c.l.b16 %v1508
        %v1562 = vunpack.c.l.b16 %v1509
        %v1563 = vunpack.c.l.b16 %v1510
        %v1564 = vunpack.c.l.b16 %v1511
        %v1565 = vunpack.c.l.b16 %v1512
        %v1566 = vunpack.c.l.b16 %v1513
        %v1567 = vunpack.c.l.b16 %v1514
        %v1568 = vpack.c.b16 %v1553, %v1552
        %v1569 = vpack.c.b16 %v1555, %v1554
        %v1570 = vpack.c.b16 %v1557, %v1556
        %v1571 = vpack.c.b16 %v1559, %v1558
        %v1572 = vpack.c.b16 %v1561, %v1560
        %v1573 = vpack.c.b16 %v1563, %v1562
        %v1574 = vpack.c.b16 %v1565, %v1564
        %v1575 = vpack.c.b16 %v1567, %v1566
        %1584 = vmatpush.bf16.msra.mxu0 %v1575
        %1585 = vmatpush.bf16.msra.mxu0 %v1574
        %1586 = vmatpush.bf16.msra.mxu0 %v1573
        %1587 = vmatpush.bf16.msra.mxu0 %v1572
        %1588 = vmatpush.bf16.msra.mxu0 %v1571
        %1589 = vmatpush.bf16.msra.mxu0 %v1570
        %1590 = vmatpush.bf16.msra.mxu0 %v1569
        %1591 = vmatpush.bf16.msra.mxu0 %v1568
        %1592 = vmatmul.bf16.gmra.mxu0 %v1534
        %v1593 = vpop.f32.mrf.mxu0
        %v1594 = vadd.f32 0.0, %v1593
        %v1595 = vpop.f32.mrf.mxu0
        %v1596 = vadd.f32 0.0, %v1595
        %1597 = vdwg.mxu0
        %v1615 = vunpack.c.l.b16 %v1482
        %v1616 = vunpack.c.l.b16 %v1483
        %v1617 = vunpack.c.l.b16 %v1484
        %v1618 = vunpack.c.l.b16 %v1485
        %v1619 = vunpack.c.l.b16 %v1486
        %v1620 = vunpack.c.l.b16 %v1487
        %v1621 = vunpack.c.l.b16 %v1488
        %v1622 = vunpack.c.l.b16 %v1489
        %v1623 = vunpack.c.l.b16 %v1490
        %v1624 = vunpack.c.l.b16 %v1491
        %v1625 = vunpack.c.l.b16 %v1492
        %v1626 = vunpack.c.l.b16 %v1493
        %v1627 = vunpack.c.l.b16 %v1494
        %v1628 = vunpack.c.l.b16 %v1495
        %v1629 = vunpack.c.l.b16 %v1496
        %v1630 = vunpack.c.l.b16 %v1497
        %v1631 = vpack.c.b16 %v1616, %v1615
        %v1632 = vpack.c.b16 %v1618, %v1617
        %v1633 = vpack.c.b16 %v1620, %v1619
        %v1634 = vpack.c.b16 %v1622, %v1621
        %v1635 = vpack.c.b16 %v1624, %v1623
        %v1636 = vpack.c.b16 %v1626, %v1625
        %v1637 = vpack.c.b16 %v1628, %v1627
        %v1638 = vpack.c.b16 %v1630, %v1629
        %1647 = vmatpush.bf16.msra.mxu0 %v1638
        %1648 = vmatpush.bf16.msra.mxu0 %v1637
        %1649 = vmatpush.bf16.msra.mxu0 %v1636
        %1650 = vmatpush.bf16.msra.mxu0 %v1635
        %1651 = vmatpush.bf16.msra.mxu0 %v1634
        %1652 = vmatpush.bf16.msra.mxu0 %v1633
        %1653 = vmatpush.bf16.msra.mxu0 %v1632
        %1654 = vmatpush.bf16.msra.mxu0 %v1631
        %1655 = vmatmul.bf16.gmra.mxu0 %v1521
        %v1656 = vpop.f32.mrf.mxu0
        %v1657 = vadd.f32 %v1594, %v1656
        %v1658 = vpop.f32.mrf.mxu0
        %v1659 = vadd.f32 %v1596, %v1658
        %1660 = vdwg.mxu0
        %s1661 = scalar_lea.vmem [#allocation6], 320
        %v1662 = vld [vmem:[%s1661] sm:$0xf]
        %v1663 = vld [vmem:[%s1661 + $0x4] sm:$0xf]
        %v1664 = vld [vmem:[%s1661 + $0x8] sm:$0xf]
        %v1665 = vld [vmem:[%s1661 + $0xc] sm:$0xf]
        %v1666 = vld [vmem:[%s1661 + $0x10] sm:$0xf]
        %v1667 = vld [vmem:[%s1661 + $0x14] sm:$0xf]
        %v1668 = vld [vmem:[%s1661 + $0x18] sm:$0xf]
        %v1669 = vld [vmem:[%s1661 + $0x1c] sm:$0xf]
        %v1670 = vld [vmem:[%s1661 + $0x20] sm:$0xf]
        %v1671 = vld [vmem:[%s1661 + $0x24] sm:$0xf]
        %v1672 = vld [vmem:[%s1661 + $0x28] sm:$0xf]
        %v1673 = vld [vmem:[%s1661 + $0x2c] sm:$0xf]
        %v1674 = vld [vmem:[%s1661 + $0x30] sm:$0xf]
        %v1675 = vld [vmem:[%s1661 + $0x34] sm:$0xf]
        %v1676 = vld [vmem:[%s1661 + $0x38] sm:$0xf]
        %v1677 = vld [vmem:[%s1661 + $0x3c] sm:$0xf]
        %v1678 = vrot.slane %v1521, 1
        %v1679 = vrot.slane %v1522, 1
        %v1680 = vsel %vm758, %v1678, %v1679
        %v1698 = vunpack.c.l.b16 %v1662
        %v1699 = vunpack.c.l.b16 %v1663
        %v1700 = vunpack.c.l.b16 %v1664
        %v1701 = vunpack.c.l.b16 %v1665
        %v1702 = vunpack.c.l.b16 %v1666
        %v1703 = vunpack.c.l.b16 %v1667
        %v1704 = vunpack.c.l.b16 %v1668
        %v1705 = vunpack.c.l.b16 %v1669
        %v1706 = vunpack.c.l.b16 %v1670
        %v1707 = vunpack.c.l.b16 %v1671
        %v1708 = vunpack.c.l.b16 %v1672
        %v1709 = vunpack.c.l.b16 %v1673
        %v1710 = vunpack.c.l.b16 %v1674
        %v1711 = vunpack.c.l.b16 %v1675
        %v1712 = vunpack.c.l.b16 %v1676
        %v1713 = vunpack.c.l.b16 %v1677
        %v1714 = vpack.c.b16 %v1699, %v1698
        %v1715 = vpack.c.b16 %v1701, %v1700
        %v1716 = vpack.c.b16 %v1703, %v1702
        %v1717 = vpack.c.b16 %v1705, %v1704
        %v1718 = vpack.c.b16 %v1707, %v1706
        %v1719 = vpack.c.b16 %v1709, %v1708
        %v1720 = vpack.c.b16 %v1711, %v1710
        %v1721 = vpack.c.b16 %v1713, %v1712
        %1730 = vmatpush.bf16.msra.mxu0 %v1721
        %1731 = vmatpush.bf16.msra.mxu0 %v1720
        %1732 = vmatpush.bf16.msra.mxu0 %v1719
        %1733 = vmatpush.bf16.msra.mxu0 %v1718
        %1734 = vmatpush.bf16.msra.mxu0 %v1717
        %1735 = vmatpush.bf16.msra.mxu0 %v1716
        %1736 = vmatpush.bf16.msra.mxu0 %v1715
        %1737 = vmatpush.bf16.msra.mxu0 %v1714
        %1738 = vmatmul.bf16.gmra.mxu0 %v1680
        %v1739 = vpop.f32.mrf.mxu0
        %v1740 = vadd.f32 0.0, %v1739
        %v1741 = vpop.f32.mrf.mxu0
        %v1742 = vadd.f32 0.0, %v1741
        %1743 = vdwg.mxu0
        %v1744 = vadd.f32 %v1657, %v1740
        %v1745 = vadd.f32 %v1659, %v1742
        %s1746 = scalar_lea.vmem %s7, 2
        %v1747 = vld [vmem:[%s1746] sm:$0x1]
        %v1749 = vperm.slane %v1747, 0
        %v1751 = vadd.f32 %v1744, %v1749
        %v1752 = vadd.f32 %v1745, %v1749
        %v1753 = vmax.f32 %v1751, 0.0
        %v1754 = vmax.f32 %v1752, 0.0
        %1755 = vst [vmem:[#allocation4 + $0x1] sm:$0xff] %v1753
        %1756 = vst [vmem:[#allocation4 + $0x9] sm:$0xff] %v1754
        %v1757 = vld [vmem:[#allocation4] sm:$0xff]
        %v1758 = vld [vmem:[#allocation4 + $0x8] sm:$0xff]
        %v1759 = vld [vmem:[#allocation4 + $0x10] sm:$0x3]
        %v1760 = vpack.c.bf16 %v1757, %v1757
        %v1761 = vpack.c.bf16 %v1758, %v1758
        %v1762 = vpack.c.bf16 %v1759, %v1759
        %s1763 = scalar_lea.vmem [#allocation6], 384
        %v1764 = vld [vmem:[%s1763] sm:$0xf]
        %v1765 = vld [vmem:[%s1763 + $0x4] sm:$0xf]
        %v1766 = vld [vmem:[%s1763 + $0x8] sm:$0xf]
        %v1767 = vld [vmem:[%s1763 + $0xc] sm:$0xf]
        %v1768 = vld [vmem:[%s1763 + $0x10] sm:$0xf]
        %v1769 = vld [vmem:[%s1763 + $0x14] sm:$0xf]
        %v1770 = vld [vmem:[%s1763 + $0x18] sm:$0xf]
        %v1771 = vld [vmem:[%s1763 + $0x1c] sm:$0xf]
        %v1772 = vld [vmem:[%s1763 + $0x20] sm:$0xf]
        %v1773 = vld [vmem:[%s1763 + $0x24] sm:$0xf]
        %v1774 = vld [vmem:[%s1763 + $0x28] sm:$0xf]
        %v1775 = vld [vmem:[%s1763 + $0x2c] sm:$0xf]
        %v1776 = vld [vmem:[%s1763 + $0x30] sm:$0xf]
        %v1777 = vld [vmem:[%s1763 + $0x34] sm:$0xf]
        %v1778 = vld [vmem:[%s1763 + $0x38] sm:$0xf]
        %v1779 = vld [vmem:[%s1763 + $0x3c] sm:$0xf]
        %s1780 = scalar_lea.vmem [#allocation6], 448
        %v1781 = vld [vmem:[%s1780] sm:$0xf]
        %v1782 = vld [vmem:[%s1780 + $0x4] sm:$0xf]
        %v1783 = vld [vmem:[%s1780 + $0x8] sm:$0xf]
        %v1784 = vld [vmem:[%s1780 + $0xc] sm:$0xf]
        %v1785 = vld [vmem:[%s1780 + $0x10] sm:$0xf]
        %v1786 = vld [vmem:[%s1780 + $0x14] sm:$0xf]
        %v1787 = vld [vmem:[%s1780 + $0x18] sm:$0xf]
        %v1788 = vld [vmem:[%s1780 + $0x1c] sm:$0xf]
        %v1789 = vld [vmem:[%s1780 + $0x20] sm:$0xf]
        %v1790 = vld [vmem:[%s1780 + $0x24] sm:$0xf]
        %v1791 = vld [vmem:[%s1780 + $0x28] sm:$0xf]
        %v1792 = vld [vmem:[%s1780 + $0x2c] sm:$0xf]
        %v1793 = vld [vmem:[%s1780 + $0x30] sm:$0xf]
        %v1794 = vld [vmem:[%s1780 + $0x34] sm:$0xf]
        %v1795 = vld [vmem:[%s1780 + $0x38] sm:$0xf]
        %v1796 = vld [vmem:[%s1780 + $0x3c] sm:$0xf]
        %v1800 = vunpack.c.l.b16 %v1760
        %v1801 = vunpack.c.l.b16 %v1761
        %v1802 = vunpack.c.l.b16 %v1762
        %v1803 = vpack.c.b16 %v1801, %v1800
        %v1804 = vpack.c.b16 %v1802, %v1802
        %v1806 = vshrl.u32 %v1803, 16
        %v1808 = vshll.u32 %v1803, 16
        %v1810 = vrot.slane %v1808, 1
        %v1811 = vor.u32 %v1806, %v1810
        %v1813 = vshll.u32 %v1804, 16
        %v1815 = vrot.slane %v1813, 1
        %v1816 = vsel %vm597, %v1811, %v1815
        %v1834 = vunpack.c.l.b16 %v1781
        %v1835 = vunpack.c.l.b16 %v1782
        %v1836 = vunpack.c.l.b16 %v1783
        %v1837 = vunpack.c.l.b16 %v1784
        %v1838 = vunpack.c.l.b16 %v1785
        %v1839 = vunpack.c.l.b16 %v1786
        %v1840 = vunpack.c.l.b16 %v1787
        %v1841 = vunpack.c.l.b16 %v1788
        %v1842 = vunpack.c.l.b16 %v1789
        %v1843 = vunpack.c.l.b16 %v1790
        %v1844 = vunpack.c.l.b16 %v1791
        %v1845 = vunpack.c.l.b16 %v1792
        %v1846 = vunpack.c.l.b16 %v1793
        %v1847 = vunpack.c.l.b16 %v1794
        %v1848 = vunpack.c.l.b16 %v1795
        %v1849 = vunpack.c.l.b16 %v1796
        %v1850 = vpack.c.b16 %v1835, %v1834
        %v1851 = vpack.c.b16 %v1837, %v1836
        %v1852 = vpack.c.b16 %v1839, %v1838
        %v1853 = vpack.c.b16 %v1841, %v1840
        %v1854 = vpack.c.b16 %v1843, %v1842
        %v1855 = vpack.c.b16 %v1845, %v1844
        %v1856 = vpack.c.b16 %v1847, %v1846
        %v1857 = vpack.c.b16 %v1849, %v1848
        %1866 = vmatpush.bf16.msra.mxu0 %v1857
        %1867 = vmatpush.bf16.msra.mxu0 %v1856
        %1868 = vmatpush.bf16.msra.mxu0 %v1855
        %1869 = vmatpush.bf16.msra.mxu0 %v1854
        %1870 = vmatpush.bf16.msra.mxu0 %v1853
        %1871 = vmatpush.bf16.msra.mxu0 %v1852
        %1872 = vmatpush.bf16.msra.mxu0 %v1851
        %1873 = vmatpush.bf16.msra.mxu0 %v1850
        %1874 = vmatmul.bf16.gmra.mxu0 %v1816
        %v1875 = vpop.f32.mrf.mxu0
        %v1876 = vadd.f32 0.0, %v1875
        %v1877 = vpop.f32.mrf.mxu0
        %v1878 = vadd.f32 0.0, %v1877
        %1879 = vdwg.mxu0
        %v1897 = vunpack.c.l.b16 %v1764
        %v1898 = vunpack.c.l.b16 %v1765
        %v1899 = vunpack.c.l.b16 %v1766
        %v1900 = vunpack.c.l.b16 %v1767
        %v1901 = vunpack.c.l.b16 %v1768
        %v1902 = vunpack.c.l.b16 %v1769
        %v1903 = vunpack.c.l.b16 %v1770
        %v1904 = vunpack.c.l.b16 %v1771
        %v1905 = vunpack.c.l.b16 %v1772
        %v1906 = vunpack.c.l.b16 %v1773
        %v1907 = vunpack.c.l.b16 %v1774
        %v1908 = vunpack.c.l.b16 %v1775
        %v1909 = vunpack.c.l.b16 %v1776
        %v1910 = vunpack.c.l.b16 %v1777
        %v1911 = vunpack.c.l.b16 %v1778
        %v1912 = vunpack.c.l.b16 %v1779
        %v1913 = vpack.c.b16 %v1898, %v1897
        %v1914 = vpack.c.b16 %v1900, %v1899
        %v1915 = vpack.c.b16 %v1902, %v1901
        %v1916 = vpack.c.b16 %v1904, %v1903
        %v1917 = vpack.c.b16 %v1906, %v1905
        %v1918 = vpack.c.b16 %v1908, %v1907
        %v1919 = vpack.c.b16 %v1910, %v1909
        %v1920 = vpack.c.b16 %v1912, %v1911
        %1929 = vmatpush.bf16.msra.mxu0 %v1920
        %1930 = vmatpush.bf16.msra.mxu0 %v1919
        %1931 = vmatpush.bf16.msra.mxu0 %v1918
        %1932 = vmatpush.bf16.msra.mxu0 %v1917
        %1933 = vmatpush.bf16.msra.mxu0 %v1916
        %1934 = vmatpush.bf16.msra.mxu0 %v1915
        %1935 = vmatpush.bf16.msra.mxu0 %v1914
        %1936 = vmatpush.bf16.msra.mxu0 %v1913
        %1937 = vmatmul.bf16.gmra.mxu0 %v1803
        %v1938 = vpop.f32.mrf.mxu0
        %v1939 = vadd.f32 %v1876, %v1938
        %v1940 = vpop.f32.mrf.mxu0
        %v1941 = vadd.f32 %v1878, %v1940
        %1942 = vdwg.mxu0
        %s1943 = scalar_lea.vmem [#allocation6], 512
        %v1944 = vld [vmem:[%s1943] sm:$0xf]
        %v1945 = vld [vmem:[%s1943 + $0x4] sm:$0xf]
        %v1946 = vld [vmem:[%s1943 + $0x8] sm:$0xf]
        %v1947 = vld [vmem:[%s1943 + $0xc] sm:$0xf]
        %v1948 = vld [vmem:[%s1943 + $0x10] sm:$0xf]
        %v1949 = vld [vmem:[%s1943 + $0x14] sm:$0xf]
        %v1950 = vld [vmem:[%s1943 + $0x18] sm:$0xf]
        %v1951 = vld [vmem:[%s1943 + $0x1c] sm:$0xf]
        %v1952 = vld [vmem:[%s1943 + $0x20] sm:$0xf]
        %v1953 = vld [vmem:[%s1943 + $0x24] sm:$0xf]
        %v1954 = vld [vmem:[%s1943 + $0x28] sm:$0xf]
        %v1955 = vld [vmem:[%s1943 + $0x2c] sm:$0xf]
        %v1956 = vld [vmem:[%s1943 + $0x30] sm:$0xf]
        %v1957 = vld [vmem:[%s1943 + $0x34] sm:$0xf]
        %v1958 = vld [vmem:[%s1943 + $0x38] sm:$0xf]
        %v1959 = vld [vmem:[%s1943 + $0x3c] sm:$0xf]
        %v1960 = vrot.slane %v1803, 1
        %v1961 = vrot.slane %v1804, 1
        %v1962 = vsel %vm758, %v1960, %v1961
        %v1980 = vunpack.c.l.b16 %v1944
        %v1981 = vunpack.c.l.b16 %v1945
        %v1982 = vunpack.c.l.b16 %v1946
        %v1983 = vunpack.c.l.b16 %v1947
        %v1984 = vunpack.c.l.b16 %v1948
        %v1985 = vunpack.c.l.b16 %v1949
        %v1986 = vunpack.c.l.b16 %v1950
        %v1987 = vunpack.c.l.b16 %v1951
        %v1988 = vunpack.c.l.b16 %v1952
        %v1989 = vunpack.c.l.b16 %v1953
        %v1990 = vunpack.c.l.b16 %v1954
        %v1991 = vunpack.c.l.b16 %v1955
        %v1992 = vunpack.c.l.b16 %v1956
        %v1993 = vunpack.c.l.b16 %v1957
        %v1994 = vunpack.c.l.b16 %v1958
        %v1995 = vunpack.c.l.b16 %v1959
        %v1996 = vpack.c.b16 %v1981, %v1980
        %v1997 = vpack.c.b16 %v1983, %v1982
        %v1998 = vpack.c.b16 %v1985, %v1984
        %v1999 = vpack.c.b16 %v1987, %v1986
        %v2000 = vpack.c.b16 %v1989, %v1988
        %v2001 = vpack.c.b16 %v1991, %v1990
        %v2002 = vpack.c.b16 %v1993, %v1992
        %v2003 = vpack.c.b16 %v1995, %v1994
        %2012 = vmatpush.bf16.msra.mxu0 %v2003
        %2013 = vmatpush.bf16.msra.mxu0 %v2002
        %2014 = vmatpush.bf16.msra.mxu0 %v2001
        %2015 = vmatpush.bf16.msra.mxu0 %v2000
        %2016 = vmatpush.bf16.msra.mxu0 %v1999
        %2017 = vmatpush.bf16.msra.mxu0 %v1998
        %2018 = vmatpush.bf16.msra.mxu0 %v1997
        %2019 = vmatpush.bf16.msra.mxu0 %v1996
        %2020 = vmatmul.bf16.gmra.mxu0 %v1962
        %v2021 = vpop.f32.mrf.mxu0
        %v2022 = vadd.f32 0.0, %v2021
        %v2023 = vpop.f32.mrf.mxu0
        %v2024 = vadd.f32 0.0, %v2023
        %2025 = vdwg.mxu0
        %v2026 = vadd.f32 %v1939, %v2022
        %v2027 = vadd.f32 %v1941, %v2024
        %s2028 = scalar_lea.vmem %s7, 3
        %v2029 = vld [vmem:[%s2028] sm:$0x1]
        %v2031 = vperm.slane %v2029, 0
        %v2033 = vadd.f32 %v2026, %v2031
        %v2034 = vadd.f32 %v2027, %v2031
        %v2035 = vadd.f32 %v2033, %v1471
        %v2036 = vadd.f32 %v2034, %v1472
        %2037 = vst [vmem:[#allocation5 + $0x1] sm:$0xff] %v2035
        %2038 = vst [vmem:[#allocation5 + $0x9] sm:$0xff] %v2036
        %v2039 = vld [vmem:[#allocation5] sm:$0xff]
        %v2040 = vld [vmem:[#allocation5 + $0x8] sm:$0xff]
        %v2041 = vld [vmem:[#allocation5 + $0x10] sm:$0x3]
        %v2042 = vpack.c.bf16 %v2039, %v2039
        %v2043 = vpack.c.bf16 %v2040, %v2040
        %v2044 = vpack.c.bf16 %v2041, %v2041
        %s2045 = scalar_lea.vmem [#allocation6], 576
        %v2046 = vld [vmem:[%s2045] sm:$0xf]
        %v2047 = vld [vmem:[%s2045 + $0x4] sm:$0xf]
        %v2048 = vld [vmem:[%s2045 + $0x8] sm:$0xf]
        %v2049 = vld [vmem:[%s2045 + $0xc] sm:$0xf]
        %v2050 = vld [vmem:[%s2045 + $0x10] sm:$0xf]
        %v2051 = vld [vmem:[%s2045 + $0x14] sm:$0xf]
        %v2052 = vld [vmem:[%s2045 + $0x18] sm:$0xf]
        %v2053 = vld [vmem:[%s2045 + $0x1c] sm:$0xf]
        %v2054 = vld [vmem:[%s2045 + $0x20] sm:$0xf]
        %v2055 = vld [vmem:[%s2045 + $0x24] sm:$0xf]
        %v2056 = vld [vmem:[%s2045 + $0x28] sm:$0xf]
        %v2057 = vld [vmem:[%s2045 + $0x2c] sm:$0xf]
        %v2058 = vld [vmem:[%s2045 + $0x30] sm:$0xf]
        %v2059 = vld [vmem:[%s2045 + $0x34] sm:$0xf]
        %v2060 = vld [vmem:[%s2045 + $0x38] sm:$0xf]
        %v2061 = vld [vmem:[%s2045 + $0x3c] sm:$0xf]
        %s2062 = scalar_lea.vmem [#allocation6], 640
        %v2063 = vld [vmem:[%s2062] sm:$0xf]
        %v2064 = vld [vmem:[%s2062 + $0x4] sm:$0xf]
        %v2065 = vld [vmem:[%s2062 + $0x8] sm:$0xf]
        %v2066 = vld [vmem:[%s2062 + $0xc] sm:$0xf]
        %v2067 = vld [vmem:[%s2062 + $0x10] sm:$0xf]
        %v2068 = vld [vmem:[%s2062 + $0x14] sm:$0xf]
        %v2069 = vld [vmem:[%s2062 + $0x18] sm:$0xf]
        %v2070 = vld [vmem:[%s2062 + $0x1c] sm:$0xf]
        %v2071 = vld [vmem:[%s2062 + $0x20] sm:$0xf]
        %v2072 = vld [vmem:[%s2062 + $0x24] sm:$0xf]
        %v2073 = vld [vmem:[%s2062 + $0x28] sm:$0xf]
        %v2074 = vld [vmem:[%s2062 + $0x2c] sm:$0xf]
        %v2075 = vld [vmem:[%s2062 + $0x30] sm:$0xf]
        %v2076 = vld [vmem:[%s2062 + $0x34] sm:$0xf]
        %v2077 = vld [vmem:[%s2062 + $0x38] sm:$0xf]
        %v2078 = vld [vmem:[%s2062 + $0x3c] sm:$0xf]
        %v2082 = vunpack.c.l.b16 %v2042
        %v2083 = vunpack.c.l.b16 %v2043
        %v2084 = vunpack.c.l.b16 %v2044
        %v2085 = vpack.c.b16 %v2083, %v2082
        %v2086 = vpack.c.b16 %v2084, %v2084
        %v2088 = vshrl.u32 %v2085, 16
        %v2090 = vshll.u32 %v2085, 16
        %v2092 = vrot.slane %v2090, 1
        %v2093 = vor.u32 %v2088, %v2092
        %v2095 = vshll.u32 %v2086, 16
        %v2097 = vrot.slane %v2095, 1
        %v2098 = vsel %vm597, %v2093, %v2097
        %v2116 = vunpack.c.l.b16 %v2063
        %v2117 = vunpack.c.l.b16 %v2064
        %v2118 = vunpack.c.l.b16 %v2065
        %v2119 = vunpack.c.l.b16 %v2066
        %v2120 = vunpack.c.l.b16 %v2067
        %v2121 = vunpack.c.l.b16 %v2068
        %v2122 = vunpack.c.l.b16 %v2069
        %v2123 = vunpack.c.l.b16 %v2070
        %v2124 = vunpack.c.l.b16 %v2071
        %v2125 = vunpack.c.l.b16 %v2072
        %v2126 = vunpack.c.l.b16 %v2073
        %v2127 = vunpack.c.l.b16 %v2074
        %v2128 = vunpack.c.l.b16 %v2075
        %v2129 = vunpack.c.l.b16 %v2076
        %v2130 = vunpack.c.l.b16 %v2077
        %v2131 = vunpack.c.l.b16 %v2078
        %v2132 = vpack.c.b16 %v2117, %v2116
        %v2133 = vpack.c.b16 %v2119, %v2118
        %v2134 = vpack.c.b16 %v2121, %v2120
        %v2135 = vpack.c.b16 %v2123, %v2122
        %v2136 = vpack.c.b16 %v2125, %v2124
        %v2137 = vpack.c.b16 %v2127, %v2126
        %v2138 = vpack.c.b16 %v2129, %v2128
        %v2139 = vpack.c.b16 %v2131, %v2130
        %2148 = vmatpush.bf16.msra.mxu0 %v2139
        %2149 = vmatpush.bf16.msra.mxu0 %v2138
        %2150 = vmatpush.bf16.msra.mxu0 %v2137
        %2151 = vmatpush.bf16.msra.mxu0 %v2136
        %2152 = vmatpush.bf16.msra.mxu0 %v2135
        %2153 = vmatpush.bf16.msra.mxu0 %v2134
        %2154 = vmatpush.bf16.msra.mxu0 %v2133
        %2155 = vmatpush.bf16.msra.mxu0 %v2132
        %2156 = vmatmul.bf16.gmra.mxu0 %v2098
        %v2157 = vpop.f32.mrf.mxu0
        %v2158 = vadd.f32 0.0, %v2157
        %v2159 = vpop.f32.mrf.mxu0
        %v2160 = vadd.f32 0.0, %v2159
        %2161 = vdwg.mxu0
        %v2179 = vunpack.c.l.b16 %v2046
        %v2180 = vunpack.c.l.b16 %v2047
        %v2181 = vunpack.c.l.b16 %v2048
        %v2182 = vunpack.c.l.b16 %v2049
        %v2183 = vunpack.c.l.b16 %v2050
        %v2184 = vunpack.c.l.b16 %v2051
        %v2185 = vunpack.c.l.b16 %v2052
        %v2186 = vunpack.c.l.b16 %v2053
        %v2187 = vunpack.c.l.b16 %v2054
        %v2188 = vunpack.c.l.b16 %v2055
        %v2189 = vunpack.c.l.b16 %v2056
        %v2190 = vunpack.c.l.b16 %v2057
        %v2191 = vunpack.c.l.b16 %v2058
        %v2192 = vunpack.c.l.b16 %v2059
        %v2193 = vunpack.c.l.b16 %v2060
        %v2194 = vunpack.c.l.b16 %v2061
        %v2195 = vpack.c.b16 %v2180, %v2179
        %v2196 = vpack.c.b16 %v2182, %v2181
        %v2197 = vpack.c.b16 %v2184, %v2183
        %v2198 = vpack.c.b16 %v2186, %v2185
        %v2199 = vpack.c.b16 %v2188, %v2187
        %v2200 = vpack.c.b16 %v2190, %v2189
        %v2201 = vpack.c.b16 %v2192, %v2191
        %v2202 = vpack.c.b16 %v2194, %v2193
        %2211 = vmatpush.bf16.msra.mxu0 %v2202
        %2212 = vmatpush.bf16.msra.mxu0 %v2201
        %2213 = vmatpush.bf16.msra.mxu0 %v2200
        %2214 = vmatpush.bf16.msra.mxu0 %v2199
        %2215 = vmatpush.bf16.msra.mxu0 %v2198
        %2216 = vmatpush.bf16.msra.mxu0 %v2197
        %2217 = vmatpush.bf16.msra.mxu0 %v2196
        %2218 = vmatpush.bf16.msra.mxu0 %v2195
        %2219 = vmatmul.bf16.gmra.mxu0 %v2085
        %v2220 = vpop.f32.mrf.mxu0
        %v2221 = vadd.f32 %v2158, %v2220
        %v2222 = vpop.f32.mrf.mxu0
        %v2223 = vadd.f32 %v2160, %v2222
        %2224 = vdwg.mxu0
        %s2225 = scalar_lea.vmem [#allocation6], 704
        %v2226 = vld [vmem:[%s2225] sm:$0xf]
        %v2227 = vld [vmem:[%s2225 + $0x4] sm:$0xf]
        %v2228 = vld [vmem:[%s2225 + $0x8] sm:$0xf]
        %v2229 = vld [vmem:[%s2225 + $0xc] sm:$0xf]
        %v2230 = vld [vmem:[%s2225 + $0x10] sm:$0xf]
        %v2231 = vld [vmem:[%s2225 + $0x14] sm:$0xf]
        %v2232 = vld [vmem:[%s2225 + $0x18] sm:$0xf]
        %v2233 = vld [vmem:[%s2225 + $0x1c] sm:$0xf]
        %v2234 = vld [vmem:[%s2225 + $0x20] sm:$0xf]
        %v2235 = vld [vmem:[%s2225 + $0x24] sm:$0xf]
        %v2236 = vld [vmem:[%s2225 + $0x28] sm:$0xf]
        %v2237 = vld [vmem:[%s2225 + $0x2c] sm:$0xf]
        %v2238 = vld [vmem:[%s2225 + $0x30] sm:$0xf]
        %v2239 = vld [vmem:[%s2225 + $0x34] sm:$0xf]
        %v2240 = vld [vmem:[%s2225 + $0x38] sm:$0xf]
        %v2241 = vld [vmem:[%s2225 + $0x3c] sm:$0xf]
        %v2242 = vrot.slane %v2085, 1
        %v2243 = vrot.slane %v2086, 1
        %v2244 = vsel %vm758, %v2242, %v2243
        %v2262 = vunpack.c.l.b16 %v2226
        %v2263 = vunpack.c.l.b16 %v2227
        %v2264 = vunpack.c.l.b16 %v2228
        %v2265 = vunpack.c.l.b16 %v2229
        %v2266 = vunpack.c.l.b16 %v2230
        %v2267 = vunpack.c.l.b16 %v2231
        %v2268 = vunpack.c.l.b16 %v2232
        %v2269 = vunpack.c.l.b16 %v2233
        %v2270 = vunpack.c.l.b16 %v2234
        %v2271 = vunpack.c.l.b16 %v2235
        %v2272 = vunpack.c.l.b16 %v2236
        %v2273 = vunpack.c.l.b16 %v2237
        %v2274 = vunpack.c.l.b16 %v2238
        %v2275 = vunpack.c.l.b16 %v2239
        %v2276 = vunpack.c.l.b16 %v2240
        %v2277 = vunpack.c.l.b16 %v2241
        %v2278 = vpack.c.b16 %v2263, %v2262
        %v2279 = vpack.c.b16 %v2265, %v2264
        %v2280 = vpack.c.b16 %v2267, %v2266
        %v2281 = vpack.c.b16 %v2269, %v2268
        %v2282 = vpack.c.b16 %v2271, %v2270
        %v2283 = vpack.c.b16 %v2273, %v2272
        %v2284 = vpack.c.b16 %v2275, %v2274
        %v2285 = vpack.c.b16 %v2277, %v2276
        %2294 = vmatpush.bf16.msra.mxu0 %v2285
        %2295 = vmatpush.bf16.msra.mxu0 %v2284
        %2296 = vmatpush.bf16.msra.mxu0 %v2283
        %2297 = vmatpush.bf16.msra.mxu0 %v2282
        %2298 = vmatpush.bf16.msra.mxu0 %v2281
        %2299 = vmatpush.bf16.msra.mxu0 %v2280
        %2300 = vmatpush.bf16.msra.mxu0 %v2279
        %2301 = vmatpush.bf16.msra.mxu0 %v2278
        %2302 = vmatmul.bf16.gmra.mxu0 %v2244
        %v2303 = vpop.f32.mrf.mxu0
        %v2304 = vadd.f32 0.0, %v2303
        %v2305 = vpop.f32.mrf.mxu0
        %v2306 = vadd.f32 0.0, %v2305
        %2307 = vdwg.mxu0
        %v2308 = vadd.f32 %v2221, %v2304
        %v2309 = vadd.f32 %v2223, %v2306
        %s2310 = scalar_lea.vmem %s7, 4
        %v2311 = vld [vmem:[%s2310] sm:$0x1]
        %v2313 = vperm.slane %v2311, 0
        %v2315 = vadd.f32 %v2308, %v2313
        %v2316 = vadd.f32 %v2309, %v2313
        %v2317 = vmax.f32 %v2315, 0.0
        %v2318 = vmax.f32 %v2316, 0.0
        %2319 = vst [vmem:[#allocation4 + $0x1] sm:$0xff] %v2317
        %2320 = vst [vmem:[#allocation4 + $0x9] sm:$0xff] %v2318
        %v2321 = vld [vmem:[#allocation4] sm:$0xff]
        %v2322 = vld [vmem:[#allocation4 + $0x8] sm:$0xff]
        %v2323 = vld [vmem:[#allocation4 + $0x10] sm:$0x3]
        %v2324 = vpack.c.bf16 %v2321, %v2321
        %v2325 = vpack.c.bf16 %v2322, %v2322
        %v2326 = vpack.c.bf16 %v2323, %v2323
        %s2327 = scalar_lea.vmem [#allocation6], 768
        %v2328 = vld [vmem:[%s2327] sm:$0xf]
        %v2329 = vld [vmem:[%s2327 + $0x4] sm:$0xf]
        %v2330 = vld [vmem:[%s2327 + $0x8] sm:$0xf]
        %v2331 = vld [vmem:[%s2327 + $0xc] sm:$0xf]
        %v2332 = vld [vmem:[%s2327 + $0x10] sm:$0xf]
        %v2333 = vld [vmem:[%s2327 + $0x14] sm:$0xf]
        %v2334 = vld [vmem:[%s2327 + $0x18] sm:$0xf]
        %v2335 = vld [vmem:[%s2327 + $0x1c] sm:$0xf]
        %v2336 = vld [vmem:[%s2327 + $0x20] sm:$0xf]
        %v2337 = vld [vmem:[%s2327 + $0x24] sm:$0xf]
        %v2338 = vld [vmem:[%s2327 + $0x28] sm:$0xf]
        %v2339 = vld [vmem:[%s2327 + $0x2c] sm:$0xf]
        %v2340 = vld [vmem:[%s2327 + $0x30] sm:$0xf]
        %v2341 = vld [vmem:[%s2327 + $0x34] sm:$0xf]
        %v2342 = vld [vmem:[%s2327 + $0x38] sm:$0xf]
        %v2343 = vld [vmem:[%s2327 + $0x3c] sm:$0xf]
        %s2344 = scalar_lea.vmem [#allocation6], 832
        %v2345 = vld [vmem:[%s2344] sm:$0xf]
        %v2346 = vld [vmem:[%s2344 + $0x4] sm:$0xf]
        %v2347 = vld [vmem:[%s2344 + $0x8] sm:$0xf]
        %v2348 = vld [vmem:[%s2344 + $0xc] sm:$0xf]
        %v2349 = vld [vmem:[%s2344 + $0x10] sm:$0xf]
        %v2350 = vld [vmem:[%s2344 + $0x14] sm:$0xf]
        %v2351 = vld [vmem:[%s2344 + $0x18] sm:$0xf]
        %v2352 = vld [vmem:[%s2344 + $0x1c] sm:$0xf]
        %v2353 = vld [vmem:[%s2344 + $0x20] sm:$0xf]
        %v2354 = vld [vmem:[%s2344 + $0x24] sm:$0xf]
        %v2355 = vld [vmem:[%s2344 + $0x28] sm:$0xf]
        %v2356 = vld [vmem:[%s2344 + $0x2c] sm:$0xf]
        %v2357 = vld [vmem:[%s2344 + $0x30] sm:$0xf]
        %v2358 = vld [vmem:[%s2344 + $0x34] sm:$0xf]
        %v2359 = vld [vmem:[%s2344 + $0x38] sm:$0xf]
        %v2360 = vld [vmem:[%s2344 + $0x3c] sm:$0xf]
        %v2364 = vunpack.c.l.b16 %v2324
        %v2365 = vunpack.c.l.b16 %v2325
        %v2366 = vunpack.c.l.b16 %v2326
        %v2367 = vpack.c.b16 %v2365, %v2364
        %v2368 = vpack.c.b16 %v2366, %v2366
        %v2370 = vshrl.u32 %v2367, 16
        %v2372 = vshll.u32 %v2367, 16
        %v2374 = vrot.slane %v2372, 1
        %v2375 = vor.u32 %v2370, %v2374
        %v2377 = vshll.u32 %v2368, 16
        %v2379 = vrot.slane %v2377, 1
        %v2380 = vsel %vm597, %v2375, %v2379
        %v2398 = vunpack.c.l.b16 %v2345
        %v2399 = vunpack.c.l.b16 %v2346
        %v2400 = vunpack.c.l.b16 %v2347
        %v2401 = vunpack.c.l.b16 %v2348
        %v2402 = vunpack.c.l.b16 %v2349
        %v2403 = vunpack.c.l.b16 %v2350
        %v2404 = vunpack.c.l.b16 %v2351
        %v2405 = vunpack.c.l.b16 %v2352
        %v2406 = vunpack.c.l.b16 %v2353
        %v2407 = vunpack.c.l.b16 %v2354
        %v2408 = vunpack.c.l.b16 %v2355
        %v2409 = vunpack.c.l.b16 %v2356
        %v2410 = vunpack.c.l.b16 %v2357
        %v2411 = vunpack.c.l.b16 %v2358
        %v2412 = vunpack.c.l.b16 %v2359
        %v2413 = vunpack.c.l.b16 %v2360
        %v2414 = vpack.c.b16 %v2399, %v2398
        %v2415 = vpack.c.b16 %v2401, %v2400
        %v2416 = vpack.c.b16 %v2403, %v2402
        %v2417 = vpack.c.b16 %v2405, %v2404
        %v2418 = vpack.c.b16 %v2407, %v2406
        %v2419 = vpack.c.b16 %v2409, %v2408
        %v2420 = vpack.c.b16 %v2411, %v2410
        %v2421 = vpack.c.b16 %v2413, %v2412
        %2430 = vmatpush.bf16.msra.mxu0 %v2421
        %2431 = vmatpush.bf16.msra.mxu0 %v2420
        %2432 = vmatpush.bf16.msra.mxu0 %v2419
        %2433 = vmatpush.bf16.msra.mxu0 %v2418
        %2434 = vmatpush.bf16.msra.mxu0 %v2417
        %2435 = vmatpush.bf16.msra.mxu0 %v2416
        %2436 = vmatpush.bf16.msra.mxu0 %v2415
        %2437 = vmatpush.bf16.msra.mxu0 %v2414
        %2438 = vmatmul.bf16.gmra.mxu0 %v2380
        %v2439 = vpop.f32.mrf.mxu0
        %v2440 = vadd.f32 0.0, %v2439
        %v2441 = vpop.f32.mrf.mxu0
        %v2442 = vadd.f32 0.0, %v2441
        %2443 = vdwg.mxu0
        %v2461 = vunpack.c.l.b16 %v2328
        %v2462 = vunpack.c.l.b16 %v2329
        %v2463 = vunpack.c.l.b16 %v2330
        %v2464 = vunpack.c.l.b16 %v2331
        %v2465 = vunpack.c.l.b16 %v2332
        %v2466 = vunpack.c.l.b16 %v2333
        %v2467 = vunpack.c.l.b16 %v2334
        %v2468 = vunpack.c.l.b16 %v2335
        %v2469 = vunpack.c.l.b16 %v2336
        %v2470 = vunpack.c.l.b16 %v2337
        %v2471 = vunpack.c.l.b16 %v2338
        %v2472 = vunpack.c.l.b16 %v2339
        %v2473 = vunpack.c.l.b16 %v2340
        %v2474 = vunpack.c.l.b16 %v2341
        %v2475 = vunpack.c.l.b16 %v2342
        %v2476 = vunpack.c.l.b16 %v2343
        %v2477 = vpack.c.b16 %v2462, %v2461
        %v2478 = vpack.c.b16 %v2464, %v2463
        %v2479 = vpack.c.b16 %v2466, %v2465
        %v2480 = vpack.c.b16 %v2468, %v2467
        %v2481 = vpack.c.b16 %v2470, %v2469
        %v2482 = vpack.c.b16 %v2472, %v2471
        %v2483 = vpack.c.b16 %v2474, %v2473
        %v2484 = vpack.c.b16 %v2476, %v2475
        %2493 = vmatpush.bf16.msra.mxu0 %v2484
        %2494 = vmatpush.bf16.msra.mxu0 %v2483
        %2495 = vmatpush.bf16.msra.mxu0 %v2482
        %2496 = vmatpush.bf16.msra.mxu0 %v2481
        %2497 = vmatpush.bf16.msra.mxu0 %v2480
        %2498 = vmatpush.bf16.msra.mxu0 %v2479
        %2499 = vmatpush.bf16.msra.mxu0 %v2478
        %2500 = vmatpush.bf16.msra.mxu0 %v2477
        %2501 = vmatmul.bf16.gmra.mxu0 %v2367
        %v2502 = vpop.f32.mrf.mxu0
        %v2503 = vadd.f32 %v2440, %v2502
        %v2504 = vpop.f32.mrf.mxu0
        %v2505 = vadd.f32 %v2442, %v2504
        %2506 = vdwg.mxu0
        %s2507 = scalar_lea.vmem [#allocation6], 896
        %v2508 = vld [vmem:[%s2507] sm:$0xf]
        %v2509 = vld [vmem:[%s2507 + $0x4] sm:$0xf]
        %v2510 = vld [vmem:[%s2507 + $0x8] sm:$0xf]
        %v2511 = vld [vmem:[%s2507 + $0xc] sm:$0xf]
        %v2512 = vld [vmem:[%s2507 + $0x10] sm:$0xf]
        %v2513 = vld [vmem:[%s2507 + $0x14] sm:$0xf]
        %v2514 = vld [vmem:[%s2507 + $0x18] sm:$0xf]
        %v2515 = vld [vmem:[%s2507 + $0x1c] sm:$0xf]
        %v2516 = vld [vmem:[%s2507 + $0x20] sm:$0xf]
        %v2517 = vld [vmem:[%s2507 + $0x24] sm:$0xf]
        %v2518 = vld [vmem:[%s2507 + $0x28] sm:$0xf]
        %v2519 = vld [vmem:[%s2507 + $0x2c] sm:$0xf]
        %v2520 = vld [vmem:[%s2507 + $0x30] sm:$0xf]
        %v2521 = vld [vmem:[%s2507 + $0x34] sm:$0xf]
        %v2522 = vld [vmem:[%s2507 + $0x38] sm:$0xf]
        %v2523 = vld [vmem:[%s2507 + $0x3c] sm:$0xf]
        %v2524 = vrot.slane %v2367, 1
        %v2525 = vrot.slane %v2368, 1
        %v2526 = vsel %vm758, %v2524, %v2525
        %v2544 = vunpack.c.l.b16 %v2508
        %v2545 = vunpack.c.l.b16 %v2509
        %v2546 = vunpack.c.l.b16 %v2510
        %v2547 = vunpack.c.l.b16 %v2511
        %v2548 = vunpack.c.l.b16 %v2512
        %v2549 = vunpack.c.l.b16 %v2513
        %v2550 = vunpack.c.l.b16 %v2514
        %v2551 = vunpack.c.l.b16 %v2515
        %v2552 = vunpack.c.l.b16 %v2516
        %v2553 = vunpack.c.l.b16 %v2517
        %v2554 = vunpack.c.l.b16 %v2518
        %v2555 = vunpack.c.l.b16 %v2519
        %v2556 = vunpack.c.l.b16 %v2520
        %v2557 = vunpack.c.l.b16 %v2521
        %v2558 = vunpack.c.l.b16 %v2522
        %v2559 = vunpack.c.l.b16 %v2523
        %v2560 = vpack.c.b16 %v2545, %v2544
        %v2561 = vpack.c.b16 %v2547, %v2546
        %v2562 = vpack.c.b16 %v2549, %v2548
        %v2563 = vpack.c.b16 %v2551, %v2550
        %v2564 = vpack.c.b16 %v2553, %v2552
        %v2565 = vpack.c.b16 %v2555, %v2554
        %v2566 = vpack.c.b16 %v2557, %v2556
        %v2567 = vpack.c.b16 %v2559, %v2558
        %2576 = vmatpush.bf16.msra.mxu0 %v2567
        %2577 = vmatpush.bf16.msra.mxu0 %v2566
        %2578 = vmatpush.bf16.msra.mxu0 %v2565
        %2579 = vmatpush.bf16.msra.mxu0 %v2564
        %2580 = vmatpush.bf16.msra.mxu0 %v2563
        %2581 = vmatpush.bf16.msra.mxu0 %v2562
        %2582 = vmatpush.bf16.msra.mxu0 %v2561
        %2583 = vmatpush.bf16.msra.mxu0 %v2560
        %2584 = vmatmul.bf16.gmra.mxu0 %v2526
        %v2585 = vpop.f32.mrf.mxu0
        %v2586 = vadd.f32 0.0, %v2585
        %v2587 = vpop.f32.mrf.mxu0
        %v2588 = vadd.f32 0.0, %v2587
        %2589 = vdwg.mxu0
        %v2590 = vadd.f32 %v2503, %v2586
        %v2591 = vadd.f32 %v2505, %v2588
        %s2592 = scalar_lea.vmem %s7, 5
        %v2593 = vld [vmem:[%s2592] sm:$0x1]
        %v2595 = vperm.slane %v2593, 0
        %v2597 = vadd.f32 %v2590, %v2595
        %v2598 = vadd.f32 %v2591, %v2595
        %v2599 = vadd.f32 %v2597, %v2035
        %v2600 = vadd.f32 %v2598, %v2036
        %2601 = vst [vmem:[#allocation5 + $0x1] sm:$0xff] %v2599
        %2602 = vst [vmem:[#allocation5 + $0x9] sm:$0xff] %v2600
        %v2603 = vld [vmem:[#allocation5] sm:$0xff]
        %v2604 = vld [vmem:[#allocation5 + $0x8] sm:$0xff]
        %v2605 = vld [vmem:[#allocation5 + $0x10] sm:$0x3]
        %v2606 = vpack.c.bf16 %v2603, %v2603
        %v2607 = vpack.c.bf16 %v2604, %v2604
        %v2608 = vpack.c.bf16 %v2605, %v2605
        %s2609 = scalar_lea.vmem [#allocation6], 960
        %v2610 = vld [vmem:[%s2609] sm:$0xf]
        %v2611 = vld [vmem:[%s2609 + $0x4] sm:$0xf]
        %v2612 = vld [vmem:[%s2609 + $0x8] sm:$0xf]
        %v2613 = vld [vmem:[%s2609 + $0xc] sm:$0xf]
        %v2614 = vld [vmem:[%s2609 + $0x10] sm:$0xf]
        %v2615 = vld [vmem:[%s2609 + $0x14] sm:$0xf]
        %v2616 = vld [vmem:[%s2609 + $0x18] sm:$0xf]
        %v2617 = vld [vmem:[%s2609 + $0x1c] sm:$0xf]
        %v2618 = vld [vmem:[%s2609 + $0x20] sm:$0xf]
        %v2619 = vld [vmem:[%s2609 + $0x24] sm:$0xf]
        %v2620 = vld [vmem:[%s2609 + $0x28] sm:$0xf]
        %v2621 = vld [vmem:[%s2609 + $0x2c] sm:$0xf]
        %v2622 = vld [vmem:[%s2609 + $0x30] sm:$0xf]
        %v2623 = vld [vmem:[%s2609 + $0x34] sm:$0xf]
        %v2624 = vld [vmem:[%s2609 + $0x38] sm:$0xf]
        %v2625 = vld [vmem:[%s2609 + $0x3c] sm:$0xf]
        %s2626 = scalar_lea.vmem [#allocation6], 1024
        %v2627 = vld [vmem:[%s2626] sm:$0xf]
        %v2628 = vld [vmem:[%s2626 + $0x4] sm:$0xf]
        %v2629 = vld [vmem:[%s2626 + $0x8] sm:$0xf]
        %v2630 = vld [vmem:[%s2626 + $0xc] sm:$0xf]
        %v2631 = vld [vmem:[%s2626 + $0x10] sm:$0xf]
        %v2632 = vld [vmem:[%s2626 + $0x14] sm:$0xf]
        %v2633 = vld [vmem:[%s2626 + $0x18] sm:$0xf]
        %v2634 = vld [vmem:[%s2626 + $0x1c] sm:$0xf]
        %v2635 = vld [vmem:[%s2626 + $0x20] sm:$0xf]
        %v2636 = vld [vmem:[%s2626 + $0x24] sm:$0xf]
        %v2637 = vld [vmem:[%s2626 + $0x28] sm:$0xf]
        %v2638 = vld [vmem:[%s2626 + $0x2c] sm:$0xf]
        %v2639 = vld [vmem:[%s2626 + $0x30] sm:$0xf]
        %v2640 = vld [vmem:[%s2626 + $0x34] sm:$0xf]
        %v2641 = vld [vmem:[%s2626 + $0x38] sm:$0xf]
        %v2642 = vld [vmem:[%s2626 + $0x3c] sm:$0xf]
        %v2646 = vunpack.c.l.b16 %v2606
        %v2647 = vunpack.c.l.b16 %v2607
        %v2648 = vunpack.c.l.b16 %v2608
        %v2649 = vpack.c.b16 %v2647, %v2646
        %v2650 = vpack.c.b16 %v2648, %v2648
        %v2652 = vshrl.u32 %v2649, 16
        %v2654 = vshll.u32 %v2649, 16
        %v2656 = vrot.slane %v2654, 1
        %v2657 = vor.u32 %v2652, %v2656
        %v2659 = vshll.u32 %v2650, 16
        %v2661 = vrot.slane %v2659, 1
        %v2662 = vsel %vm597, %v2657, %v2661
        %v2680 = vunpack.c.l.b16 %v2627
        %v2681 = vunpack.c.l.b16 %v2628
        %v2682 = vunpack.c.l.b16 %v2629
        %v2683 = vunpack.c.l.b16 %v2630
        %v2684 = vunpack.c.l.b16 %v2631
        %v2685 = vunpack.c.l.b16 %v2632
        %v2686 = vunpack.c.l.b16 %v2633
        %v2687 = vunpack.c.l.b16 %v2634
        %v2688 = vunpack.c.l.b16 %v2635
        %v2689 = vunpack.c.l.b16 %v2636
        %v2690 = vunpack.c.l.b16 %v2637
        %v2691 = vunpack.c.l.b16 %v2638
        %v2692 = vunpack.c.l.b16 %v2639
        %v2693 = vunpack.c.l.b16 %v2640
        %v2694 = vunpack.c.l.b16 %v2641
        %v2695 = vunpack.c.l.b16 %v2642
        %v2696 = vpack.c.b16 %v2681, %v2680
        %v2697 = vpack.c.b16 %v2683, %v2682
        %v2698 = vpack.c.b16 %v2685, %v2684
        %v2699 = vpack.c.b16 %v2687, %v2686
        %v2700 = vpack.c.b16 %v2689, %v2688
        %v2701 = vpack.c.b16 %v2691, %v2690
        %v2702 = vpack.c.b16 %v2693, %v2692
        %v2703 = vpack.c.b16 %v2695, %v2694
        %2712 = vmatpush.bf16.msra.mxu0 %v2703
        %2713 = vmatpush.bf16.msra.mxu0 %v2702
        %2714 = vmatpush.bf16.msra.mxu0 %v2701
        %2715 = vmatpush.bf16.msra.mxu0 %v2700
        %2716 = vmatpush.bf16.msra.mxu0 %v2699
        %2717 = vmatpush.bf16.msra.mxu0 %v2698
        %2718 = vmatpush.bf16.msra.mxu0 %v2697
        %2719 = vmatpush.bf16.msra.mxu0 %v2696
        %2720 = vmatmul.bf16.gmra.mxu0 %v2662
        %v2721 = vpop.f32.mrf.mxu0
        %v2722 = vadd.f32 0.0, %v2721
        %v2723 = vpop.f32.mrf.mxu0
        %v2724 = vadd.f32 0.0, %v2723
        %2725 = vdwg.mxu0
        %v2743 = vunpack.c.l.b16 %v2610
        %v2744 = vunpack.c.l.b16 %v2611
        %v2745 = vunpack.c.l.b16 %v2612
        %v2746 = vunpack.c.l.b16 %v2613
        %v2747 = vunpack.c.l.b16 %v2614
        %v2748 = vunpack.c.l.b16 %v2615
        %v2749 = vunpack.c.l.b16 %v2616
        %v2750 = vunpack.c.l.b16 %v2617
        %v2751 = vunpack.c.l.b16 %v2618
        %v2752 = vunpack.c.l.b16 %v2619
        %v2753 = vunpack.c.l.b16 %v2620
        %v2754 = vunpack.c.l.b16 %v2621
        %v2755 = vunpack.c.l.b16 %v2622
        %v2756 = vunpack.c.l.b16 %v2623
        %v2757 = vunpack.c.l.b16 %v2624
        %v2758 = vunpack.c.l.b16 %v2625
        %v2759 = vpack.c.b16 %v2744, %v2743
        %v2760 = vpack.c.b16 %v2746, %v2745
        %v2761 = vpack.c.b16 %v2748, %v2747
        %v2762 = vpack.c.b16 %v2750, %v2749
        %v2763 = vpack.c.b16 %v2752, %v2751
        %v2764 = vpack.c.b16 %v2754, %v2753
        %v2765 = vpack.c.b16 %v2756, %v2755
        %v2766 = vpack.c.b16 %v2758, %v2757
        %2775 = vmatpush.bf16.msra.mxu0 %v2766
        %2776 = vmatpush.bf16.msra.mxu0 %v2765
        %2777 = vmatpush.bf16.msra.mxu0 %v2764
        %2778 = vmatpush.bf16.msra.mxu0 %v2763
        %2779 = vmatpush.bf16.msra.mxu0 %v2762
        %2780 = vmatpush.bf16.msra.mxu0 %v2761
        %2781 = vmatpush.bf16.msra.mxu0 %v2760
        %2782 = vmatpush.bf16.msra.mxu0 %v2759
        %2783 = vmatmul.bf16.gmra.mxu0 %v2649
        %v2784 = vpop.f32.mrf.mxu0
        %v2785 = vadd.f32 %v2722, %v2784
        %v2786 = vpop.f32.mrf.mxu0
        %v2787 = vadd.f32 %v2724, %v2786
        %2788 = vdwg.mxu0
        %s2789 = scalar_lea.vmem [#allocation6], 1088
        %v2790 = vld [vmem:[%s2789] sm:$0xf]
        %v2791 = vld [vmem:[%s2789 + $0x4] sm:$0xf]
        %v2792 = vld [vmem:[%s2789 + $0x8] sm:$0xf]
        %v2793 = vld [vmem:[%s2789 + $0xc] sm:$0xf]
        %v2794 = vld [vmem:[%s2789 + $0x10] sm:$0xf]
        %v2795 = vld [vmem:[%s2789 + $0x14] sm:$0xf]
        %v2796 = vld [vmem:[%s2789 + $0x18] sm:$0xf]
        %v2797 = vld [vmem:[%s2789 + $0x1c] sm:$0xf]
        %v2798 = vld [vmem:[%s2789 + $0x20] sm:$0xf]
        %v2799 = vld [vmem:[%s2789 + $0x24] sm:$0xf]
        %v2800 = vld [vmem:[%s2789 + $0x28] sm:$0xf]
        %v2801 = vld [vmem:[%s2789 + $0x2c] sm:$0xf]
        %v2802 = vld [vmem:[%s2789 + $0x30] sm:$0xf]
        %v2803 = vld [vmem:[%s2789 + $0x34] sm:$0xf]
        %v2804 = vld [vmem:[%s2789 + $0x38] sm:$0xf]
        %v2805 = vld [vmem:[%s2789 + $0x3c] sm:$0xf]
        %v2806 = vrot.slane %v2649, 1
        %v2807 = vrot.slane %v2650, 1
        %v2808 = vsel %vm758, %v2806, %v2807
        %v2826 = vunpack.c.l.b16 %v2790
        %v2827 = vunpack.c.l.b16 %v2791
        %v2828 = vunpack.c.l.b16 %v2792
        %v2829 = vunpack.c.l.b16 %v2793
        %v2830 = vunpack.c.l.b16 %v2794
        %v2831 = vunpack.c.l.b16 %v2795
        %v2832 = vunpack.c.l.b16 %v2796
        %v2833 = vunpack.c.l.b16 %v2797
        %v2834 = vunpack.c.l.b16 %v2798
        %v2835 = vunpack.c.l.b16 %v2799
        %v2836 = vunpack.c.l.b16 %v2800
        %v2837 = vunpack.c.l.b16 %v2801
        %v2838 = vunpack.c.l.b16 %v2802
        %v2839 = vunpack.c.l.b16 %v2803
        %v2840 = vunpack.c.l.b16 %v2804
        %v2841 = vunpack.c.l.b16 %v2805
        %v2842 = vpack.c.b16 %v2827, %v2826
        %v2843 = vpack.c.b16 %v2829, %v2828
        %v2844 = vpack.c.b16 %v2831, %v2830
        %v2845 = vpack.c.b16 %v2833, %v2832
        %v2846 = vpack.c.b16 %v2835, %v2834
        %v2847 = vpack.c.b16 %v2837, %v2836
        %v2848 = vpack.c.b16 %v2839, %v2838
        %v2849 = vpack.c.b16 %v2841, %v2840
        %2858 = vmatpush.bf16.msra.mxu0 %v2849
        %2859 = vmatpush.bf16.msra.mxu0 %v2848
        %2860 = vmatpush.bf16.msra.mxu0 %v2847
        %2861 = vmatpush.bf16.msra.mxu0 %v2846
        %2862 = vmatpush.bf16.msra.mxu0 %v2845
        %2863 = vmatpush.bf16.msra.mxu0 %v2844
        %2864 = vmatpush.bf16.msra.mxu0 %v2843
        %2865 = vmatpush.bf16.msra.mxu0 %v2842
        %2866 = vmatmul.bf16.gmra.mxu0 %v2808
        %v2867 = vpop.f32.mrf.mxu0
        %v2868 = vadd.f32 0.0, %v2867
        %v2869 = vpop.f32.mrf.mxu0
        %v2870 = vadd.f32 0.0, %v2869
        %2871 = vdwg.mxu0
        %v2872 = vadd.f32 %v2785, %v2868
        %v2873 = vadd.f32 %v2787, %v2870
        %s2874 = scalar_lea.vmem %s7, 6
        %v2875 = vld [vmem:[%s2874] sm:$0x1]
        %v2877 = vperm.slane %v2875, 0
        %v2879 = vadd.f32 %v2872, %v2877
        %v2880 = vadd.f32 %v2873, %v2877
        %vm2881 = vcmp.ge.f32.partialorder %v2879, 0.0
        %vm2882 = vcmp.ge.f32.partialorder %v2880, 0.0
        %v2883 = vmul.f32 %v2879, 0.01
        %v2884 = vmul.f32 %v2880, 0.01
        %v2885 = vsel %vm2881, %v2879, %v2883
        %v2886 = vsel %vm2882, %v2880, %v2884
        %2887 = vst [vmem:[%s339] sm:$0xff] %v2885
        %2888 = vst [vmem:[%s339 + $0x8] sm:$0xff] %v2886
        %p2889 = scmp.lt.s32.totalorder %s20, 1
        %s2890 = scalar_select %p2889, %s20, 1
        %s2891 = smul.addr %s2890, 2
        %s2892 = smul.addr %s2891, 8
        %s2893 = scalar_lea.vmem %s8, %s2892
        // Predicated region
        $region57: #{decoder_layer_forward.1} parent=51 // pred_check
          %p2894 = pneg %p216
        $region58: #{decoder_layer_forward.1} parent=51 // pred_check_branch
          %2896 = sbr.rel (%p2894) target = $region60
        $region59: #{decoder_layer_forward.1} parent=51 // pred_region
          _
        $region60: #{decoder_layer_forward.1} parent=51 // pred_fallthru
          _
      $region52: #{decoder_layer_forward.1} parent=5 // pred_fallthru
        _
      %p2897 = scmp.le.s32.totalorder 2, %s15
      // Predicated region
      $region61: #{decoder_layer_forward.1} parent=5 // pred_check
        %p2898 = pneg %p2897
      $region62: #{decoder_layer_forward.1} parent=5 // pred_check_branch
        %2900 = sbr.rel (%p2898) target = $region64
      $region63: #{decoder_layer_forward.1} parent=5 // pred_region
        %s2901 = ssub.s32 %s15, 2
        // Predicated region
        $region65: #{decoder_layer_forward.1} parent=63 // pred_check
          %p2902 = pneg %p222
        $region66: #{decoder_layer_forward.1} parent=63 // pred_check_branch
          %2904 = sbr.rel (%p2902) target = $region68
        $region67: #{decoder_layer_forward.1} parent=63 // pred_region
          %p2905 = scmp.lt.s32.totalorder %s21, 1
          %s2906 = scalar_select %p2905, %s21, 1
          %s2907 = smul.addr %s2906, 2
          %s2908 = smul.addr %s2907, 8
          %s2909 = scalar_lea.vmem %s8, %s2908
        $region68: #{decoder_layer_forward.1} parent=63 // pred_fallthru
          _
      $region64: #{decoder_layer_forward.1} parent=5 // pred_fallthru
        _
    $region6: #{decoder_layer_forward.1} parent=1 // loop_footer
      %s19 = sadd.s32 1, %s15
    $region7: #{decoder_layer_forward.1} parent=1 // loop_footer_branch
      %14 = sbr.rel target = $region3
    $region8: #{decoder_layer_forward.1} parent=1 // loop_exit
      _
    %2910 = vsyncpa [#allocation7], 1
    %s2911 = scalar_lea.sflag [#allocation7], 1
    %2912 = vsyncpa %s2911, 1

</llo_original>
